<compile_context>
chip_gen: v5e
topology: v5e:2x2
jax: 0.10.0
libtpu: 0.0.40
codegen_flags: <defaults>
</compile_context>

<pallas_src>
import functools

import jax
import jax.numpy as jnp
from jax.experimental import pallas as pl
from jax.experimental.pallas import tpu as pltpu


_MAX_ROW_TILE = 512
# Conservatively low so modest demo shapes still exercise the Pallas path
# (review suggested ~1M elems; tune per deployment).
_SMALL_FASTPATH_ELEMS = 1 << 16          # 65536 elements
_BIG_VMEM_BYTES = 128 * 1024 * 1024


def _budgets():
    """Returns (per-block element budget, scoped vmem_limit_bytes) per chip."""
    try:
        vmem = int(pltpu.get_tpu_info().vmem_capacity_bytes)
    except Exception:
        # Unknown / API drift: fall back to v7x-safe sizing.
        vmem = 64 * 1024 * 1024
    if vmem >= _BIG_VMEM_BYTES:
        # v5e / v6e (128 MiB VMEM): 8 MiB blocks, 64 MiB scoped limit.
        return 2 * 1024 * 1024, 64 * 1024 * 1024
    # v7x (64 MiB VMEM per TC): 4 MiB blocks, keep the 32 MiB scoped limit so
    # the double-buffered x+y streams (4 * 8 MiB) never exceed it.
    return 1 * 1024 * 1024, 32 * 1024 * 1024


def _row_quantum(dtype):
    """Sublane packing quantum: 8 for 32-bit, 16 for 16-bit, 32 for 8-bit."""
    itemsize = jnp.dtype(dtype).itemsize
    if itemsize >= 4:
        return 8
    if itemsize == 2:
        return 16
    return 32


def _pick_tile(total, quantum, max_tile):
    """Largest multiple of `quantum` that divides `total` and is <= max_tile.

    Falls back to the full extent (always a legal BlockSpec dim) when `total`
    is small or has no suitable divisor.
    """
    total = int(total)
    max_tile = int(max_tile)
    if total <= max_tile:
        return total
    t = (max_tile // quantum) * quantum
    while t >= quantum:
        if total % t == 0:
            return t
        t -= quantum
    # TODO(synk): pathological (huge, prime) extents would need a padded
    # last-partial-block scheme; Glow shapes are powers of two in practice.
    return total


# ----------------------------------------------------------------------------
# Kernel 1: actnorm affine hot path on the (N*C, H*W) slab.
#   forward:  y = (x + bias) * exp(-logs)      (scale precomputed in wrapper)
#   reverse:  y = x * exp(logs) - bias
# scale/bias arrive as ONE resident (nc, 1) VMEM block; the kernel slices the
# rows it needs (cheap dynamic sublane slice), so there are no extra per-tile
# DMA streams for the parameters.
# ----------------------------------------------------------------------------
def _affine_kernel(x_ref, scale_ref, bias_ref, y_ref, *, reverse, row_tile,
                   rows_axis):
    r = pl.program_id(rows_axis)
    off = pl.multiple_of(r * row_tile, row_tile)
    s = scale_ref[pl.ds(off, row_tile), :]           # (row_tile, 1) f32
    b = bias_ref[pl.ds(off, row_tile), :]            # (row_tile, 1) f32
    x = x_ref[...].astype(jnp.float32)               # (row_tile, lane_tile)
    if reverse:
        y = x * s - b
    else:
        y = (x + b) * s
    y_ref[...] = y.astype(y_ref.dtype)


# ----------------------------------------------------------------------------
# Kernel 2: tiled one-pass per-row statistics on the (N*C, H*W) slab for the
# data-dependent init. Per-lane partials are accumulated with pure VPU adds;
# the XLU lane reduction only happens once, in the last-step pl.when. The
# (tiny) per-channel combine over the batch rows happens in the wrapper.
# ----------------------------------------------------------------------------
def _stats_kernel(x_ref, sum_ref, sumsq_ref, acc_s_ref, acc_q_ref):
    l = pl.program_id(1)

    @pl.when(l == 0)
    def _():
        acc_s_ref[...] = jnp.zeros_like(acc_s_ref)
        acc_q_ref[...] = jnp.zeros_like(acc_q_ref)

    x = x_ref[...].astype(jnp.float32)               # (row_tile, lane_tile)
    acc_s_ref[...] += x
    acc_q_ref[...] += x * x

    @pl.when(l == pl.num_programs(1) - 1)
    def _():
        sum_ref[...] = jnp.sum(acc_s_ref[...], axis=1, keepdims=True)
        sumsq_ref[...] = jnp.sum(acc_q_ref[...], axis=1, keepdims=True)


class ActNorm2d:
    """JAX/Pallas port of the PyTorch ActNorm2d module (forward semantics)."""

    def __init__(self, num_features, scale=1.0):
        self.num_features = num_features
        self.scale = float(scale)
        # Same parameter shapes as the PyTorch module: (1, C, 1, 1), zeros.
        self.bias = jnp.zeros((1, num_features, 1, 1), jnp.float32)
        self.logs = jnp.zeros((1, num_features, 1, 1), jnp.float32)
        # TODO(synk): python-side `inited` flag mirrors the PyTorch module;
        # it is not jit-safe (data-dependent init as a traced side effect).
        self.inited = False

    # -- data-dependent init --------------------------------------------------
    def init_param(self, x):
        n, c, h, w = x.shape
        hw = h * w
        count = float(n * hw)

        if x.size < _SMALL_FASTPATH_ELEMS:
            # Tiny inputs: plain jnp (mirrors the PyTorch centered formula).
            xf = x.astype(jnp.float32)
            mean = jnp.mean(xf, axis=(0, 2, 3))
            var = jnp.mean((xf - mean[None, :, None, None]) ** 2,
                           axis=(0, 2, 3))
        else:
            nc = n * c
            x2 = x.reshape(nc, hw)                    # free contiguous view
            quantum = _row_quantum(x.dtype)
            block_budget, vmem_limit = _budgets()
            # Scratch holds two f32 copies of the block, so halve the budget.
            stats_budget = max(128 * quantum, block_budget // 2)
            row_tile = _pick_tile(nc, quantum, _MAX_ROW_TILE)
            lane_tile = _pick_tile(hw, 128,
                                   max(128, stats_budget // row_tile))
            grid = (nc // row_tile, hw // lane_tile)

            sums, sumsqs = pl.pallas_call(
                _stats_kernel,
                out_shape=(
                    jax.ShapeDtypeStruct((nc, 1), jnp.float32),
                    jax.ShapeDtypeStruct((nc, 1), jnp.float32),
                ),
                grid=grid,
                in_specs=[pl.BlockSpec((row_tile, lane_tile),
                                       lambda r, l: (r, l))],
                out_specs=(
                    pl.BlockSpec((row_tile, 1), lambda r, l: (r, 0)),
                    pl.BlockSpec((row_tile, 1), lambda r, l: (r, 0)),
                ),
                scratch_shapes=[
                    pltpu.VMEM((row_tile, lane_tile), jnp.float32),
                    pltpu.VMEM((row_tile, lane_tile), jnp.float32),
                ],
                compiler_params=pltpu.CompilerParams(
                    dimension_semantics=("parallel", "arbitrary"),
                    vmem_limit_bytes=vmem_limit,
                ),
            )(x2)

            # Tiny per-channel combine over the batch rows (plain XLA glue).
            s_c = sums.reshape(n, c).sum(axis=0)
            q_c = sumsqs.reshape(n, c).sum(axis=0)
            mean = s_c / count
            # Clamp: one-pass E[x^2]-E[x]^2 can round slightly negative.
            var = jnp.maximum(q_c / count - mean * mean, 0.0)

        self.bias = (-mean).reshape(1, c, 1, 1)
        self.logs = jnp.log(self.scale /
                            (jnp.sqrt(var) + 1e-6)).reshape(1, c, 1, 1)
        self.inited = True

    # -- forward / reverse ----------------------------------------------------
    def __call__(self, x, logdet=None, reverse=False):
        if not self.inited:
            self.init_param(x)

        n, c, h, w = x.shape
        hw = h * w
        nc = n * c

        logs_c = self.logs.reshape(c).astype(jnp.float32)
        bias_c = self.bias.reshape(c).astype(jnp.float32)

        # log-determinant (scalar glue over C values only; matches the
        # PyTorch module: logs.sum() * h * w).
        dlogdet = jnp.sum(logs_c) * (h * w)
        if reverse:
            dlogdet = -dlogdet
        logdet = dlogdet if logdet is None else logdet + dlogdet

        # Small-input fast path: fixed pallas_call overhead dominates there.
        if x.size < _SMALL_FASTPATH_ELEMS:
            b4 = self.bias
            if reverse:
                y = x * jnp.exp(self.logs) - b4
            else:
                y = (x + b4) * jnp.exp(-self.logs)
            return y.astype(x.dtype), logdet

        xf = x.reshape(nc, hw)                        # free contiguous view

        # Hoist the transcendental out of the grid loop: the kernel only sees
        # a precomputed per-row f32 scale/bias.
        scale_c = jnp.exp(logs_c) if reverse else jnp.exp(-logs_c)
        scale_rows = jnp.broadcast_to(scale_c[None, :], (n, c)).reshape(nc, 1)
        bias_rows = jnp.broadcast_to(bias_c[None, :], (n, c)).reshape(nc, 1)

        quantum = _row_quantum(x.dtype)
        block_budget, vmem_limit = _budgets()
        row_tile = _pick_tile(nc, quantum, _MAX_ROW_TILE)
        lane_tile = _pick_tile(hw, 128, max(128, block_budget // row_tile))
        grid_r = nc // row_tile
        grid_l = hw // lane_tile

        # v7x megacore: make sure the outer parallel axis has >= 2 blocks.
        lanes_outer = (grid_r == 1 and grid_l > 1)
        if lanes_outer:
            grid = (grid_l, grid_r)
            x_map = lambda l, r: (r, l)
            p_map = lambda l, r: (0, 0)
            rows_axis = 1
        else:
            grid = (grid_r, grid_l)
            x_map = lambda r, l: (r, l)
            p_map = lambda r, l: (0, 0)
            rows_axis = 0

        yf = pl.pallas_call(
            functools.partial(_affine_kernel, reverse=reverse,
                              row_tile=row_tile, rows_axis=rows_axis),
            out_shape=jax.ShapeDtypeStruct((nc, hw), x.dtype),
            grid=grid,
            in_specs=[
                pl.BlockSpec((row_tile, lane_tile), x_map),
                pl.BlockSpec((nc, 1), p_map),      # resident, fetched once
                pl.BlockSpec((nc, 1), p_map),      # resident, fetched once
            ],
            out_specs=pl.BlockSpec((row_tile, lane_tile), x_map),
            compiler_params=pltpu.CompilerParams(
                dimension_semantics=("parallel", "parallel"),
                vmem_limit_bytes=vmem_limit,
            ),
        )(xf, scale_rows, bias_rows)

        y = yf.reshape(n, c, h, w)
        return y, logdet


if __name__ == "__main__":
    key = jax.random.PRNGKey(0)
    k_small, k_large = jax.random.split(key)

    def reference(x):
        mean = jnp.mean(x, axis=(0, 2, 3), keepdims=True)
        bias = -mean
        var = jnp.mean((x + bias) ** 2, axis=(0, 2, 3), keepdims=True)
        logs = jnp.log(1.0 / (jnp.sqrt(var) + 1e-6))
        y = (x + bias) * jnp.exp(-logs)
        logdet = jnp.sum(logs) * x.shape[2] * x.shape[3]
        return y, logdet

    # --- small shape: exercises the jnp fast path (module semantics) --------
    N, C, H, W = 2, 4, 16, 16
    x_s = jax.random.normal(k_small, (N, C, H, W), jnp.float32) * 1.7 + 0.3
    layer_s = ActNorm2d(C, scale=1.0)
    y_s, ld_s = layer_s(x_s, logdet=None, reverse=False)
    y_s = jax.block_until_ready(y_s)
    y_ref, ld_ref = reference(x_s)
    assert y_s.shape == (N, C, H, W)
    assert jnp.allclose(y_s, y_ref, atol=1e-4, rtol=1e-4)
    assert jnp.allclose(ld_s, ld_ref, atol=1e-3, rtol=1e-4)
    x_rt, ld_rt = layer_s(y_s, logdet=ld_s, reverse=True)
    assert jnp.allclose(x_rt, x_s, atol=1e-4, rtol=1e-4)
    assert jnp.allclose(ld_rt, 0.0, atol=1e-3)

    # --- larger shape: exercises BOTH Pallas kernels (stats init + affine) --
    N, C, H, W = 4, 16, 64, 64
    x_l = jax.random.normal(k_large, (N, C, H, W), jnp.float32) * 0.9 - 1.2
    layer_l = ActNorm2d(C, scale=1.0)
    y_l, ld_l = layer_l(x_l, logdet=None, reverse=False)
    y_l = jax.block_until_ready(y_l)
    ld_l = jax.block_until_ready(ld_l)
    y_ref, ld_ref = reference(x_l)
    assert y_l.shape == (N, C, H, W)
    assert jnp.allclose(y_l, y_ref, atol=1e-3, rtol=1e-3)
    assert jnp.allclose(ld_l, ld_ref, atol=5e-2, rtol=1e-4)
    x_rt, ld_rt = layer_l(y_l, logdet=ld_l, reverse=True)
    x_rt = jax.block_until_ready(x_rt)
    assert jnp.allclose(x_rt, x_l, atol=1e-3, rtol=1e-3)
    assert jnp.allclose(ld_rt, 0.0, atol=1e-2)

    print("KERNEL_OK")
</pallas_src>

<mosaic_0001>
module attributes {stable_mosaic.version = 11 : i64} {
  func.func @_stats_kernel(%arg0: i32, %arg1: i32, %arg2: memref<64x4096xf32, #tpu.memory_space<vmem>>, %arg3: memref<64x1xf32, #tpu.memory_space<vmem>>, %arg4: memref<64x1xf32, #tpu.memory_space<vmem>>, %arg5: memref<64x4096xf32, #tpu.memory_space<vmem>>, %arg6: memref<64x4096xf32, #tpu.memory_space<vmem>>) attributes {dimension_semantics = [#tpu.dimension_semantics<parallel>, #tpu.dimension_semantics<arbitrary>], iteration_bounds = array<i64: 1, 1>, scalar_prefetch = 0 : i64, scratch_operands = 2 : i64, tpu.core_type = #tpu.core_type<tc>, window_params = [{transform_indices = @transform_0, window_bounds = array<i64: 64, 4096>}, {transform_indices = @transform_1, window_bounds = array<i64: 64, 1>}, {transform_indices = @transform_2, window_bounds = array<i64: 64, 1>}]} {
    %c0_i32 = arith.constant 0 : i32
    %0 = arith.cmpi eq, %arg1, %c0_i32 : i32
    %1 = arith.extui %0 : i1 to i32
    %c0_i32_0 = arith.constant 0 : i32
    %2 = arith.cmpi ne, %1, %c0_i32_0 : i32
    scf.if %2 {
      %cst = arith.constant 0.000000e+00 : f32
      %14 = vector.broadcast %cst : f32 to vector<64x4096xf32>
      %c0_12 = arith.constant 0 : index
      %c0_13 = arith.constant 0 : index
      %15 = vector.load %arg5[%c0_12, %c0_13] : memref<64x4096xf32, #tpu.memory_space<vmem>>, vector<64x4096xf32>
      tpu.vector_store %arg5[%c0_12, %c0_13], %14 {strides = array<i32>} : memref<64x4096xf32, #tpu.memory_space<vmem>>, vector<64x4096xf32>,
      %cst_14 = arith.constant 0.000000e+00 : f32
      %16 = vector.broadcast %cst_14 : f32 to vector<64x4096xf32>
      %c0_15 = arith.constant 0 : index
      %c0_16 = arith.constant 0 : index
      %17 = vector.load %arg6[%c0_15, %c0_16] : memref<64x4096xf32, #tpu.memory_space<vmem>>, vector<64x4096xf32>
      tpu.vector_store %arg6[%c0_15, %c0_16], %16 {strides = array<i32>} : memref<64x4096xf32, #tpu.memory_space<vmem>>, vector<64x4096xf32>,
    } else {
    }
    %c0 = arith.constant 0 : index
    %c0_1 = arith.constant 0 : index
    %3 = vector.load %arg2[%c0, %c0_1] : memref<64x4096xf32, #tpu.memory_space<vmem>>, vector<64x4096xf32>
    %c0_2 = arith.constant 0 : index
    %c0_3 = arith.constant 0 : index
    %4 = vector.load %arg5[%c0_2, %c0_3] : memref<64x4096xf32, #tpu.memory_space<vmem>>, vector<64x4096xf32>
    %5 = arith.addf %4, %3 : vector<64x4096xf32>
    %c0_4 = arith.constant 0 : index
    %c0_5 = arith.constant 0 : index
    %6 = vector.load %arg5[%c0_4, %c0_5] : memref<64x4096xf32, #tpu.memory_space<vmem>>, vector<64x4096xf32>
    tpu.vector_store %arg5[%c0_4, %c0_5], %5 {strides = array<i32>} : memref<64x4096xf32, #tpu.memory_space<vmem>>, vector<64x4096xf32>,
    %c0_6 = arith.constant 0 : index
    %c0_7 = arith.constant 0 : index
    %7 = vector.load %arg6[%c0_6, %c0_7] : memref<64x4096xf32, #tpu.memory_space<vmem>>, vector<64x4096xf32>
    %8 = arith.mulf %3, %3 : vector<64x4096xf32>
    %9 = arith.addf %7, %8 : vector<64x4096xf32>
    %c0_8 = arith.constant 0 : index
    %c0_9 = arith.constant 0 : index
    %10 = vector.load %arg6[%c0_8, %c0_9] : memref<64x4096xf32, #tpu.memory_space<vmem>>, vector<64x4096xf32>
    tpu.vector_store %arg6[%c0_8, %c0_9], %9 {strides = array<i32>} : memref<64x4096xf32, #tpu.memory_space<vmem>>, vector<64x4096xf32>,
    %c0_i32_10 = arith.constant 0 : i32
    %11 = arith.cmpi eq, %arg1, %c0_i32_10 : i32
    %12 = arith.extui %11 : i1 to i32
    %c0_i32_11 = arith.constant 0 : i32
    %13 = arith.cmpi ne, %12, %c0_i32_11 : i32
    scf.if %13 {
      %c0_12 = arith.constant 0 : index
      %c0_13 = arith.constant 0 : index
      %14 = vector.load %arg5[%c0_12, %c0_13] : memref<64x4096xf32, #tpu.memory_space<vmem>>, vector<64x4096xf32>
      %cst = arith.constant dense<0.000000e+00> : vector<64xf32>
      %15 = vector.multi_reduction <add>, %14, %cst [1] : vector<64x4096xf32> to vector<64xf32>
      %16 = vector.shape_cast %15 : vector<64xf32> to vector<64x1xf32>
      %c0_14 = arith.constant 0 : index
      %c0_15 = arith.constant 0 : index
      %17 = vector.load %arg3[%c0_14, %c0_15] : memref<64x1xf32, #tpu.memory_space<vmem>>, vector<64x1xf32>
      tpu.vector_store %arg3[%c0_14, %c0_15], %16 {strides = array<i32>} : memref<64x1xf32, #tpu.memory_space<vmem>>, vector<64x1xf32>,
      %c0_16 = arith.constant 0 : index
      %c0_17 = arith.constant 0 : index
      %18 = vector.load %arg6[%c0_16, %c0_17] : memref<64x4096xf32, #tpu.memory_space<vmem>>, vector<64x4096xf32>
      %cst_18 = arith.constant dense<0.000000e+00> : vector<64xf32>
      %19 = vector.multi_reduction <add>, %18, %cst_18 [1] : vector<64x4096xf32> to vector<64xf32>
      %20 = vector.shape_cast %19 : vector<64xf32> to vector<64x1xf32>
      %c0_19 = arith.constant 0 : index
      %c0_20 = arith.constant 0 : index
      %21 = vector.load %arg4[%c0_19, %c0_20] : memref<64x1xf32, #tpu.memory_space<vmem>>, vector<64x1xf32>
      tpu.vector_store %arg4[%c0_19, %c0_20], %20 {strides = array<i32>} : memref<64x1xf32, #tpu.memory_space<vmem>>, vector<64x1xf32>,
    } else {
    }
    return
  }
  func.func @transform_0(%arg0: i32, %arg1: i32) -> (i32, i32) {
    %c0_i32 = arith.constant 0 : i32
    return %arg0, %arg1 : i32, i32
  }
  func.func @transform_1(%arg0: i32, %arg1: i32) -> (i32, i32) {
    %c0_i32 = arith.constant 0 : i32
    %c0_i32_0 = arith.constant 0 : i32
    return %arg0, %c0_i32 : i32, i32
  }
  func.func @transform_2(%arg0: i32, %arg1: i32) -> (i32, i32) {
    %c0_i32 = arith.constant 0 : i32
    %c0_i32_0 = arith.constant 0 : i32
    return %arg0, %c0_i32 : i32, i32
  }
}

</mosaic_0001>

<llo_original>
// kernel: tpu_custom_call.1
$region0: #{tpu_custom_call.1}
  #allocation0 [shape = 'u32[]', space=smem, size = 0x4, offset = 0x4, fixed_abs, tag = 'smem constant byte address 0x4 - core index']
  #allocation1 [shape = 'u32[72,128]{1,0:T(1,128)}', space=vmem, size = 0x9000, scoped, tag = 'internal scratch']
  #allocation2 [shape = 'f32[64,4096]{1,0:T(8,128)}', space=vmem, size = 0x100000, scoped, tag = 'scratch operand']
  #allocation3 [shape = 'f32[64,4096]{1,0:T(8,128)}', space=vmem, size = 0x100000, scoped, tag = 'scratch operand']
  %s0 = inlined_call_operand.hbm [shape: f32[64,4096], index: 0, kind: input, shape index: {}]
  %s1 = inlined_call_operand.vmem [shape: f32[64,1], index: 1, kind: output, shape index: {0}]
  %s2 = inlined_call_operand.vmem [shape: f32[64,1], index: 2, kind: output, shape index: {1}]
  %3 = xla_tuple %s1, %s2
  %s4 = sld [smem:[#allocation0]]
  $region34: #{tpu_custom_call.1} parent=0
    _
  %s6 = ssub.s32 1, %s4
  %s7 = scalar_select 0, %s6, %s4
  $region1: #{tpu_custom_call.1} parent=0
    #allocation4 [shape = 'u8[1048576]{0}', space=vmem, size = 0x100000, scoped, tag = 'input window, operand 0, single buffered']
    #allocation5 [shape = 's32[1]{0}', space=sflag, size = 0x4, scoped, tag = 'scoped memory for tpu_custom_call.1']
    %8 = vsyncpa [#allocation5], 0
    // Predicated region
    $region2: #{tpu_custom_call.1} parent=1 // pred_check
      _
    $region3: #{tpu_custom_call.1} parent=1 // pred_check_branch
      %10 = sbr.rel (0) target = $region5
    $region4: #{tpu_custom_call.1} parent=1 // pred_region
      %12 = vsyncadd [#allocation5], 0
      %s13 = sshll.u32 %s0, 4
      %s14 = int_to_ptr.hbm [resolvable:$true] %s13
      %s15 = sshll.u32 [#allocation4], 4
      %s16 = int_to_ptr.vmem [resolvable:$true] %s15
      %21 = dma.hbm_to_vmem [thread:$0]  %s14, 32768, %s16, [#allocation5], 4096, 4096, 256
    $region5: #{tpu_custom_call.1} parent=1 // pred_fallthru
      _
    // Predicated region
    $region6: #{tpu_custom_call.1} parent=1 // pred_check
      _
    $region7: #{tpu_custom_call.1} parent=1 // pred_check_branch
      %23 = sbr.rel (0) target = $region9
    $region8: #{tpu_custom_call.1} parent=1 // pred_region
      %25 = dma.done [#allocation5], 32768
    $region9: #{tpu_custom_call.1} parent=1 // pred_fallthru
      _
    %p26 = scmp.eq.s32.totalorder 0, 0
    // Predicated region
    $region10: #{tpu_custom_call.1} parent=1 // pred_check
      %p27 = pneg %p26
    $region11: #{tpu_custom_call.1} parent=1 // pred_check_branch
      %29 = sbr.rel (%p27) target = $region13
    $region12: #{tpu_custom_call.1} parent=1 // pred_region
      %30 = vst [vmem:[#allocation2] sm:$0xff] 0.0
      %31 = vst [vmem:[#allocation2 + $0x8] sm:$0xff] 0.0
      %32 = vst [vmem:[#allocation2 + $0x10] sm:$0xff] 0.0
      %33 = vst [vmem:[#allocation2 + $0x18] sm:$0xff] 0.0
      %34 = vst [vmem:[#allocation2 + $0x20] sm:$0xff] 0.0
      %35 = vst [vmem:[#allocation2 + $0x28] sm:$0xff] 0.0
      %36 = vst [vmem:[#allocation2 + $0x30] sm:$0xff] 0.0
      %37 = vst [vmem:[#allocation2 + $0x38] sm:$0xff] 0.0
      %38 = vst [vmem:[#allocation2 + $0x40] sm:$0xff] 0.0
      %39 = vst [vmem:[#allocation2 + $0x48] sm:$0xff] 0.0
      %40 = vst [vmem:[#allocation2 + $0x50] sm:$0xff] 0.0
      %41 = vst [vmem:[#allocation2 + $0x58] sm:$0xff] 0.0
      %42 = vst [vmem:[#allocation2 + $0x60] sm:$0xff] 0.0
      %43 = vst [vmem:[#allocation2 + $0x68] sm:$0xff] 0.0
      %44 = vst [vmem:[#allocation2 + $0x70] sm:$0xff] 0.0
      %45 = vst [vmem:[#allocation2 + $0x78] sm:$0xff] 0.0
      %46 = vst [vmem:[#allocation2 + $0x80] sm:$0xff] 0.0
      %47 = vst [vmem:[#allocation2 + $0x88] sm:$0xff] 0.0
      %48 = vst [vmem:[#allocation2 + $0x90] sm:$0xff] 0.0
      %49 = vst [vmem:[#allocation2 + $0x98] sm:$0xff] 0.0
      %50 = vst [vmem:[#allocation2 + $0xa0] sm:$0xff] 0.0
      %51 = vst [vmem:[#allocation2 + $0xa8] sm:$0xff] 0.0
      %52 = vst [vmem:[#allocation2 + $0xb0] sm:$0xff] 0.0
      %53 = vst [vmem:[#allocation2 + $0xb8] sm:$0xff] 0.0
      %54 = vst [vmem:[#allocation2 + $0xc0] sm:$0xff] 0.0
      %55 = vst [vmem:[#allocation2 + $0xc8] sm:$0xff] 0.0
      %56 = vst [vmem:[#allocation2 + $0xd0] sm:$0xff] 0.0
      %57 = vst [vmem:[#allocation2 + $0xd8] sm:$0xff] 0.0
      %58 = vst [vmem:[#allocation2 + $0xe0] sm:$0xff] 0.0
      %59 = vst [vmem:[#allocation2 + $0xe8] sm:$0xff] 0.0
      %60 = vst [vmem:[#allocation2 + $0xf0] sm:$0xff] 0.0
      %61 = vst [vmem:[#allocation2 + $0xf8] sm:$0xff] 0.0
      %62 = vst [vmem:[#allocation2 + $0x100] sm:$0xff] 0.0
      %63 = vst [vmem:[#allocation2 + $0x108] sm:$0xff] 0.0
      %64 = vst [vmem:[#allocation2 + $0x110] sm:$0xff] 0.0
      %65 = vst [vmem:[#allocation2 + $0x118] sm:$0xff] 0.0
      %66 = vst [vmem:[#allocation2 + $0x120] sm:$0xff] 0.0
      %67 = vst [vmem:[#allocation2 + $0x128] sm:$0xff] 0.0
      %68 = vst [vmem:[#allocation2 + $0x130] sm:$0xff] 0.0
      %69 = vst [vmem:[#allocation2 + $0x138] sm:$0xff] 0.0
      %70 = vst [vmem:[#allocation2 + $0x140] sm:$0xff] 0.0
      %71 = vst [vmem:[#allocation2 + $0x148] sm:$0xff] 0.0
      %72 = vst [vmem:[#allocation2 + $0x150] sm:$0xff] 0.0
      %73 = vst [vmem:[#allocation2 + $0x158] sm:$0xff] 0.0
      %74 = vst [vmem:[#allocation2 + $0x160] sm:$0xff] 0.0
      %75 = vst [vmem:[#allocation2 + $0x168] sm:$0xff] 0.0
      %76 = vst [vmem:[#allocation2 + $0x170] sm:$0xff] 0.0
      %77 = vst [vmem:[#allocation2 + $0x178] sm:$0xff] 0.0
      %78 = vst [vmem:[#allocation2 + $0x180] sm:$0xff] 0.0
      %79 = vst [vmem:[#allocation2 + $0x188] sm:$0xff] 0.0
      %80 = vst [vmem:[#allocation2 + $0x190] sm:$0xff] 0.0
      %81 = vst [vmem:[#allocation2 + $0x198] sm:$0xff] 0.0
      %82 = vst [vmem:[#allocation2 + $0x1a0] sm:$0xff] 0.0
      %83 = vst [vmem:[#allocation2 + $0x1a8] sm:$0xff] 0.0
      %84 = vst [vmem:[#allocation2 + $0x1b0] sm:$0xff] 0.0
      %85 = vst [vmem:[#allocation2 + $0x1b8] sm:$0xff] 0.0
      %86 = vst [vmem:[#allocation2 + $0x1c0] sm:$0xff] 0.0
      %87 = vst [vmem:[#allocation2 + $0x1c8] sm:$0xff] 0.0
      %88 = vst [vmem:[#allocation2 + $0x1d0] sm:$0xff] 0.0
      %89 = vst [vmem:[#allocation2 + $0x1d8] sm:$0xff] 0.0
      %90 = vst [vmem:[#allocation2 + $0x1e0] sm:$0xff] 0.0
      %91 = vst [vmem:[#allocation2 + $0x1e8] sm:$0xff] 0.0
      %92 = vst [vmem:[#allocation2 + $0x1f0] sm:$0xff] 0.0
      %93 = vst [vmem:[#allocation2 + $0x1f8] sm:$0xff] 0.0
      %94 = vst [vmem:[#allocation2 + $0x200] sm:$0xff] 0.0
      %95 = vst [vmem:[#allocation2 + $0x208] sm:$0xff] 0.0
      %96 = vst [vmem:[#allocation2 + $0x210] sm:$0xff] 0.0
      %97 = vst [vmem:[#allocation2 + $0x218] sm:$0xff] 0.0
      %98 = vst [vmem:[#allocation2 + $0x220] sm:$0xff] 0.0
      %99 = vst [vmem:[#allocation2 + $0x228] sm:$0xff] 0.0
      %100 = vst [vmem:[#allocation2 + $0x230] sm:$0xff] 0.0
      %101 = vst [vmem:[#allocation2 + $0x238] sm:$0xff] 0.0
      %102 = vst [vmem:[#allocation2 + $0x240] sm:$0xff] 0.0
      %103 = vst [vmem:[#allocation2 + $0x248] sm:$0xff] 0.0
      %104 = vst [vmem:[#allocation2 + $0x250] sm:$0xff] 0.0
      %105 = vst [vmem:[#allocation2 + $0x258] sm:$0xff] 0.0
      %106 = vst [vmem:[#allocation2 + $0x260] sm:$0xff] 0.0
      %107 = vst [vmem:[#allocation2 + $0x268] sm:$0xff] 0.0
      %108 = vst [vmem:[#allocation2 + $0x270] sm:$0xff] 0.0
      %109 = vst [vmem:[#allocation2 + $0x278] sm:$0xff] 0.0
      %110 = vst [vmem:[#allocation2 + $0x280] sm:$0xff] 0.0
      %111 = vst [vmem:[#allocation2 + $0x288] sm:$0xff] 0.0
      %112 = vst [vmem:[#allocation2 + $0x290] sm:$0xff] 0.0
      %113 = vst [vmem:[#allocation2 + $0x298] sm:$0xff] 0.0
      %114 = vst [vmem:[#allocation2 + $0x2a0] sm:$0xff] 0.0
      %115 = vst [vmem:[#allocation2 + $0x2a8] sm:$0xff] 0.0
      %116 = vst [vmem:[#allocation2 + $0x2b0] sm:$0xff] 0.0
      %117 = vst [vmem:[#allocation2 + $0x2b8] sm:$0xff] 0.0
      %118 = vst [vmem:[#allocation2 + $0x2c0] sm:$0xff] 0.0
      %119 = vst [vmem:[#allocation2 + $0x2c8] sm:$0xff] 0.0
      %120 = vst [vmem:[#allocation2 + $0x2d0] sm:$0xff] 0.0
      %121 = vst [vmem:[#allocation2 + $0x2d8] sm:$0xff] 0.0
      %122 = vst [vmem:[#allocation2 + $0x2e0] sm:$0xff] 0.0
      %123 = vst [vmem:[#allocation2 + $0x2e8] sm:$0xff] 0.0
      %124 = vst [vmem:[#allocation2 + $0x2f0] sm:$0xff] 0.0
      %125 = vst [vmem:[#allocation2 + $0x2f8] sm:$0xff] 0.0
      %126 = vst [vmem:[#allocation2 + $0x300] sm:$0xff] 0.0
      %127 = vst [vmem:[#allocation2 + $0x308] sm:$0xff] 0.0
      %128 = vst [vmem:[#allocation2 + $0x310] sm:$0xff] 0.0
      %129 = vst [vmem:[#allocation2 + $0x318] sm:$0xff] 0.0
      %130 = vst [vmem:[#allocation2 + $0x320] sm:$0xff] 0.0
      %131 = vst [vmem:[#allocation2 + $0x328] sm:$0xff] 0.0
      %132 = vst [vmem:[#allocation2 + $0x330] sm:$0xff] 0.0
      %133 = vst [vmem:[#allocation2 + $0x338] sm:$0xff] 0.0
      %134 = vst [vmem:[#allocation2 + $0x340] sm:$0xff] 0.0
      %135 = vst [vmem:[#allocation2 + $0x348] sm:$0xff] 0.0
      %136 = vst [vmem:[#allocation2 + $0x350] sm:$0xff] 0.0
      %137 = vst [vmem:[#allocation2 + $0x358] sm:$0xff] 0.0
      %138 = vst [vmem:[#allocation2 + $0x360] sm:$0xff] 0.0
      %139 = vst [vmem:[#allocation2 + $0x368] sm:$0xff] 0.0
      %140 = vst [vmem:[#allocation2 + $0x370] sm:$0xff] 0.0
      %141 = vst [vmem:[#allocation2 + $0x378] sm:$0xff] 0.0
      %142 = vst [vmem:[#allocation2 + $0x380] sm:$0xff] 0.0
      %143 = vst [vmem:[#allocation2 + $0x388] sm:$0xff] 0.0
      %144 = vst [vmem:[#allocation2 + $0x390] sm:$0xff] 0.0
      %145 = vst [vmem:[#allocation2 + $0x398] sm:$0xff] 0.0
      %146 = vst [vmem:[#allocation2 + $0x3a0] sm:$0xff] 0.0
      %147 = vst [vmem:[#allocation2 + $0x3a8] sm:$0xff] 0.0
      %148 = vst [vmem:[#allocation2 + $0x3b0] sm:$0xff] 0.0
      %149 = vst [vmem:[#allocation2 + $0x3b8] sm:$0xff] 0.0
      %150 = vst [vmem:[#allocation2 + $0x3c0] sm:$0xff] 0.0
      %151 = vst [vmem:[#allocation2 + $0x3c8] sm:$0xff] 0.0
      %152 = vst [vmem:[#allocation2 + $0x3d0] sm:$0xff] 0.0
      %153 = vst [vmem:[#allocation2 + $0x3d8] sm:$0xff] 0.0
      %154 = vst [vmem:[#allocation2 + $0x3e0] sm:$0xff] 0.0
      %155 = vst [vmem:[#allocation2 + $0x3e8] sm:$0xff] 0.0
      %156 = vst [vmem:[#allocation2 + $0x3f0] sm:$0xff] 0.0
      %157 = vst [vmem:[#allocation2 + $0x3f8] sm:$0xff] 0.0
      %158 = vst [vmem:[#allocation2 + $0x400] sm:$0xff] 0.0
      %159 = vst [vmem:[#allocation2 + $0x408] sm:$0xff] 0.0
      %160 = vst [vmem:[#allocation2 + $0x410] sm:$0xff] 0.0
      %161 = vst [vmem:[#allocation2 + $0x418] sm:$0xff] 0.0
      %162 = vst [vmem:[#allocation2 + $0x420] sm:$0xff] 0.0
      %163 = vst [vmem:[#allocation2 + $0x428] sm:$0xff] 0.0
      %164 = vst [vmem:[#allocation2 + $0x430] sm:$0xff] 0.0
      %165 = vst [vmem:[#allocation2 + $0x438] sm:$0xff] 0.0
      %166 = vst [vmem:[#allocation2 + $0x440] sm:$0xff] 0.0
      %167 = vst [vmem:[#allocation2 + $0x448] sm:$0xff] 0.0
      %168 = vst [vmem:[#allocation2 + $0x450] sm:$0xff] 0.0
      %169 = vst [vmem:[#allocation2 + $0x458] sm:$0xff] 0.0
      %170 = vst [vmem:[#allocation2 + $0x460] sm:$0xff] 0.0
      %171 = vst [vmem:[#allocation2 + $0x468] sm:$0xff] 0.0
      %172 = vst [vmem:[#allocation2 + $0x470] sm:$0xff] 0.0
      %173 = vst [vmem:[#allocation2 + $0x478] sm:$0xff] 0.0
      %174 = vst [vmem:[#allocation2 + $0x480] sm:$0xff] 0.0
      %175 = vst [vmem:[#allocation2 + $0x488] sm:$0xff] 0.0
      %176 = vst [vmem:[#allocation2 + $0x490] sm:$0xff] 0.0
      %177 = vst [vmem:[#allocation2 + $0x498] sm:$0xff] 0.0
      %178 = vst [vmem:[#allocation2 + $0x4a0] sm:$0xff] 0.0
      %179 = vst [vmem:[#allocation2 + $0x4a8] sm:$0xff] 0.0
      %180 = vst [vmem:[#allocation2 + $0x4b0] sm:$0xff] 0.0
      %181 = vst [vmem:[#allocation2 + $0x4b8] sm:$0xff] 0.0
      %182 = vst [vmem:[#allocation2 + $0x4c0] sm:$0xff] 0.0
      %183 = vst [vmem:[#allocation2 + $0x4c8] sm:$0xff] 0.0
      %184 = vst [vmem:[#allocation2 + $0x4d0] sm:$0xff] 0.0
      %185 = vst [vmem:[#allocation2 + $0x4d8] sm:$0xff] 0.0
      %186 = vst [vmem:[#allocation2 + $0x4e0] sm:$0xff] 0.0
      %187 = vst [vmem:[#allocation2 + $0x4e8] sm:$0xff] 0.0
      %188 = vst [vmem:[#allocation2 + $0x4f0] sm:$0xff] 0.0
      %189 = vst [vmem:[#allocation2 + $0x4f8] sm:$0xff] 0.0
      %190 = vst [vmem:[#allocation2 + $0x500] sm:$0xff] 0.0
      %191 = vst [vmem:[#allocation2 + $0x508] sm:$0xff] 0.0
      %192 = vst [vmem:[#allocation2 + $0x510] sm:$0xff] 0.0
      %193 = vst [vmem:[#allocation2 + $0x518] sm:$0xff] 0.0
      %194 = vst [vmem:[#allocation2 + $0x520] sm:$0xff] 0.0
      %195 = vst [vmem:[#allocation2 + $0x528] sm:$0xff] 0.0
      %196 = vst [vmem:[#allocation2 + $0x530] sm:$0xff] 0.0
      %197 = vst [vmem:[#allocation2 + $0x538] sm:$0xff] 0.0
      %198 = vst [vmem:[#allocation2 + $0x540] sm:$0xff] 0.0
      %199 = vst [vmem:[#allocation2 + $0x548] sm:$0xff] 0.0
      %200 = vst [vmem:[#allocation2 + $0x550] sm:$0xff] 0.0
      %201 = vst [vmem:[#allocation2 + $0x558] sm:$0xff] 0.0
      %202 = vst [vmem:[#allocation2 + $0x560] sm:$0xff] 0.0
      %203 = vst [vmem:[#allocation2 + $0x568] sm:$0xff] 0.0
      %204 = vst [vmem:[#allocation2 + $0x570] sm:$0xff] 0.0
      %205 = vst [vmem:[#allocation2 + $0x578] sm:$0xff] 0.0
      %206 = vst [vmem:[#allocation2 + $0x580] sm:$0xff] 0.0
      %207 = vst [vmem:[#allocation2 + $0x588] sm:$0xff] 0.0
      %208 = vst [vmem:[#allocation2 + $0x590] sm:$0xff] 0.0
      %209 = vst [vmem:[#allocation2 + $0x598] sm:$0xff] 0.0
      %210 = vst [vmem:[#allocation2 + $0x5a0] sm:$0xff] 0.0
      %211 = vst [vmem:[#allocation2 + $0x5a8] sm:$0xff] 0.0
      %212 = vst [vmem:[#allocation2 + $0x5b0] sm:$0xff] 0.0
      %213 = vst [vmem:[#allocation2 + $0x5b8] sm:$0xff] 0.0
      %214 = vst [vmem:[#allocation2 + $0x5c0] sm:$0xff] 0.0
      %215 = vst [vmem:[#allocation2 + $0x5c8] sm:$0xff] 0.0
      %216 = vst [vmem:[#allocation2 + $0x5d0] sm:$0xff] 0.0
      %217 = vst [vmem:[#allocation2 + $0x5d8] sm:$0xff] 0.0
      %218 = vst [vmem:[#allocation2 + $0x5e0] sm:$0xff] 0.0
      %219 = vst [vmem:[#allocation2 + $0x5e8] sm:$0xff] 0.0
      %220 = vst [vmem:[#allocation2 + $0x5f0] sm:$0xff] 0.0
      %221 = vst [vmem:[#allocation2 + $0x5f8] sm:$0xff] 0.0
      %222 = vst [vmem:[#allocation2 + $0x600] sm:$0xff] 0.0
      %223 = vst [vmem:[#allocation2 + $0x608] sm:$0xff] 0.0
      %224 = vst [vmem:[#allocation2 + $0x610] sm:$0xff] 0.0
      %225 = vst [vmem:[#allocation2 + $0x618] sm:$0xff] 0.0
      %226 = vst [vmem:[#allocation2 + $0x620] sm:$0xff] 0.0
      %227 = vst [vmem:[#allocation2 + $0x628] sm:$0xff] 0.0
      %228 = vst [vmem:[#allocation2 + $0x630] sm:$0xff] 0.0
      %229 = vst [vmem:[#allocation2 + $0x638] sm:$0xff] 0.0
      %230 = vst [vmem:[#allocation2 + $0x640] sm:$0xff] 0.0
      %231 = vst [vmem:[#allocation2 + $0x648] sm:$0xff] 0.0
      %232 = vst [vmem:[#allocation2 + $0x650] sm:$0xff] 0.0
      %233 = vst [vmem:[#allocation2 + $0x658] sm:$0xff] 0.0
      %234 = vst [vmem:[#allocation2 + $0x660] sm:$0xff] 0.0
      %235 = vst [vmem:[#allocation2 + $0x668] sm:$0xff] 0.0
      %236 = vst [vmem:[#allocation2 + $0x670] sm:$0xff] 0.0
      %237 = vst [vmem:[#allocation2 + $0x678] sm:$0xff] 0.0
      %238 = vst [vmem:[#allocation2 + $0x680] sm:$0xff] 0.0
      %239 = vst [vmem:[#allocation2 + $0x688] sm:$0xff] 0.0
      %240 = vst [vmem:[#allocation2 + $0x690] sm:$0xff] 0.0
      %241 = vst [vmem:[#allocation2 + $0x698] sm:$0xff] 0.0
      %242 = vst [vmem:[#allocation2 + $0x6a0] sm:$0xff] 0.0
      %243 = vst [vmem:[#allocation2 + $0x6a8] sm:$0xff] 0.0
      %244 = vst [vmem:[#allocation2 + $0x6b0] sm:$0xff] 0.0
      %245 = vst [vmem:[#allocation2 + $0x6b8] sm:$0xff] 0.0
      %246 = vst [vmem:[#allocation2 + $0x6c0] sm:$0xff] 0.0
      %247 = vst [vmem:[#allocation2 + $0x6c8] sm:$0xff] 0.0
      %248 = vst [vmem:[#allocation2 + $0x6d0] sm:$0xff] 0.0
      %249 = vst [vmem:[#allocation2 + $0x6d8] sm:$0xff] 0.0
      %250 = vst [vmem:[#allocation2 + $0x6e0] sm:$0xff] 0.0
      %251 = vst [vmem:[#allocation2 + $0x6e8] sm:$0xff] 0.0
      %252 = vst [vmem:[#allocation2 + $0x6f0] sm:$0xff] 0.0
      %253 = vst [vmem:[#allocation2 + $0x6f8] sm:$0xff] 0.0
      %254 = vst [vmem:[#allocation2 + $0x700] sm:$0xff] 0.0
      %255 = vst [vmem:[#allocation2 + $0x708] sm:$0xff] 0.0
      %256 = vst [vmem:[#allocation2 + $0x710] sm:$0xff] 0.0
      %257 = vst [vmem:[#allocation2 + $0x718] sm:$0xff] 0.0
      %258 = vst [vmem:[#allocation2 + $0x720] sm:$0xff] 0.0
      %259 = vst [vmem:[#allocation2 + $0x728] sm:$0xff] 0.0
      %260 = vst [vmem:[#allocation2 + $0x730] sm:$0xff] 0.0
      %261 = vst [vmem:[#allocation2 + $0x738] sm:$0xff] 0.0
      %262 = vst [vmem:[#allocation2 + $0x740] sm:$0xff] 0.0
      %263 = vst [vmem:[#allocation2 + $0x748] sm:$0xff] 0.0
      %264 = vst [vmem:[#allocation2 + $0x750] sm:$0xff] 0.0
      %265 = vst [vmem:[#allocation2 + $0x758] sm:$0xff] 0.0
      %266 = vst [vmem:[#allocation2 + $0x760] sm:$0xff] 0.0
      %267 = vst [vmem:[#allocation2 + $0x768] sm:$0xff] 0.0
      %268 = vst [vmem:[#allocation2 + $0x770] sm:$0xff] 0.0
      %269 = vst [vmem:[#allocation2 + $0x778] sm:$0xff] 0.0
      %270 = vst [vmem:[#allocation2 + $0x780] sm:$0xff] 0.0
      %271 = vst [vmem:[#allocation2 + $0x788] sm:$0xff] 0.0
      %272 = vst [vmem:[#allocation2 + $0x790] sm:$0xff] 0.0
      %273 = vst [vmem:[#allocation2 + $0x798] sm:$0xff] 0.0
      %274 = vst [vmem:[#allocation2 + $0x7a0] sm:$0xff] 0.0
      %275 = vst [vmem:[#allocation2 + $0x7a8] sm:$0xff] 0.0
      %276 = vst [vmem:[#allocation2 + $0x7b0] sm:$0xff] 0.0
      %277 = vst [vmem:[#allocation2 + $0x7b8] sm:$0xff] 0.0
      %278 = vst [vmem:[#allocation2 + $0x7c0] sm:$0xff] 0.0
      %279 = vst [vmem:[#allocation2 + $0x7c8] sm:$0xff] 0.0
      %280 = vst [vmem:[#allocation2 + $0x7d0] sm:$0xff] 0.0
      %281 = vst [vmem:[#allocation2 + $0x7d8] sm:$0xff] 0.0
      %282 = vst [vmem:[#allocation2 + $0x7e0] sm:$0xff] 0.0
      %283 = vst [vmem:[#allocation2 + $0x7e8] sm:$0xff] 0.0
      %284 = vst [vmem:[#allocation2 + $0x7f0] sm:$0xff] 0.0
      %285 = vst [vmem:[#allocation2 + $0x7f8] sm:$0xff] 0.0
      %286 = vst [vmem:[#allocation3] sm:$0xff] 0.0
      %287 = vst [vmem:[#allocation3 + $0x8] sm:$0xff] 0.0
      %288 = vst [vmem:[#allocation3 + $0x10] sm:$0xff] 0.0
      %289 = vst [vmem:[#allocation3 + $0x18] sm:$0xff] 0.0
      %290 = vst [vmem:[#allocation3 + $0x20] sm:$0xff] 0.0
      %291 = vst [vmem:[#allocation3 + $0x28] sm:$0xff] 0.0
      %292 = vst [vmem:[#allocation3 + $0x30] sm:$0xff] 0.0
      %293 = vst [vmem:[#allocation3 + $0x38] sm:$0xff] 0.0
      %294 = vst [vmem:[#allocation3 + $0x40] sm:$0xff] 0.0
      %295 = vst [vmem:[#allocation3 + $0x48] sm:$0xff] 0.0
      %296 = vst [vmem:[#allocation3 + $0x50] sm:$0xff] 0.0
      %297 = vst [vmem:[#allocation3 + $0x58] sm:$0xff] 0.0
      %298 = vst [vmem:[#allocation3 + $0x60] sm:$0xff] 0.0
      %299 = vst [vmem:[#allocation3 + $0x68] sm:$0xff] 0.0
      %300 = vst [vmem:[#allocation3 + $0x70] sm:$0xff] 0.0
      %301 = vst [vmem:[#allocation3 + $0x78] sm:$0xff] 0.0
      %302 = vst [vmem:[#allocation3 + $0x80] sm:$0xff] 0.0
      %303 = vst [vmem:[#allocation3 + $0x88] sm:$0xff] 0.0
      %304 = vst [vmem:[#allocation3 + $0x90] sm:$0xff] 0.0
      %305 = vst [vmem:[#allocation3 + $0x98] sm:$0xff] 0.0
      %306 = vst [vmem:[#allocation3 + $0xa0] sm:$0xff] 0.0
      %307 = vst [vmem:[#allocation3 + $0xa8] sm:$0xff] 0.0
      %308 = vst [vmem:[#allocation3 + $0xb0] sm:$0xff] 0.0
      %309 = vst [vmem:[#allocation3 + $0xb8] sm:$0xff] 0.0
      %310 = vst [vmem:[#allocation3 + $0xc0] sm:$0xff] 0.0
      %311 = vst [vmem:[#allocation3 + $0xc8] sm:$0xff] 0.0
      %312 = vst [vmem:[#allocation3 + $0xd0] sm:$0xff] 0.0
      %313 = vst [vmem:[#allocation3 + $0xd8] sm:$0xff] 0.0
      %314 = vst [vmem:[#allocation3 + $0xe0] sm:$0xff] 0.0
      %315 = vst [vmem:[#allocation3 + $0xe8] sm:$0xff] 0.0
      %316 = vst [vmem:[#allocation3 + $0xf0] sm:$0xff] 0.0
      %317 = vst [vmem:[#allocation3 + $0xf8] sm:$0xff] 0.0
      %318 = vst [vmem:[#allocation3 + $0x100] sm:$0xff] 0.0
      %319 = vst [vmem:[#allocation3 + $0x108] sm:$0xff] 0.0
      %320 = vst [vmem:[#allocation3 + $0x110] sm:$0xff] 0.0
      %321 = vst [vmem:[#allocation3 + $0x118] sm:$0xff] 0.0
      %322 = vst [vmem:[#allocation3 + $0x120] sm:$0xff] 0.0
      %323 = vst [vmem:[#allocation3 + $0x128] sm:$0xff] 0.0
      %324 = vst [vmem:[#allocation3 + $0x130] sm:$0xff] 0.0
      %325 = vst [vmem:[#allocation3 + $0x138] sm:$0xff] 0.0
      %326 = vst [vmem:[#allocation3 + $0x140] sm:$0xff] 0.0
      %327 = vst [vmem:[#allocation3 + $0x148] sm:$0xff] 0.0
      %328 = vst [vmem:[#allocation3 + $0x150] sm:$0xff] 0.0
      %329 = vst [vmem:[#allocation3 + $0x158] sm:$0xff] 0.0
      %330 = vst [vmem:[#allocation3 + $0x160] sm:$0xff] 0.0
      %331 = vst [vmem:[#allocation3 + $0x168] sm:$0xff] 0.0
      %332 = vst [vmem:[#allocation3 + $0x170] sm:$0xff] 0.0
      %333 = vst [vmem:[#allocation3 + $0x178] sm:$0xff] 0.0
      %334 = vst [vmem:[#allocation3 + $0x180] sm:$0xff] 0.0
      %335 = vst [vmem:[#allocation3 + $0x188] sm:$0xff] 0.0
      %336 = vst [vmem:[#allocation3 + $0x190] sm:$0xff] 0.0
      %337 = vst [vmem:[#allocation3 + $0x198] sm:$0xff] 0.0
      %338 = vst [vmem:[#allocation3 + $0x1a0] sm:$0xff] 0.0
      %339 = vst [vmem:[#allocation3 + $0x1a8] sm:$0xff] 0.0
      %340 = vst [vmem:[#allocation3 + $0x1b0] sm:$0xff] 0.0
      %341 = vst [vmem:[#allocation3 + $0x1b8] sm:$0xff] 0.0
      %342 = vst [vmem:[#allocation3 + $0x1c0] sm:$0xff] 0.0
      %343 = vst [vmem:[#allocation3 + $0x1c8] sm:$0xff] 0.0
      %344 = vst [vmem:[#allocation3 + $0x1d0] sm:$0xff] 0.0
      %345 = vst [vmem:[#allocation3 + $0x1d8] sm:$0xff] 0.0
      %346 = vst [vmem:[#allocation3 + $0x1e0] sm:$0xff] 0.0
      %347 = vst [vmem:[#allocation3 + $0x1e8] sm:$0xff] 0.0
      %348 = vst [vmem:[#allocation3 + $0x1f0] sm:$0xff] 0.0
      %349 = vst [vmem:[#allocation3 + $0x1f8] sm:$0xff] 0.0
      %350 = vst [vmem:[#allocation3 + $0x200] sm:$0xff] 0.0
      %351 = vst [vmem:[#allocation3 + $0x208] sm:$0xff] 0.0
      %352 = vst [vmem:[#allocation3 + $0x210] sm:$0xff] 0.0
      %353 = vst [vmem:[#allocation3 + $0x218] sm:$0xff] 0.0
      %354 = vst [vmem:[#allocation3 + $0x220] sm:$0xff] 0.0
      %355 = vst [vmem:[#allocation3 + $0x228] sm:$0xff] 0.0
      %356 = vst [vmem:[#allocation3 + $0x230] sm:$0xff] 0.0
      %357 = vst [vmem:[#allocation3 + $0x238] sm:$0xff] 0.0
      %358 = vst [vmem:[#allocation3 + $0x240] sm:$0xff] 0.0
      %359 = vst [vmem:[#allocation3 + $0x248] sm:$0xff] 0.0
      %360 = vst [vmem:[#allocation3 + $0x250] sm:$0xff] 0.0
      %361 = vst [vmem:[#allocation3 + $0x258] sm:$0xff] 0.0
      %362 = vst [vmem:[#allocation3 + $0x260] sm:$0xff] 0.0
      %363 = vst [vmem:[#allocation3 + $0x268] sm:$0xff] 0.0
      %364 = vst [vmem:[#allocation3 + $0x270] sm:$0xff] 0.0
      %365 = vst [vmem:[#allocation3 + $0x278] sm:$0xff] 0.0
      %366 = vst [vmem:[#allocation3 + $0x280] sm:$0xff] 0.0
      %367 = vst [vmem:[#allocation3 + $0x288] sm:$0xff] 0.0
      %368 = vst [vmem:[#allocation3 + $0x290] sm:$0xff] 0.0
      %369 = vst [vmem:[#allocation3 + $0x298] sm:$0xff] 0.0
      %370 = vst [vmem:[#allocation3 + $0x2a0] sm:$0xff] 0.0
      %371 = vst [vmem:[#allocation3 + $0x2a8] sm:$0xff] 0.0
      %372 = vst [vmem:[#allocation3 + $0x2b0] sm:$0xff] 0.0
      %373 = vst [vmem:[#allocation3 + $0x2b8] sm:$0xff] 0.0
      %374 = vst [vmem:[#allocation3 + $0x2c0] sm:$0xff] 0.0
      %375 = vst [vmem:[#allocation3 + $0x2c8] sm:$0xff] 0.0
      %376 = vst [vmem:[#allocation3 + $0x2d0] sm:$0xff] 0.0
      %377 = vst [vmem:[#allocation3 + $0x2d8] sm:$0xff] 0.0
      %378 = vst [vmem:[#allocation3 + $0x2e0] sm:$0xff] 0.0
      %379 = vst [vmem:[#allocation3 + $0x2e8] sm:$0xff] 0.0
      %380 = vst [vmem:[#allocation3 + $0x2f0] sm:$0xff] 0.0
      %381 = vst [vmem:[#allocation3 + $0x2f8] sm:$0xff] 0.0
      %382 = vst [vmem:[#allocation3 + $0x300] sm:$0xff] 0.0
      %383 = vst [vmem:[#allocation3 + $0x308] sm:$0xff] 0.0
      %384 = vst [vmem:[#allocation3 + $0x310] sm:$0xff] 0.0
      %385 = vst [vmem:[#allocation3 + $0x318] sm:$0xff] 0.0
      %386 = vst [vmem:[#allocation3 + $0x320] sm:$0xff] 0.0
      %387 = vst [vmem:[#allocation3 + $0x328] sm:$0xff] 0.0
      %388 = vst [vmem:[#allocation3 + $0x330] sm:$0xff] 0.0
      %389 = vst [vmem:[#allocation3 + $0x338] sm:$0xff] 0.0
      %390 = vst [vmem:[#allocation3 + $0x340] sm:$0xff] 0.0
      %391 = vst [vmem:[#allocation3 + $0x348] sm:$0xff] 0.0
      %392 = vst [vmem:[#allocation3 + $0x350] sm:$0xff] 0.0
      %393 = vst [vmem:[#allocation3 + $0x358] sm:$0xff] 0.0
      %394 = vst [vmem:[#allocation3 + $0x360] sm:$0xff] 0.0
      %395 = vst [vmem:[#allocation3 + $0x368] sm:$0xff] 0.0
      %396 = vst [vmem:[#allocation3 + $0x370] sm:$0xff] 0.0
      %397 = vst [vmem:[#allocation3 + $0x378] sm:$0xff] 0.0
      %398 = vst [vmem:[#allocation3 + $0x380] sm:$0xff] 0.0
      %399 = vst [vmem:[#allocation3 + $0x388] sm:$0xff] 0.0
      %400 = vst [vmem:[#allocation3 + $0x390] sm:$0xff] 0.0
      %401 = vst [vmem:[#allocation3 + $0x398] sm:$0xff] 0.0
      %402 = vst [vmem:[#allocation3 + $0x3a0] sm:$0xff] 0.0
      %403 = vst [vmem:[#allocation3 + $0x3a8] sm:$0xff] 0.0
      %404 = vst [vmem:[#allocation3 + $0x3b0] sm:$0xff] 0.0
      %405 = vst [vmem:[#allocation3 + $0x3b8] sm:$0xff] 0.0
      %406 = vst [vmem:[#allocation3 + $0x3c0] sm:$0xff] 0.0
      %407 = vst [vmem:[#allocation3 + $0x3c8] sm:$0xff] 0.0
      %408 = vst [vmem:[#allocation3 + $0x3d0] sm:$0xff] 0.0
      %409 = vst [vmem:[#allocation3 + $0x3d8] sm:$0xff] 0.0
      %410 = vst [vmem:[#allocation3 + $0x3e0] sm:$0xff] 0.0
      %411 = vst [vmem:[#allocation3 + $0x3e8] sm:$0xff] 0.0
      %412 = vst [vmem:[#allocation3 + $0x3f0] sm:$0xff] 0.0
      %413 = vst [vmem:[#allocation3 + $0x3f8] sm:$0xff] 0.0
      %414 = vst [vmem:[#allocation3 + $0x400] sm:$0xff] 0.0
      %415 = vst [vmem:[#allocation3 + $0x408] sm:$0xff] 0.0
      %416 = vst [vmem:[#allocation3 + $0x410] sm:$0xff] 0.0
      %417 = vst [vmem:[#allocation3 + $0x418] sm:$0xff] 0.0
      %418 = vst [vmem:[#allocation3 + $0x420] sm:$0xff] 0.0
      %419 = vst [vmem:[#allocation3 + $0x428] sm:$0xff] 0.0
      %420 = vst [vmem:[#allocation3 + $0x430] sm:$0xff] 0.0
      %421 = vst [vmem:[#allocation3 + $0x438] sm:$0xff] 0.0
      %422 = vst [vmem:[#allocation3 + $0x440] sm:$0xff] 0.0
      %423 = vst [vmem:[#allocation3 + $0x448] sm:$0xff] 0.0
      %424 = vst [vmem:[#allocation3 + $0x450] sm:$0xff] 0.0
      %425 = vst [vmem:[#allocation3 + $0x458] sm:$0xff] 0.0
      %426 = vst [vmem:[#allocation3 + $0x460] sm:$0xff] 0.0
      %427 = vst [vmem:[#allocation3 + $0x468] sm:$0xff] 0.0
      %428 = vst [vmem:[#allocation3 + $0x470] sm:$0xff] 0.0
      %429 = vst [vmem:[#allocation3 + $0x478] sm:$0xff] 0.0
      %430 = vst [vmem:[#allocation3 + $0x480] sm:$0xff] 0.0
      %431 = vst [vmem:[#allocation3 + $0x488] sm:$0xff] 0.0
      %432 = vst [vmem:[#allocation3 + $0x490] sm:$0xff] 0.0
      %433 = vst [vmem:[#allocation3 + $0x498] sm:$0xff] 0.0
      %434 = vst [vmem:[#allocation3 + $0x4a0] sm:$0xff] 0.0
      %435 = vst [vmem:[#allocation3 + $0x4a8] sm:$0xff] 0.0
      %436 = vst [vmem:[#allocation3 + $0x4b0] sm:$0xff] 0.0
      %437 = vst [vmem:[#allocation3 + $0x4b8] sm:$0xff] 0.0
      %438 = vst [vmem:[#allocation3 + $0x4c0] sm:$0xff] 0.0
      %439 = vst [vmem:[#allocation3 + $0x4c8] sm:$0xff] 0.0
      %440 = vst [vmem:[#allocation3 + $0x4d0] sm:$0xff] 0.0
      %441 = vst [vmem:[#allocation3 + $0x4d8] sm:$0xff] 0.0
      %442 = vst [vmem:[#allocation3 + $0x4e0] sm:$0xff] 0.0
      %443 = vst [vmem:[#allocation3 + $0x4e8] sm:$0xff] 0.0
      %444 = vst [vmem:[#allocation3 + $0x4f0] sm:$0xff] 0.0
      %445 = vst [vmem:[#allocation3 + $0x4f8] sm:$0xff] 0.0
      %446 = vst [vmem:[#allocation3 + $0x500] sm:$0xff] 0.0
      %447 = vst [vmem:[#allocation3 + $0x508] sm:$0xff] 0.0
      %448 = vst [vmem:[#allocation3 + $0x510] sm:$0xff] 0.0
      %449 = vst [vmem:[#allocation3 + $0x518] sm:$0xff] 0.0
      %450 = vst [vmem:[#allocation3 + $0x520] sm:$0xff] 0.0
      %451 = vst [vmem:[#allocation3 + $0x528] sm:$0xff] 0.0
      %452 = vst [vmem:[#allocation3 + $0x530] sm:$0xff] 0.0
      %453 = vst [vmem:[#allocation3 + $0x538] sm:$0xff] 0.0
      %454 = vst [vmem:[#allocation3 + $0x540] sm:$0xff] 0.0
      %455 = vst [vmem:[#allocation3 + $0x548] sm:$0xff] 0.0
      %456 = vst [vmem:[#allocation3 + $0x550] sm:$0xff] 0.0
      %457 = vst [vmem:[#allocation3 + $0x558] sm:$0xff] 0.0
      %458 = vst [vmem:[#allocation3 + $0x560] sm:$0xff] 0.0
      %459 = vst [vmem:[#allocation3 + $0x568] sm:$0xff] 0.0
      %460 = vst [vmem:[#allocation3 + $0x570] sm:$0xff] 0.0
      %461 = vst [vmem:[#allocation3 + $0x578] sm:$0xff] 0.0
      %462 = vst [vmem:[#allocation3 + $0x580] sm:$0xff] 0.0
      %463 = vst [vmem:[#allocation3 + $0x588] sm:$0xff] 0.0
      %464 = vst [vmem:[#allocation3 + $0x590] sm:$0xff] 0.0
      %465 = vst [vmem:[#allocation3 + $0x598] sm:$0xff] 0.0
      %466 = vst [vmem:[#allocation3 + $0x5a0] sm:$0xff] 0.0
      %467 = vst [vmem:[#allocation3 + $0x5a8] sm:$0xff] 0.0
      %468 = vst [vmem:[#allocation3 + $0x5b0] sm:$0xff] 0.0
      %469 = vst [vmem:[#allocation3 + $0x5b8] sm:$0xff] 0.0
      %470 = vst [vmem:[#allocation3 + $0x5c0] sm:$0xff] 0.0
      %471 = vst [vmem:[#allocation3 + $0x5c8] sm:$0xff] 0.0
      %472 = vst [vmem:[#allocation3 + $0x5d0] sm:$0xff] 0.0
      %473 = vst [vmem:[#allocation3 + $0x5d8] sm:$0xff] 0.0
      %474 = vst [vmem:[#allocation3 + $0x5e0] sm:$0xff] 0.0
      %475 = vst [vmem:[#allocation3 + $0x5e8] sm:$0xff] 0.0
      %476 = vst [vmem:[#allocation3 + $0x5f0] sm:$0xff] 0.0
      %477 = vst [vmem:[#allocation3 + $0x5f8] sm:$0xff] 0.0
      %478 = vst [vmem:[#allocation3 + $0x600] sm:$0xff] 0.0
      %479 = vst [vmem:[#allocation3 + $0x608] sm:$0xff] 0.0
      %480 = vst [vmem:[#allocation3 + $0x610] sm:$0xff] 0.0
      %481 = vst [vmem:[#allocation3 + $0x618] sm:$0xff] 0.0
      %482 = vst [vmem:[#allocation3 + $0x620] sm:$0xff] 0.0
      %483 = vst [vmem:[#allocation3 + $0x628] sm:$0xff] 0.0
      %484 = vst [vmem:[#allocation3 + $0x630] sm:$0xff] 0.0
      %485 = vst [vmem:[#allocation3 + $0x638] sm:$0xff] 0.0
      %486 = vst [vmem:[#allocation3 + $0x640] sm:$0xff] 0.0
      %487 = vst [vmem:[#allocation3 + $0x648] sm:$0xff] 0.0
      %488 = vst [vmem:[#allocation3 + $0x650] sm:$0xff] 0.0
      %489 = vst [vmem:[#allocation3 + $0x658] sm:$0xff] 0.0
      %490 = vst [vmem:[#allocation3 + $0x660] sm:$0xff] 0.0
      %491 = vst [vmem:[#allocation3 + $0x668] sm:$0xff] 0.0
      %492 = vst [vmem:[#allocation3 + $0x670] sm:$0xff] 0.0
      %493 = vst [vmem:[#allocation3 + $0x678] sm:$0xff] 0.0
      %494 = vst [vmem:[#allocation3 + $0x680] sm:$0xff] 0.0
      %495 = vst [vmem:[#allocation3 + $0x688] sm:$0xff] 0.0
      %496 = vst [vmem:[#allocation3 + $0x690] sm:$0xff] 0.0
      %497 = vst [vmem:[#allocation3 + $0x698] sm:$0xff] 0.0
      %498 = vst [vmem:[#allocation3 + $0x6a0] sm:$0xff] 0.0
      %499 = vst [vmem:[#allocation3 + $0x6a8] sm:$0xff] 0.0
      %500 = vst [vmem:[#allocation3 + $0x6b0] sm:$0xff] 0.0
      %501 = vst [vmem:[#allocation3 + $0x6b8] sm:$0xff] 0.0
      %502 = vst [vmem:[#allocation3 + $0x6c0] sm:$0xff] 0.0
      %503 = vst [vmem:[#allocation3 + $0x6c8] sm:$0xff] 0.0
      %504 = vst [vmem:[#allocation3 + $0x6d0] sm:$0xff] 0.0
      %505 = vst [vmem:[#allocation3 + $0x6d8] sm:$0xff] 0.0
      %506 = vst [vmem:[#allocation3 + $0x6e0] sm:$0xff] 0.0
      %507 = vst [vmem:[#allocation3 + $0x6e8] sm:$0xff] 0.0
      %508 = vst [vmem:[#allocation3 + $0x6f0] sm:$0xff] 0.0
      %509 = vst [vmem:[#allocation3 + $0x6f8] sm:$0xff] 0.0
      %510 = vst [vmem:[#allocation3 + $0x700] sm:$0xff] 0.0
      %511 = vst [vmem:[#allocation3 + $0x708] sm:$0xff] 0.0
      %512 = vst [vmem:[#allocation3 + $0x710] sm:$0xff] 0.0
      %513 = vst [vmem:[#allocation3 + $0x718] sm:$0xff] 0.0
      %514 = vst [vmem:[#allocation3 + $0x720] sm:$0xff] 0.0
      %515 = vst [vmem:[#allocation3 + $0x728] sm:$0xff] 0.0
      %516 = vst [vmem:[#allocation3 + $0x730] sm:$0xff] 0.0
      %517 = vst [vmem:[#allocation3 + $0x738] sm:$0xff] 0.0
      %518 = vst [vmem:[#allocation3 + $0x740] sm:$0xff] 0.0
      %519 = vst [vmem:[#allocation3 + $0x748] sm:$0xff] 0.0
      %520 = vst [vmem:[#allocation3 + $0x750] sm:$0xff] 0.0
      %521 = vst [vmem:[#allocation3 + $0x758] sm:$0xff] 0.0
      %522 = vst [vmem:[#allocation3 + $0x760] sm:$0xff] 0.0
      %523 = vst [vmem:[#allocation3 + $0x768] sm:$0xff] 0.0
      %524 = vst [vmem:[#allocation3 + $0x770] sm:$0xff] 0.0
      %525 = vst [vmem:[#allocation3 + $0x778] sm:$0xff] 0.0
      %526 = vst [vmem:[#allocation3 + $0x780] sm:$0xff] 0.0
      %527 = vst [vmem:[#allocation3 + $0x788] sm:$0xff] 0.0
      %528 = vst [vmem:[#allocation3 + $0x790] sm:$0xff] 0.0
      %529 = vst [vmem:[#allocation3 + $0x798] sm:$0xff] 0.0
      %530 = vst [vmem:[#allocation3 + $0x7a0] sm:$0xff] 0.0
      %531 = vst [vmem:[#allocation3 + $0x7a8] sm:$0xff] 0.0
      %532 = vst [vmem:[#allocation3 + $0x7b0] sm:$0xff] 0.0
      %533 = vst [vmem:[#allocation3 + $0x7b8] sm:$0xff] 0.0
      %534 = vst [vmem:[#allocation3 + $0x7c0] sm:$0xff] 0.0
      %535 = vst [vmem:[#allocation3 + $0x7c8] sm:$0xff] 0.0
      %536 = vst [vmem:[#allocation3 + $0x7d0] sm:$0xff] 0.0
      %537 = vst [vmem:[#allocation3 + $0x7d8] sm:$0xff] 0.0
      %538 = vst [vmem:[#allocation3 + $0x7e0] sm:$0xff] 0.0
      %539 = vst [vmem:[#allocation3 + $0x7e8] sm:$0xff] 0.0
      %540 = vst [vmem:[#allocation3 + $0x7f0] sm:$0xff] 0.0
      %541 = vst [vmem:[#allocation3 + $0x7f8] sm:$0xff] 0.0
    $region13: #{tpu_custom_call.1} parent=1 // pred_fallthru
      _
    %v542 = vld [vmem:[#allocation4] sm:$0xff]
    %v543 = vld [vmem:[#allocation4 + $0x8] sm:$0xff]
    %v544 = vld [vmem:[#allocation4 + $0x10] sm:$0xff]
    %v545 = vld [vmem:[#allocation4 + $0x18] sm:$0xff]
    %v546 = vld [vmem:[#allocation4 + $0x20] sm:$0xff]
    %v547 = vld [vmem:[#allocation4 + $0x28] sm:$0xff]
    %v548 = vld [vmem:[#allocation4 + $0x30] sm:$0xff]
    %v549 = vld [vmem:[#allocation4 + $0x38] sm:$0xff]
    %v550 = vld [vmem:[#allocation4 + $0x40] sm:$0xff]
    %v551 = vld [vmem:[#allocation4 + $0x48] sm:$0xff]
    %v552 = vld [vmem:[#allocation4 + $0x50] sm:$0xff]
    %v553 = vld [vmem:[#allocation4 + $0x58] sm:$0xff]
    %v554 = vld [vmem:[#allocation4 + $0x60] sm:$0xff]
    %v555 = vld [vmem:[#allocation4 + $0x68] sm:$0xff]
    %v556 = vld [vmem:[#allocation4 + $0x70] sm:$0xff]
    %v557 = vld [vmem:[#allocation4 + $0x78] sm:$0xff]
    %v558 = vld [vmem:[#allocation4 + $0x80] sm:$0xff]
    %v559 = vld [vmem:[#allocation4 + $0x88] sm:$0xff]
    %v560 = vld [vmem:[#allocation4 + $0x90] sm:$0xff]
    %v561 = vld [vmem:[#allocation4 + $0x98] sm:$0xff]
    %v562 = vld [vmem:[#allocation4 + $0xa0] sm:$0xff]
    %v563 = vld [vmem:[#allocation4 + $0xa8] sm:$0xff]
    %v564 = vld [vmem:[#allocation4 + $0xb0] sm:$0xff]
    %v565 = vld [vmem:[#allocation4 + $0xb8] sm:$0xff]
    %v566 = vld [vmem:[#allocation4 + $0xc0] sm:$0xff]
    %v567 = vld [vmem:[#allocation4 + $0xc8] sm:$0xff]
    %v568 = vld [vmem:[#allocation4 + $0xd0] sm:$0xff]
    %v569 = vld [vmem:[#allocation4 + $0xd8] sm:$0xff]
    %v570 = vld [vmem:[#allocation4 + $0xe0] sm:$0xff]
    %v571 = vld [vmem:[#allocation4 + $0xe8] sm:$0xff]
    %v572 = vld [vmem:[#allocation4 + $0xf0] sm:$0xff]
    %v573 = vld [vmem:[#allocation4 + $0xf8] sm:$0xff]
    %v574 = vld [vmem:[#allocation4 + $0x100] sm:$0xff]
    %v575 = vld [vmem:[#allocation4 + $0x108] sm:$0xff]
    %v576 = vld [vmem:[#allocation4 + $0x110] sm:$0xff]
    %v577 = vld [vmem:[#allocation4 + $0x118] sm:$0xff]
    %v578 = vld [vmem:[#allocation4 + $0x120] sm:$0xff]
    %v579 = vld [vmem:[#allocation4 + $0x128] sm:$0xff]
    %v580 = vld [vmem:[#allocation4 + $0x130] sm:$0xff]
    %v581 = vld [vmem:[#allocation4 + $0x138] sm:$0xff]
    %v582 = vld [vmem:[#allocation4 + $0x140] sm:$0xff]
    %v583 = vld [vmem:[#allocation4 + $0x148] sm:$0xff]
    %v584 = vld [vmem:[#allocation4 + $0x150] sm:$0xff]
    %v585 = vld [vmem:[#allocation4 + $0x158] sm:$0xff]
    %v586 = vld [vmem:[#allocation4 + $0x160] sm:$0xff]
    %v587 = vld [vmem:[#allocation4 + $0x168] sm:$0xff]
    %v588 = vld [vmem:[#allocation4 + $0x170] sm:$0xff]
    %v589 = vld [vmem:[#allocation4 + $0x178] sm:$0xff]
    %v590 = vld [vmem:[#allocation4 + $0x180] sm:$0xff]
    %v591 = vld [vmem:[#allocation4 + $0x188] sm:$0xff]
    %v592 = vld [vmem:[#allocation4 + $0x190] sm:$0xff]
    %v593 = vld [vmem:[#allocation4 + $0x198] sm:$0xff]
    %v594 = vld [vmem:[#allocation4 + $0x1a0] sm:$0xff]
    %v595 = vld [vmem:[#allocation4 + $0x1a8] sm:$0xff]
    %v596 = vld [vmem:[#allocation4 + $0x1b0] sm:$0xff]
    %v597 = vld [vmem:[#allocation4 + $0x1b8] sm:$0xff]
    %v598 = vld [vmem:[#allocation4 + $0x1c0] sm:$0xff]
    %v599 = vld [vmem:[#allocation4 + $0x1c8] sm:$0xff]
    %v600 = vld [vmem:[#allocation4 + $0x1d0] sm:$0xff]
    %v601 = vld [vmem:[#allocation4 + $0x1d8] sm:$0xff]
    %v602 = vld [vmem:[#allocation4 + $0x1e0] sm:$0xff]
    %v603 = vld [vmem:[#allocation4 + $0x1e8] sm:$0xff]
    %v604 = vld [vmem:[#allocation4 + $0x1f0] sm:$0xff]
    %v605 = vld [vmem:[#allocation4 + $0x1f8] sm:$0xff]
    %v606 = vld [vmem:[#allocation4 + $0x200] sm:$0xff]
    %v607 = vld [vmem:[#allocation4 + $0x208] sm:$0xff]
    %v608 = vld [vmem:[#allocation4 + $0x210] sm:$0xff]
    %v609 = vld [vmem:[#allocation4 + $0x218] sm:$0xff]
    %v610 = vld [vmem:[#allocation4 + $0x220] sm:$0xff]
    %v611 = vld [vmem:[#allocation4 + $0x228] sm:$0xff]
    %v612 = vld [vmem:[#allocation4 + $0x230] sm:$0xff]
    %v613 = vld [vmem:[#allocation4 + $0x238] sm:$0xff]
    %v614 = vld [vmem:[#allocation4 + $0x240] sm:$0xff]
    %v615 = vld [vmem:[#allocation4 + $0x248] sm:$0xff]
    %v616 = vld [vmem:[#allocation4 + $0x250] sm:$0xff]
    %v617 = vld [vmem:[#allocation4 + $0x258] sm:$0xff]
    %v618 = vld [vmem:[#allocation4 + $0x260] sm:$0xff]
    %v619 = vld [vmem:[#allocation4 + $0x268] sm:$0xff]
    %v620 = vld [vmem:[#allocation4 + $0x270] sm:$0xff]
    %v621 = vld [vmem:[#allocation4 + $0x278] sm:$0xff]
    %v622 = vld [vmem:[#allocation4 + $0x280] sm:$0xff]
    %v623 = vld [vmem:[#allocation4 + $0x288] sm:$0xff]
    %v624 = vld [vmem:[#allocation4 + $0x290] sm:$0xff]
    %v625 = vld [vmem:[#allocation4 + $0x298] sm:$0xff]
    %v626 = vld [vmem:[#allocation4 + $0x2a0] sm:$0xff]
    %v627 = vld [vmem:[#allocation4 + $0x2a8] sm:$0xff]
    %v628 = vld [vmem:[#allocation4 + $0x2b0] sm:$0xff]
    %v629 = vld [vmem:[#allocation4 + $0x2b8] sm:$0xff]
    %v630 = vld [vmem:[#allocation4 + $0x2c0] sm:$0xff]
    %v631 = vld [vmem:[#allocation4 + $0x2c8] sm:$0xff]
    %v632 = vld [vmem:[#allocation4 + $0x2d0] sm:$0xff]
    %v633 = vld [vmem:[#allocation4 + $0x2d8] sm:$0xff]
    %v634 = vld [vmem:[#allocation4 + $0x2e0] sm:$0xff]
    %v635 = vld [vmem:[#allocation4 + $0x2e8] sm:$0xff]
    %v636 = vld [vmem:[#allocation4 + $0x2f0] sm:$0xff]
    %v637 = vld [vmem:[#allocation4 + $0x2f8] sm:$0xff]
    %v638 = vld [vmem:[#allocation4 + $0x300] sm:$0xff]
    %v639 = vld [vmem:[#allocation4 + $0x308] sm:$0xff]
    %v640 = vld [vmem:[#allocation4 + $0x310] sm:$0xff]
    %v641 = vld [vmem:[#allocation4 + $0x318] sm:$0xff]
    %v642 = vld [vmem:[#allocation4 + $0x320] sm:$0xff]
    %v643 = vld [vmem:[#allocation4 + $0x328] sm:$0xff]
    %v644 = vld [vmem:[#allocation4 + $0x330] sm:$0xff]
    %v645 = vld [vmem:[#allocation4 + $0x338] sm:$0xff]
    %v646 = vld [vmem:[#allocation4 + $0x340] sm:$0xff]
    %v647 = vld [vmem:[#allocation4 + $0x348] sm:$0xff]
    %v648 = vld [vmem:[#allocation4 + $0x350] sm:$0xff]
    %v649 = vld [vmem:[#allocation4 + $0x358] sm:$0xff]
    %v650 = vld [vmem:[#allocation4 + $0x360] sm:$0xff]
    %v651 = vld [vmem:[#allocation4 + $0x368] sm:$0xff]
    %v652 = vld [vmem:[#allocation4 + $0x370] sm:$0xff]
    %v653 = vld [vmem:[#allocation4 + $0x378] sm:$0xff]
    %v654 = vld [vmem:[#allocation4 + $0x380] sm:$0xff]
    %v655 = vld [vmem:[#allocation4 + $0x388] sm:$0xff]
    %v656 = vld [vmem:[#allocation4 + $0x390] sm:$0xff]
    %v657 = vld [vmem:[#allocation4 + $0x398] sm:$0xff]
    %v658 = vld [vmem:[#allocation4 + $0x3a0] sm:$0xff]
    %v659 = vld [vmem:[#allocation4 + $0x3a8] sm:$0xff]
    %v660 = vld [vmem:[#allocation4 + $0x3b0] sm:$0xff]
    %v661 = vld [vmem:[#allocation4 + $0x3b8] sm:$0xff]
    %v662 = vld [vmem:[#allocation4 + $0x3c0] sm:$0xff]
    %v663 = vld [vmem:[#allocation4 + $0x3c8] sm:$0xff]
    %v664 = vld [vmem:[#allocation4 + $0x3d0] sm:$0xff]
    %v665 = vld [vmem:[#allocation4 + $0x3d8] sm:$0xff]
    %v666 = vld [vmem:[#allocation4 + $0x3e0] sm:$0xff]
    %v667 = vld [vmem:[#allocation4 + $0x3e8] sm:$0xff]
    %v668 = vld [vmem:[#allocation4 + $0x3f0] sm:$0xff]
    %v669 = vld [vmem:[#allocation4 + $0x3f8] sm:$0xff]
    %v670 = vld [vmem:[#allocation4 + $0x400] sm:$0xff]
    %v671 = vld [vmem:[#allocation4 + $0x408] sm:$0xff]
    %v672 = vld [vmem:[#allocation4 + $0x410] sm:$0xff]
    %v673 = vld [vmem:[#allocation4 + $0x418] sm:$0xff]
    %v674 = vld [vmem:[#allocation4 + $0x420] sm:$0xff]
    %v675 = vld [vmem:[#allocation4 + $0x428] sm:$0xff]
    %v676 = vld [vmem:[#allocation4 + $0x430] sm:$0xff]
    %v677 = vld [vmem:[#allocation4 + $0x438] sm:$0xff]
    %v678 = vld [vmem:[#allocation4 + $0x440] sm:$0xff]
    %v679 = vld [vmem:[#allocation4 + $0x448] sm:$0xff]
    %v680 = vld [vmem:[#allocation4 + $0x450] sm:$0xff]
    %v681 = vld [vmem:[#allocation4 + $0x458] sm:$0xff]
    %v682 = vld [vmem:[#allocation4 + $0x460] sm:$0xff]
    %v683 = vld [vmem:[#allocation4 + $0x468] sm:$0xff]
    %v684 = vld [vmem:[#allocation4 + $0x470] sm:$0xff]
    %v685 = vld [vmem:[#allocation4 + $0x478] sm:$0xff]
    %v686 = vld [vmem:[#allocation4 + $0x480] sm:$0xff]
    %v687 = vld [vmem:[#allocation4 + $0x488] sm:$0xff]
    %v688 = vld [vmem:[#allocation4 + $0x490] sm:$0xff]
    %v689 = vld [vmem:[#allocation4 + $0x498] sm:$0xff]
    %v690 = vld [vmem:[#allocation4 + $0x4a0] sm:$0xff]
    %v691 = vld [vmem:[#allocation4 + $0x4a8] sm:$0xff]
    %v692 = vld [vmem:[#allocation4 + $0x4b0] sm:$0xff]
    %v693 = vld [vmem:[#allocation4 + $0x4b8] sm:$0xff]
    %v694 = vld [vmem:[#allocation4 + $0x4c0] sm:$0xff]
    %v695 = vld [vmem:[#allocation4 + $0x4c8] sm:$0xff]
    %v696 = vld [vmem:[#allocation4 + $0x4d0] sm:$0xff]
    %v697 = vld [vmem:[#allocation4 + $0x4d8] sm:$0xff]
    %v698 = vld [vmem:[#allocation4 + $0x4e0] sm:$0xff]
    %v699 = vld [vmem:[#allocation4 + $0x4e8] sm:$0xff]
    %v700 = vld [vmem:[#allocation4 + $0x4f0] sm:$0xff]
    %v701 = vld [vmem:[#allocation4 + $0x4f8] sm:$0xff]
    %v702 = vld [vmem:[#allocation4 + $0x500] sm:$0xff]
    %v703 = vld [vmem:[#allocation4 + $0x508] sm:$0xff]
    %v704 = vld [vmem:[#allocation4 + $0x510] sm:$0xff]
    %v705 = vld [vmem:[#allocation4 + $0x518] sm:$0xff]
    %v706 = vld [vmem:[#allocation4 + $0x520] sm:$0xff]
    %v707 = vld [vmem:[#allocation4 + $0x528] sm:$0xff]
    %v708 = vld [vmem:[#allocation4 + $0x530] sm:$0xff]
    %v709 = vld [vmem:[#allocation4 + $0x538] sm:$0xff]
    %v710 = vld [vmem:[#allocation4 + $0x540] sm:$0xff]
    %v711 = vld [vmem:[#allocation4 + $0x548] sm:$0xff]
    %v712 = vld [vmem:[#allocation4 + $0x550] sm:$0xff]
    %v713 = vld [vmem:[#allocation4 + $0x558] sm:$0xff]
    %v714 = vld [vmem:[#allocation4 + $0x560] sm:$0xff]
    %v715 = vld [vmem:[#allocation4 + $0x568] sm:$0xff]
    %v716 = vld [vmem:[#allocation4 + $0x570] sm:$0xff]
    %v717 = vld [vmem:[#allocation4 + $0x578] sm:$0xff]
    %v718 = vld [vmem:[#allocation4 + $0x580] sm:$0xff]
    %v719 = vld [vmem:[#allocation4 + $0x588] sm:$0xff]
    %v720 = vld [vmem:[#allocation4 + $0x590] sm:$0xff]
    %v721 = vld [vmem:[#allocation4 + $0x598] sm:$0xff]
    %v722 = vld [vmem:[#allocation4 + $0x5a0] sm:$0xff]
    %v723 = vld [vmem:[#allocation4 + $0x5a8] sm:$0xff]
    %v724 = vld [vmem:[#allocation4 + $0x5b0] sm:$0xff]
    %v725 = vld [vmem:[#allocation4 + $0x5b8] sm:$0xff]
    %v726 = vld [vmem:[#allocation4 + $0x5c0] sm:$0xff]
    %v727 = vld [vmem:[#allocation4 + $0x5c8] sm:$0xff]
    %v728 = vld [vmem:[#allocation4 + $0x5d0] sm:$0xff]
    %v729 = vld [vmem:[#allocation4 + $0x5d8] sm:$0xff]
    %v730 = vld [vmem:[#allocation4 + $0x5e0] sm:$0xff]
    %v731 = vld [vmem:[#allocation4 + $0x5e8] sm:$0xff]
    %v732 = vld [vmem:[#allocation4 + $0x5f0] sm:$0xff]
    %v733 = vld [vmem:[#allocation4 + $0x5f8] sm:$0xff]
    %v734 = vld [vmem:[#allocation4 + $0x600] sm:$0xff]
    %v735 = vld [vmem:[#allocation4 + $0x608] sm:$0xff]
    %v736 = vld [vmem:[#allocation4 + $0x610] sm:$0xff]
    %v737 = vld [vmem:[#allocation4 + $0x618] sm:$0xff]
    %v738 = vld [vmem:[#allocation4 + $0x620] sm:$0xff]
    %v739 = vld [vmem:[#allocation4 + $0x628] sm:$0xff]
    %v740 = vld [vmem:[#allocation4 + $0x630] sm:$0xff]
    %v741 = vld [vmem:[#allocation4 + $0x638] sm:$0xff]
    %v742 = vld [vmem:[#allocation4 + $0x640] sm:$0xff]
    %v743 = vld [vmem:[#allocation4 + $0x648] sm:$0xff]
    %v744 = vld [vmem:[#allocation4 + $0x650] sm:$0xff]
    %v745 = vld [vmem:[#allocation4 + $0x658] sm:$0xff]
    %v746 = vld [vmem:[#allocation4 + $0x660] sm:$0xff]
    %v747 = vld [vmem:[#allocation4 + $0x668] sm:$0xff]
    %v748 = vld [vmem:[#allocation4 + $0x670] sm:$0xff]
    %v749 = vld [vmem:[#allocation4 + $0x678] sm:$0xff]
    %v750 = vld [vmem:[#allocation4 + $0x680] sm:$0xff]
    %v751 = vld [vmem:[#allocation4 + $0x688] sm:$0xff]
    %v752 = vld [vmem:[#allocation4 + $0x690] sm:$0xff]
    %v753 = vld [vmem:[#allocation4 + $0x698] sm:$0xff]
    %v754 = vld [vmem:[#allocation4 + $0x6a0] sm:$0xff]
    %v755 = vld [vmem:[#allocation4 + $0x6a8] sm:$0xff]
    %v756 = vld [vmem:[#allocation4 + $0x6b0] sm:$0xff]
    %v757 = vld [vmem:[#allocation4 + $0x6b8] sm:$0xff]
    %v758 = vld [vmem:[#allocation4 + $0x6c0] sm:$0xff]
    %v759 = vld [vmem:[#allocation4 + $0x6c8] sm:$0xff]
    %v760 = vld [vmem:[#allocation4 + $0x6d0] sm:$0xff]
    %v761 = vld [vmem:[#allocation4 + $0x6d8] sm:$0xff]
    %v762 = vld [vmem:[#allocation4 + $0x6e0] sm:$0xff]
    %v763 = vld [vmem:[#allocation4 + $0x6e8] sm:$0xff]
    %v764 = vld [vmem:[#allocation4 + $0x6f0] sm:$0xff]
    %v765 = vld [vmem:[#allocation4 + $0x6f8] sm:$0xff]
    %v766 = vld [vmem:[#allocation4 + $0x700] sm:$0xff]
    %v767 = vld [vmem:[#allocation4 + $0x708] sm:$0xff]
    %v768 = vld [vmem:[#allocation4 + $0x710] sm:$0xff]
    %v769 = vld [vmem:[#allocation4 + $0x718] sm:$0xff]
    %v770 = vld [vmem:[#allocation4 + $0x720] sm:$0xff]
    %v771 = vld [vmem:[#allocation4 + $0x728] sm:$0xff]
    %v772 = vld [vmem:[#allocation4 + $0x730] sm:$0xff]
    %v773 = vld [vmem:[#allocation4 + $0x738] sm:$0xff]
    %v774 = vld [vmem:[#allocation4 + $0x740] sm:$0xff]
    %v775 = vld [vmem:[#allocation4 + $0x748] sm:$0xff]
    %v776 = vld [vmem:[#allocation4 + $0x750] sm:$0xff]
    %v777 = vld [vmem:[#allocation4 + $0x758] sm:$0xff]
    %v778 = vld [vmem:[#allocation4 + $0x760] sm:$0xff]
    %v779 = vld [vmem:[#allocation4 + $0x768] sm:$0xff]
    %v780 = vld [vmem:[#allocation4 + $0x770] sm:$0xff]
    %v781 = vld [vmem:[#allocation4 + $0x778] sm:$0xff]
    %v782 = vld [vmem:[#allocation4 + $0x780] sm:$0xff]
    %v783 = vld [vmem:[#allocation4 + $0x788] sm:$0xff]
    %v784 = vld [vmem:[#allocation4 + $0x790] sm:$0xff]
    %v785 = vld [vmem:[#allocation4 + $0x798] sm:$0xff]
    %v786 = vld [vmem:[#allocation4 + $0x7a0] sm:$0xff]
    %v787 = vld [vmem:[#allocation4 + $0x7a8] sm:$0xff]
    %v788 = vld [vmem:[#allocation4 + $0x7b0] sm:$0xff]
    %v789 = vld [vmem:[#allocation4 + $0x7b8] sm:$0xff]
    %v790 = vld [vmem:[#allocation4 + $0x7c0] sm:$0xff]
    %v791 = vld [vmem:[#allocation4 + $0x7c8] sm:$0xff]
    %v792 = vld [vmem:[#allocation4 + $0x7d0] sm:$0xff]
    %v793 = vld [vmem:[#allocation4 + $0x7d8] sm:$0xff]
    %v794 = vld [vmem:[#allocation4 + $0x7e0] sm:$0xff]
    %v795 = vld [vmem:[#allocation4 + $0x7e8] sm:$0xff]
    %v796 = vld [vmem:[#allocation4 + $0x7f0] sm:$0xff]
    %v797 = vld [vmem:[#allocation4 + $0x7f8] sm:$0xff]
    %v798 = vld [vmem:[#allocation2] sm:$0xff]
    %v799 = vld [vmem:[#allocation2 + $0x8] sm:$0xff]
    %v800 = vld [vmem:[#allocation2 + $0x10] sm:$0xff]
    %v801 = vld [vmem:[#allocation2 + $0x18] sm:$0xff]
    %v802 = vld [vmem:[#allocation2 + $0x20] sm:$0xff]
    %v803 = vld [vmem:[#allocation2 + $0x28] sm:$0xff]
    %v804 = vld [vmem:[#allocation2 + $0x30] sm:$0xff]
    %v805 = vld [vmem:[#allocation2 + $0x38] sm:$0xff]
    %v806 = vld [vmem:[#allocation2 + $0x40] sm:$0xff]
    %v807 = vld [vmem:[#allocation2 + $0x48] sm:$0xff]
    %v808 = vld [vmem:[#allocation2 + $0x50] sm:$0xff]
    %v809 = vld [vmem:[#allocation2 + $0x58] sm:$0xff]
    %v810 = vld [vmem:[#allocation2 + $0x60] sm:$0xff]
    %v811 = vld [vmem:[#allocation2 + $0x68] sm:$0xff]
    %v812 = vld [vmem:[#allocation2 + $0x70] sm:$0xff]
    %v813 = vld [vmem:[#allocation2 + $0x78] sm:$0xff]
    %v814 = vld [vmem:[#allocation2 + $0x80] sm:$0xff]
    %v815 = vld [vmem:[#allocation2 + $0x88] sm:$0xff]
    %v816 = vld [vmem:[#allocation2 + $0x90] sm:$0xff]
    %v817 = vld [vmem:[#allocation2 + $0x98] sm:$0xff]
    %v818 = vld [vmem:[#allocation2 + $0xa0] sm:$0xff]
    %v819 = vld [vmem:[#allocation2 + $0xa8] sm:$0xff]
    %v820 = vld [vmem:[#allocation2 + $0xb0] sm:$0xff]
    %v821 = vld [vmem:[#allocation2 + $0xb8] sm:$0xff]
    %v822 = vld [vmem:[#allocation2 + $0xc0] sm:$0xff]
    %v823 = vld [vmem:[#allocation2 + $0xc8] sm:$0xff]
    %v824 = vld [vmem:[#allocation2 + $0xd0] sm:$0xff]
    %v825 = vld [vmem:[#allocation2 + $0xd8] sm:$0xff]
    %v826 = vld [vmem:[#allocation2 + $0xe0] sm:$0xff]
    %v827 = vld [vmem:[#allocation2 + $0xe8] sm:$0xff]
    %v828 = vld [vmem:[#allocation2 + $0xf0] sm:$0xff]
    %v829 = vld [vmem:[#allocation2 + $0xf8] sm:$0xff]
    %v830 = vld [vmem:[#allocation2 + $0x100] sm:$0xff]
    %v831 = vld [vmem:[#allocation2 + $0x108] sm:$0xff]
    %v832 = vld [vmem:[#allocation2 + $0x110] sm:$0xff]
    %v833 = vld [vmem:[#allocation2 + $0x118] sm:$0xff]
    %v834 = vld [vmem:[#allocation2 + $0x120] sm:$0xff]
    %v835 = vld [vmem:[#allocation2 + $0x128] sm:$0xff]
    %v836 = vld [vmem:[#allocation2 + $0x130] sm:$0xff]
    %v837 = vld [vmem:[#allocation2 + $0x138] sm:$0xff]
    %v838 = vld [vmem:[#allocation2 + $0x140] sm:$0xff]
    %v839 = vld [vmem:[#allocation2 + $0x148] sm:$0xff]
    %v840 = vld [vmem:[#allocation2 + $0x150] sm:$0xff]
    %v841 = vld [vmem:[#allocation2 + $0x158] sm:$0xff]
    %v842 = vld [vmem:[#allocation2 + $0x160] sm:$0xff]
    %v843 = vld [vmem:[#allocation2 + $0x168] sm:$0xff]
    %v844 = vld [vmem:[#allocation2 + $0x170] sm:$0xff]
    %v845 = vld [vmem:[#allocation2 + $0x178] sm:$0xff]
    %v846 = vld [vmem:[#allocation2 + $0x180] sm:$0xff]
    %v847 = vld [vmem:[#allocation2 + $0x188] sm:$0xff]
    %v848 = vld [vmem:[#allocation2 + $0x190] sm:$0xff]
    %v849 = vld [vmem:[#allocation2 + $0x198] sm:$0xff]
    %v850 = vld [vmem:[#allocation2 + $0x1a0] sm:$0xff]
    %v851 = vld [vmem:[#allocation2 + $0x1a8] sm:$0xff]
    %v852 = vld [vmem:[#allocation2 + $0x1b0] sm:$0xff]
    %v853 = vld [vmem:[#allocation2 + $0x1b8] sm:$0xff]
    %v854 = vld [vmem:[#allocation2 + $0x1c0] sm:$0xff]
    %v855 = vld [vmem:[#allocation2 + $0x1c8] sm:$0xff]
    %v856 = vld [vmem:[#allocation2 + $0x1d0] sm:$0xff]
    %v857 = vld [vmem:[#allocation2 + $0x1d8] sm:$0xff]
    %v858 = vld [vmem:[#allocation2 + $0x1e0] sm:$0xff]
    %v859 = vld [vmem:[#allocation2 + $0x1e8] sm:$0xff]
    %v860 = vld [vmem:[#allocation2 + $0x1f0] sm:$0xff]
    %v861 = vld [vmem:[#allocation2 + $0x1f8] sm:$0xff]
    %v862 = vld [vmem:[#allocation2 + $0x200] sm:$0xff]
    %v863 = vld [vmem:[#allocation2 + $0x208] sm:$0xff]
    %v864 = vld [vmem:[#allocation2 + $0x210] sm:$0xff]
    %v865 = vld [vmem:[#allocation2 + $0x218] sm:$0xff]
    %v866 = vld [vmem:[#allocation2 + $0x220] sm:$0xff]
    %v867 = vld [vmem:[#allocation2 + $0x228] sm:$0xff]
    %v868 = vld [vmem:[#allocation2 + $0x230] sm:$0xff]
    %v869 = vld [vmem:[#allocation2 + $0x238] sm:$0xff]
    %v870 = vld [vmem:[#allocation2 + $0x240] sm:$0xff]
    %v871 = vld [vmem:[#allocation2 + $0x248] sm:$0xff]
    %v872 = vld [vmem:[#allocation2 + $0x250] sm:$0xff]
    %v873 = vld [vmem:[#allocation2 + $0x258] sm:$0xff]
    %v874 = vld [vmem:[#allocation2 + $0x260] sm:$0xff]
    %v875 = vld [vmem:[#allocation2 + $0x268] sm:$0xff]
    %v876 = vld [vmem:[#allocation2 + $0x270] sm:$0xff]
    %v877 = vld [vmem:[#allocation2 + $0x278] sm:$0xff]
    %v878 = vld [vmem:[#allocation2 + $0x280] sm:$0xff]
    %v879 = vld [vmem:[#allocation2 + $0x288] sm:$0xff]
    %v880 = vld [vmem:[#allocation2 + $0x290] sm:$0xff]
    %v881 = vld [vmem:[#allocation2 + $0x298] sm:$0xff]
    %v882 = vld [vmem:[#allocation2 + $0x2a0] sm:$0xff]
    %v883 = vld [vmem:[#allocation2 + $0x2a8] sm:$0xff]
    %v884 = vld [vmem:[#allocation2 + $0x2b0] sm:$0xff]
    %v885 = vld [vmem:[#allocation2 + $0x2b8] sm:$0xff]
    %v886 = vld [vmem:[#allocation2 + $0x2c0] sm:$0xff]
    %v887 = vld [vmem:[#allocation2 + $0x2c8] sm:$0xff]
    %v888 = vld [vmem:[#allocation2 + $0x2d0] sm:$0xff]
    %v889 = vld [vmem:[#allocation2 + $0x2d8] sm:$0xff]
    %v890 = vld [vmem:[#allocation2 + $0x2e0] sm:$0xff]
    %v891 = vld [vmem:[#allocation2 + $0x2e8] sm:$0xff]
    %v892 = vld [vmem:[#allocation2 + $0x2f0] sm:$0xff]
    %v893 = vld [vmem:[#allocation2 + $0x2f8] sm:$0xff]
    %v894 = vld [vmem:[#allocation2 + $0x300] sm:$0xff]
    %v895 = vld [vmem:[#allocation2 + $0x308] sm:$0xff]
    %v896 = vld [vmem:[#allocation2 + $0x310] sm:$0xff]
    %v897 = vld [vmem:[#allocation2 + $0x318] sm:$0xff]
    %v898 = vld [vmem:[#allocation2 + $0x320] sm:$0xff]
    %v899 = vld [vmem:[#allocation2 + $0x328] sm:$0xff]
    %v900 = vld [vmem:[#allocation2 + $0x330] sm:$0xff]
    %v901 = vld [vmem:[#allocation2 + $0x338] sm:$0xff]
    %v902 = vld [vmem:[#allocation2 + $0x340] sm:$0xff]
    %v903 = vld [vmem:[#allocation2 + $0x348] sm:$0xff]
    %v904 = vld [vmem:[#allocation2 + $0x350] sm:$0xff]
    %v905 = vld [vmem:[#allocation2 + $0x358] sm:$0xff]
    %v906 = vld [vmem:[#allocation2 + $0x360] sm:$0xff]
    %v907 = vld [vmem:[#allocation2 + $0x368] sm:$0xff]
    %v908 = vld [vmem:[#allocation2 + $0x370] sm:$0xff]
    %v909 = vld [vmem:[#allocation2 + $0x378] sm:$0xff]
    %v910 = vld [vmem:[#allocation2 + $0x380] sm:$0xff]
    %v911 = vld [vmem:[#allocation2 + $0x388] sm:$0xff]
    %v912 = vld [vmem:[#allocation2 + $0x390] sm:$0xff]
    %v913 = vld [vmem:[#allocation2 + $0x398] sm:$0xff]
    %v914 = vld [vmem:[#allocation2 + $0x3a0] sm:$0xff]
    %v915 = vld [vmem:[#allocation2 + $0x3a8] sm:$0xff]
    %v916 = vld [vmem:[#allocation2 + $0x3b0] sm:$0xff]
    %v917 = vld [vmem:[#allocation2 + $0x3b8] sm:$0xff]
    %v918 = vld [vmem:[#allocation2 + $0x3c0] sm:$0xff]
    %v919 = vld [vmem:[#allocation2 + $0x3c8] sm:$0xff]
    %v920 = vld [vmem:[#allocation2 + $0x3d0] sm:$0xff]
    %v921 = vld [vmem:[#allocation2 + $0x3d8] sm:$0xff]
    %v922 = vld [vmem:[#allocation2 + $0x3e0] sm:$0xff]
    %v923 = vld [vmem:[#allocation2 + $0x3e8] sm:$0xff]
    %v924 = vld [vmem:[#allocation2 + $0x3f0] sm:$0xff]
    %v925 = vld [vmem:[#allocation2 + $0x3f8] sm:$0xff]
    %v926 = vld [vmem:[#allocation2 + $0x400] sm:$0xff]
    %v927 = vld [vmem:[#allocation2 + $0x408] sm:$0xff]
    %v928 = vld [vmem:[#allocation2 + $0x410] sm:$0xff]
    %v929 = vld [vmem:[#allocation2 + $0x418] sm:$0xff]
    %v930 = vld [vmem:[#allocation2 + $0x420] sm:$0xff]
    %v931 = vld [vmem:[#allocation2 + $0x428] sm:$0xff]
    %v932 = vld [vmem:[#allocation2 + $0x430] sm:$0xff]
    %v933 = vld [vmem:[#allocation2 + $0x438] sm:$0xff]
    %v934 = vld [vmem:[#allocation2 + $0x440] sm:$0xff]
    %v935 = vld [vmem:[#allocation2 + $0x448] sm:$0xff]
    %v936 = vld [vmem:[#allocation2 + $0x450] sm:$0xff]
    %v937 = vld [vmem:[#allocation2 + $0x458] sm:$0xff]
    %v938 = vld [vmem:[#allocation2 + $0x460] sm:$0xff]
    %v939 = vld [vmem:[#allocation2 + $0x468] sm:$0xff]
    %v940 = vld [vmem:[#allocation2 + $0x470] sm:$0xff]
    %v941 = vld [vmem:[#allocation2 + $0x478] sm:$0xff]
    %v942 = vld [vmem:[#allocation2 + $0x480] sm:$0xff]
    %v943 = vld [vmem:[#allocation2 + $0x488] sm:$0xff]
    %v944 = vld [vmem:[#allocation2 + $0x490] sm:$0xff]
    %v945 = vld [vmem:[#allocation2 + $0x498] sm:$0xff]
    %v946 = vld [vmem:[#allocation2 + $0x4a0] sm:$0xff]
    %v947 = vld [vmem:[#allocation2 + $0x4a8] sm:$0xff]
    %v948 = vld [vmem:[#allocation2 + $0x4b0] sm:$0xff]
    %v949 = vld [vmem:[#allocation2 + $0x4b8] sm:$0xff]
    %v950 = vld [vmem:[#allocation2 + $0x4c0] sm:$0xff]
    %v951 = vld [vmem:[#allocation2 + $0x4c8] sm:$0xff]
    %v952 = vld [vmem:[#allocation2 + $0x4d0] sm:$0xff]
    %v953 = vld [vmem:[#allocation2 + $0x4d8] sm:$0xff]
    %v954 = vld [vmem:[#allocation2 + $0x4e0] sm:$0xff]
    %v955 = vld [vmem:[#allocation2 + $0x4e8] sm:$0xff]
    %v956 = vld [vmem:[#allocation2 + $0x4f0] sm:$0xff]
    %v957 = vld [vmem:[#allocation2 + $0x4f8] sm:$0xff]
    %v958 = vld [vmem:[#allocation2 + $0x500] sm:$0xff]
    %v959 = vld [vmem:[#allocation2 + $0x508] sm:$0xff]
    %v960 = vld [vmem:[#allocation2 + $0x510] sm:$0xff]
    %v961 = vld [vmem:[#allocation2 + $0x518] sm:$0xff]
    %v962 = vld [vmem:[#allocation2 + $0x520] sm:$0xff]
    %v963 = vld [vmem:[#allocation2 + $0x528] sm:$0xff]
    %v964 = vld [vmem:[#allocation2 + $0x530] sm:$0xff]
    %v965 = vld [vmem:[#allocation2 + $0x538] sm:$0xff]
    %v966 = vld [vmem:[#allocation2 + $0x540] sm:$0xff]
    %v967 = vld [vmem:[#allocation2 + $0x548] sm:$0xff]
    %v968 = vld [vmem:[#allocation2 + $0x550] sm:$0xff]
    %v969 = vld [vmem:[#allocation2 + $0x558] sm:$0xff]
    %v970 = vld [vmem:[#allocation2 + $0x560] sm:$0xff]
    %v971 = vld [vmem:[#allocation2 + $0x568] sm:$0xff]
    %v972 = vld [vmem:[#allocation2 + $0x570] sm:$0xff]
    %v973 = vld [vmem:[#allocation2 + $0x578] sm:$0xff]
    %v974 = vld [vmem:[#allocation2 + $0x580] sm:$0xff]
    %v975 = vld [vmem:[#allocation2 + $0x588] sm:$0xff]
    %v976 = vld [vmem:[#allocation2 + $0x590] sm:$0xff]
    %v977 = vld [vmem:[#allocation2 + $0x598] sm:$0xff]
    %v978 = vld [vmem:[#allocation2 + $0x5a0] sm:$0xff]
    %v979 = vld [vmem:[#allocation2 + $0x5a8] sm:$0xff]
    %v980 = vld [vmem:[#allocation2 + $0x5b0] sm:$0xff]
    %v981 = vld [vmem:[#allocation2 + $0x5b8] sm:$0xff]
    %v982 = vld [vmem:[#allocation2 + $0x5c0] sm:$0xff]
    %v983 = vld [vmem:[#allocation2 + $0x5c8] sm:$0xff]
    %v984 = vld [vmem:[#allocation2 + $0x5d0] sm:$0xff]
    %v985 = vld [vmem:[#allocation2 + $0x5d8] sm:$0xff]
    %v986 = vld [vmem:[#allocation2 + $0x5e0] sm:$0xff]
    %v987 = vld [vmem:[#allocation2 + $0x5e8] sm:$0xff]
    %v988 = vld [vmem:[#allocation2 + $0x5f0] sm:$0xff]
    %v989 = vld [vmem:[#allocation2 + $0x5f8] sm:$0xff]
    %v990 = vld [vmem:[#allocation2 + $0x600] sm:$0xff]
    %v991 = vld [vmem:[#allocation2 + $0x608] sm:$0xff]
    %v992 = vld [vmem:[#allocation2 + $0x610] sm:$0xff]
    %v993 = vld [vmem:[#allocation2 + $0x618] sm:$0xff]
    %v994 = vld [vmem:[#allocation2 + $0x620] sm:$0xff]
    %v995 = vld [vmem:[#allocation2 + $0x628] sm:$0xff]
    %v996 = vld [vmem:[#allocation2 + $0x630] sm:$0xff]
    %v997 = vld [vmem:[#allocation2 + $0x638] sm:$0xff]
    %v998 = vld [vmem:[#allocation2 + $0x640] sm:$0xff]
    %v999 = vld [vmem:[#allocation2 + $0x648] sm:$0xff]
    %v1000 = vld [vmem:[#allocation2 + $0x650] sm:$0xff]
    %v1001 = vld [vmem:[#allocation2 + $0x658] sm:$0xff]
    %v1002 = vld [vmem:[#allocation2 + $0x660] sm:$0xff]
    %v1003 = vld [vmem:[#allocation2 + $0x668] sm:$0xff]
    %v1004 = vld [vmem:[#allocation2 + $0x670] sm:$0xff]
    %v1005 = vld [vmem:[#allocation2 + $0x678] sm:$0xff]
    %v1006 = vld [vmem:[#allocation2 + $0x680] sm:$0xff]
    %v1007 = vld [vmem:[#allocation2 + $0x688] sm:$0xff]
    %v1008 = vld [vmem:[#allocation2 + $0x690] sm:$0xff]
    %v1009 = vld [vmem:[#allocation2 + $0x698] sm:$0xff]
    %v1010 = vld [vmem:[#allocation2 + $0x6a0] sm:$0xff]
    %v1011 = vld [vmem:[#allocation2 + $0x6a8] sm:$0xff]
    %v1012 = vld [vmem:[#allocation2 + $0x6b0] sm:$0xff]
    %v1013 = vld [vmem:[#allocation2 + $0x6b8] sm:$0xff]
    %v1014 = vld [vmem:[#allocation2 + $0x6c0] sm:$0xff]
    %v1015 = vld [vmem:[#allocation2 + $0x6c8] sm:$0xff]
    %v1016 = vld [vmem:[#allocation2 + $0x6d0] sm:$0xff]
    %v1017 = vld [vmem:[#allocation2 + $0x6d8] sm:$0xff]
    %v1018 = vld [vmem:[#allocation2 + $0x6e0] sm:$0xff]
    %v1019 = vld [vmem:[#allocation2 + $0x6e8] sm:$0xff]
    %v1020 = vld [vmem:[#allocation2 + $0x6f0] sm:$0xff]
    %v1021 = vld [vmem:[#allocation2 + $0x6f8] sm:$0xff]
    %v1022 = vld [vmem:[#allocation2 + $0x700] sm:$0xff]
    %v1023 = vld [vmem:[#allocation2 + $0x708] sm:$0xff]
    %v1024 = vld [vmem:[#allocation2 + $0x710] sm:$0xff]
    %v1025 = vld [vmem:[#allocation2 + $0x718] sm:$0xff]
    %v1026 = vld [vmem:[#allocation2 + $0x720] sm:$0xff]
    %v1027 = vld [vmem:[#allocation2 + $0x728] sm:$0xff]
    %v1028 = vld [vmem:[#allocation2 + $0x730] sm:$0xff]
    %v1029 = vld [vmem:[#allocation2 + $0x738] sm:$0xff]
    %v1030 = vld [vmem:[#allocation2 + $0x740] sm:$0xff]
    %v1031 = vld [vmem:[#allocation2 + $0x748] sm:$0xff]
    %v1032 = vld [vmem:[#allocation2 + $0x750] sm:$0xff]
    %v1033 = vld [vmem:[#allocation2 + $0x758] sm:$0xff]
    %v1034 = vld [vmem:[#allocation2 + $0x760] sm:$0xff]
    %v1035 = vld [vmem:[#allocation2 + $0x768] sm:$0xff]
    %v1036 = vld [vmem:[#allocation2 + $0x770] sm:$0xff]
    %v1037 = vld [vmem:[#allocation2 + $0x778] sm:$0xff]
    %v1038 = vld [vmem:[#allocation2 + $0x780] sm:$0xff]
    %v1039 = vld [vmem:[#allocation2 + $0x788] sm:$0xff]
    %v1040 = vld [vmem:[#allocation2 + $0x790] sm:$0xff]
    %v1041 = vld [vmem:[#allocation2 + $0x798] sm:$0xff]
    %v1042 = vld [vmem:[#allocation2 + $0x7a0] sm:$0xff]
    %v1043 = vld [vmem:[#allocation2 + $0x7a8] sm:$0xff]
    %v1044 = vld [vmem:[#allocation2 + $0x7b0] sm:$0xff]
    %v1045 = vld [vmem:[#allocation2 + $0x7b8] sm:$0xff]
    %v1046 = vld [vmem:[#allocation2 + $0x7c0] sm:$0xff]
    %v1047 = vld [vmem:[#allocation2 + $0x7c8] sm:$0xff]
    %v1048 = vld [vmem:[#allocation2 + $0x7d0] sm:$0xff]
    %v1049 = vld [vmem:[#allocation2 + $0x7d8] sm:$0xff]
    %v1050 = vld [vmem:[#allocation2 + $0x7e0] sm:$0xff]
    %v1051 = vld [vmem:[#allocation2 + $0x7e8] sm:$0xff]
    %v1052 = vld [vmem:[#allocation2 + $0x7f0] sm:$0xff]
    %v1053 = vld [vmem:[#allocation2 + $0x7f8] sm:$0xff]
    %v1054 = vadd.f32 %v798, %v542
    %v1055 = vadd.f32 %v799, %v543
    %v1056 = vadd.f32 %v800, %v544
    %v1057 = vadd.f32 %v801, %v545
    %v1058 = vadd.f32 %v802, %v546
    %v1059 = vadd.f32 %v803, %v547
    %v1060 = vadd.f32 %v804, %v548
    %v1061 = vadd.f32 %v805, %v549
    %v1062 = vadd.f32 %v806, %v550
    %v1063 = vadd.f32 %v807, %v551
    %v1064 = vadd.f32 %v808, %v552
    %v1065 = vadd.f32 %v809, %v553
    %v1066 = vadd.f32 %v810, %v554
    %v1067 = vadd.f32 %v811, %v555
    %v1068 = vadd.f32 %v812, %v556
    %v1069 = vadd.f32 %v813, %v557
    %v1070 = vadd.f32 %v814, %v558
    %v1071 = vadd.f32 %v815, %v559
    %v1072 = vadd.f32 %v816, %v560
    %v1073 = vadd.f32 %v817, %v561
    %v1074 = vadd.f32 %v818, %v562
    %v1075 = vadd.f32 %v819, %v563
    %v1076 = vadd.f32 %v820, %v564
    %v1077 = vadd.f32 %v821, %v565
    %v1078 = vadd.f32 %v822, %v566
    %v1079 = vadd.f32 %v823, %v567
    %v1080 = vadd.f32 %v824, %v568
    %v1081 = vadd.f32 %v825, %v569
    %v1082 = vadd.f32 %v826, %v570
    %v1083 = vadd.f32 %v827, %v571
    %v1084 = vadd.f32 %v828, %v572
    %v1085 = vadd.f32 %v829, %v573
    %v1086 = vadd.f32 %v830, %v574
    %v1087 = vadd.f32 %v831, %v575
    %v1088 = vadd.f32 %v832, %v576
    %v1089 = vadd.f32 %v833, %v577
    %v1090 = vadd.f32 %v834, %v578
    %v1091 = vadd.f32 %v835, %v579
    %v1092 = vadd.f32 %v836, %v580
    %v1093 = vadd.f32 %v837, %v581
    %v1094 = vadd.f32 %v838, %v582
    %v1095 = vadd.f32 %v839, %v583
    %v1096 = vadd.f32 %v840, %v584
    %v1097 = vadd.f32 %v841, %v585
    %v1098 = vadd.f32 %v842, %v586
    %v1099 = vadd.f32 %v843, %v587
    %v1100 = vadd.f32 %v844, %v588
    %v1101 = vadd.f32 %v845, %v589
    %v1102 = vadd.f32 %v846, %v590
    %v1103 = vadd.f32 %v847, %v591
    %v1104 = vadd.f32 %v848, %v592
    %v1105 = vadd.f32 %v849, %v593
    %v1106 = vadd.f32 %v850, %v594
    %v1107 = vadd.f32 %v851, %v595
    %v1108 = vadd.f32 %v852, %v596
    %v1109 = vadd.f32 %v853, %v597
    %v1110 = vadd.f32 %v854, %v598
    %v1111 = vadd.f32 %v855, %v599
    %v1112 = vadd.f32 %v856, %v600
    %v1113 = vadd.f32 %v857, %v601
    %v1114 = vadd.f32 %v858, %v602
    %v1115 = vadd.f32 %v859, %v603
    %v1116 = vadd.f32 %v860, %v604
    %v1117 = vadd.f32 %v861, %v605
    %v1118 = vadd.f32 %v862, %v606
    %v1119 = vadd.f32 %v863, %v607
    %v1120 = vadd.f32 %v864, %v608
    %v1121 = vadd.f32 %v865, %v609
    %v1122 = vadd.f32 %v866, %v610
    %v1123 = vadd.f32 %v867, %v611
    %v1124 = vadd.f32 %v868, %v612
    %v1125 = vadd.f32 %v869, %v613
    %v1126 = vadd.f32 %v870, %v614
    %v1127 = vadd.f32 %v871, %v615
    %v1128 = vadd.f32 %v872, %v616
    %v1129 = vadd.f32 %v873, %v617
    %v1130 = vadd.f32 %v874, %v618
    %v1131 = vadd.f32 %v875, %v619
    %v1132 = vadd.f32 %v876, %v620
    %v1133 = vadd.f32 %v877, %v621
    %v1134 = vadd.f32 %v878, %v622
    %v1135 = vadd.f32 %v879, %v623
    %v1136 = vadd.f32 %v880, %v624
    %v1137 = vadd.f32 %v881, %v625
    %v1138 = vadd.f32 %v882, %v626
    %v1139 = vadd.f32 %v883, %v627
    %v1140 = vadd.f32 %v884, %v628
    %v1141 = vadd.f32 %v885, %v629
    %v1142 = vadd.f32 %v886, %v630
    %v1143 = vadd.f32 %v887, %v631
    %v1144 = vadd.f32 %v888, %v632
    %v1145 = vadd.f32 %v889, %v633
    %v1146 = vadd.f32 %v890, %v634
    %v1147 = vadd.f32 %v891, %v635
    %v1148 = vadd.f32 %v892, %v636
    %v1149 = vadd.f32 %v893, %v637
    %v1150 = vadd.f32 %v894, %v638
    %v1151 = vadd.f32 %v895, %v639
    %v1152 = vadd.f32 %v896, %v640
    %v1153 = vadd.f32 %v897, %v641
    %v1154 = vadd.f32 %v898, %v642
    %v1155 = vadd.f32 %v899, %v643
    %v1156 = vadd.f32 %v900, %v644
    %v1157 = vadd.f32 %v901, %v645
    %v1158 = vadd.f32 %v902, %v646
    %v1159 = vadd.f32 %v903, %v647
    %v1160 = vadd.f32 %v904, %v648
    %v1161 = vadd.f32 %v905, %v649
    %v1162 = vadd.f32 %v906, %v650
    %v1163 = vadd.f32 %v907, %v651
    %v1164 = vadd.f32 %v908, %v652
    %v1165 = vadd.f32 %v909, %v653
    %v1166 = vadd.f32 %v910, %v654
    %v1167 = vadd.f32 %v911, %v655
    %v1168 = vadd.f32 %v912, %v656
    %v1169 = vadd.f32 %v913, %v657
    %v1170 = vadd.f32 %v914, %v658
    %v1171 = vadd.f32 %v915, %v659
    %v1172 = vadd.f32 %v916, %v660
    %v1173 = vadd.f32 %v917, %v661
    %v1174 = vadd.f32 %v918, %v662
    %v1175 = vadd.f32 %v919, %v663
    %v1176 = vadd.f32 %v920, %v664
    %v1177 = vadd.f32 %v921, %v665
    %v1178 = vadd.f32 %v922, %v666
    %v1179 = vadd.f32 %v923, %v667
    %v1180 = vadd.f32 %v924, %v668
    %v1181 = vadd.f32 %v925, %v669
    %v1182 = vadd.f32 %v926, %v670
    %v1183 = vadd.f32 %v927, %v671
    %v1184 = vadd.f32 %v928, %v672
    %v1185 = vadd.f32 %v929, %v673
    %v1186 = vadd.f32 %v930, %v674
    %v1187 = vadd.f32 %v931, %v675
    %v1188 = vadd.f32 %v932, %v676
    %v1189 = vadd.f32 %v933, %v677
    %v1190 = vadd.f32 %v934, %v678
    %v1191 = vadd.f32 %v935, %v679
    %v1192 = vadd.f32 %v936, %v680
    %v1193 = vadd.f32 %v937, %v681
    %v1194 = vadd.f32 %v938, %v682
    %v1195 = vadd.f32 %v939, %v683
    %v1196 = vadd.f32 %v940, %v684
    %v1197 = vadd.f32 %v941, %v685
    %v1198 = vadd.f32 %v942, %v686
    %v1199 = vadd.f32 %v943, %v687
    %v1200 = vadd.f32 %v944, %v688
    %v1201 = vadd.f32 %v945, %v689
    %v1202 = vadd.f32 %v946, %v690
    %v1203 = vadd.f32 %v947, %v691
    %v1204 = vadd.f32 %v948, %v692
    %v1205 = vadd.f32 %v949, %v693
    %v1206 = vadd.f32 %v950, %v694
    %v1207 = vadd.f32 %v951, %v695
    %v1208 = vadd.f32 %v952, %v696
    %v1209 = vadd.f32 %v953, %v697
    %v1210 = vadd.f32 %v954, %v698
    %v1211 = vadd.f32 %v955, %v699
    %v1212 = vadd.f32 %v956, %v700
    %v1213 = vadd.f32 %v957, %v701
    %v1214 = vadd.f32 %v958, %v702
    %v1215 = vadd.f32 %v959, %v703
    %v1216 = vadd.f32 %v960, %v704
    %v1217 = vadd.f32 %v961, %v705
    %v1218 = vadd.f32 %v962, %v706
    %v1219 = vadd.f32 %v963, %v707
    %v1220 = vadd.f32 %v964, %v708
    %v1221 = vadd.f32 %v965, %v709
    %v1222 = vadd.f32 %v966, %v710
    %v1223 = vadd.f32 %v967, %v711
    %v1224 = vadd.f32 %v968, %v712
    %v1225 = vadd.f32 %v969, %v713
    %v1226 = vadd.f32 %v970, %v714
    %v1227 = vadd.f32 %v971, %v715
    %v1228 = vadd.f32 %v972, %v716
    %v1229 = vadd.f32 %v973, %v717
    %v1230 = vadd.f32 %v974, %v718
    %v1231 = vadd.f32 %v975, %v719
    %v1232 = vadd.f32 %v976, %v720
    %v1233 = vadd.f32 %v977, %v721
    %v1234 = vadd.f32 %v978, %v722
    %v1235 = vadd.f32 %v979, %v723
    %v1236 = vadd.f32 %v980, %v724
    %v1237 = vadd.f32 %v981, %v725
    %v1238 = vadd.f32 %v982, %v726
    %v1239 = vadd.f32 %v983, %v727
    %v1240 = vadd.f32 %v984, %v728
    %v1241 = vadd.f32 %v985, %v729
    %v1242 = vadd.f32 %v986, %v730
    %v1243 = vadd.f32 %v987, %v731
    %v1244 = vadd.f32 %v988, %v732
    %v1245 = vadd.f32 %v989, %v733
    %v1246 = vadd.f32 %v990, %v734
    %v1247 = vadd.f32 %v991, %v735
    %v1248 = vadd.f32 %v992, %v736
    %v1249 = vadd.f32 %v993, %v737
    %v1250 = vadd.f32 %v994, %v738
    %v1251 = vadd.f32 %v995, %v739
    %v1252 = vadd.f32 %v996, %v740
    %v1253 = vadd.f32 %v997, %v741
    %v1254 = vadd.f32 %v998, %v742
    %v1255 = vadd.f32 %v999, %v743
    %v1256 = vadd.f32 %v1000, %v744
    %v1257 = vadd.f32 %v1001, %v745
    %v1258 = vadd.f32 %v1002, %v746
    %v1259 = vadd.f32 %v1003, %v747
    %v1260 = vadd.f32 %v1004, %v748
    %v1261 = vadd.f32 %v1005, %v749
    %v1262 = vadd.f32 %v1006, %v750
    %v1263 = vadd.f32 %v1007, %v751
    %v1264 = vadd.f32 %v1008, %v752
    %v1265 = vadd.f32 %v1009, %v753
    %v1266 = vadd.f32 %v1010, %v754
    %v1267 = vadd.f32 %v1011, %v755
    %v1268 = vadd.f32 %v1012, %v756
    %v1269 = vadd.f32 %v1013, %v757
    %v1270 = vadd.f32 %v1014, %v758
    %v1271 = vadd.f32 %v1015, %v759
    %v1272 = vadd.f32 %v1016, %v760
    %v1273 = vadd.f32 %v1017, %v761
    %v1274 = vadd.f32 %v1018, %v762
    %v1275 = vadd.f32 %v1019, %v763
    %v1276 = vadd.f32 %v1020, %v764
    %v1277 = vadd.f32 %v1021, %v765
    %v1278 = vadd.f32 %v1022, %v766
    %v1279 = vadd.f32 %v1023, %v767
    %v1280 = vadd.f32 %v1024, %v768
    %v1281 = vadd.f32 %v1025, %v769
    %v1282 = vadd.f32 %v1026, %v770
    %v1283 = vadd.f32 %v1027, %v771
    %v1284 = vadd.f32 %v1028, %v772
    %v1285 = vadd.f32 %v1029, %v773
    %v1286 = vadd.f32 %v1030, %v774
    %v1287 = vadd.f32 %v1031, %v775
    %v1288 = vadd.f32 %v1032, %v776
    %v1289 = vadd.f32 %v1033, %v777
    %v1290 = vadd.f32 %v1034, %v778
    %v1291 = vadd.f32 %v1035, %v779
    %v1292 = vadd.f32 %v1036, %v780
    %v1293 = vadd.f32 %v1037, %v781
    %v1294 = vadd.f32 %v1038, %v782
    %v1295 = vadd.f32 %v1039, %v783
    %v1296 = vadd.f32 %v1040, %v784
    %v1297 = vadd.f32 %v1041, %v785
    %v1298 = vadd.f32 %v1042, %v786
    %v1299 = vadd.f32 %v1043, %v787
    %v1300 = vadd.f32 %v1044, %v788
    %v1301 = vadd.f32 %v1045, %v789
    %v1302 = vadd.f32 %v1046, %v790
    %v1303 = vadd.f32 %v1047, %v791
    %v1304 = vadd.f32 %v1048, %v792
    %v1305 = vadd.f32 %v1049, %v793
    %v1306 = vadd.f32 %v1050, %v794
    %v1307 = vadd.f32 %v1051, %v795
    %v1308 = vadd.f32 %v1052, %v796
    %v1309 = vadd.f32 %v1053, %v797
    %1310 = vst [vmem:[#allocation2] sm:$0xff] %v1054
    %1311 = vst [vmem:[#allocation2 + $0x8] sm:$0xff] %v1055
    %1312 = vst [vmem:[#allocation2 + $0x10] sm:$0xff] %v1056
    %1313 = vst [vmem:[#allocation2 + $0x18] sm:$0xff] %v1057
    %1314 = vst [vmem:[#allocation2 + $0x20] sm:$0xff] %v1058
    %1315 = vst [vmem:[#allocation2 + $0x28] sm:$0xff] %v1059
    %1316 = vst [vmem:[#allocation2 + $0x30] sm:$0xff] %v1060
    %1317 = vst [vmem:[#allocation2 + $0x38] sm:$0xff] %v1061
    %1318 = vst [vmem:[#allocation2 + $0x40] sm:$0xff] %v1062
    %1319 = vst [vmem:[#allocation2 + $0x48] sm:$0xff] %v1063
    %1320 = vst [vmem:[#allocation2 + $0x50] sm:$0xff] %v1064
    %1321 = vst [vmem:[#allocation2 + $0x58] sm:$0xff] %v1065
    %1322 = vst [vmem:[#allocation2 + $0x60] sm:$0xff] %v1066
    %1323 = vst [vmem:[#allocation2 + $0x68] sm:$0xff] %v1067
    %1324 = vst [vmem:[#allocation2 + $0x70] sm:$0xff] %v1068
    %1325 = vst [vmem:[#allocation2 + $0x78] sm:$0xff] %v1069
    %1326 = vst [vmem:[#allocation2 + $0x80] sm:$0xff] %v1070
    %1327 = vst [vmem:[#allocation2 + $0x88] sm:$0xff] %v1071
    %1328 = vst [vmem:[#allocation2 + $0x90] sm:$0xff] %v1072
    %1329 = vst [vmem:[#allocation2 + $0x98] sm:$0xff] %v1073
    %1330 = vst [vmem:[#allocation2 + $0xa0] sm:$0xff] %v1074
    %1331 = vst [vmem:[#allocation2 + $0xa8] sm:$0xff] %v1075
    %1332 = vst [vmem:[#allocation2 + $0xb0] sm:$0xff] %v1076
    %1333 = vst [vmem:[#allocation2 + $0xb8] sm:$0xff] %v1077
    %1334 = vst [vmem:[#allocation2 + $0xc0] sm:$0xff] %v1078
    %1335 = vst [vmem:[#allocation2 + $0xc8] sm:$0xff] %v1079
    %1336 = vst [vmem:[#allocation2 + $0xd0] sm:$0xff] %v1080
    %1337 = vst [vmem:[#allocation2 + $0xd8] sm:$0xff] %v1081
    %1338 = vst [vmem:[#allocation2 + $0xe0] sm:$0xff] %v1082
    %1339 = vst [vmem:[#allocation2 + $0xe8] sm:$0xff] %v1083
    %1340 = vst [vmem:[#allocation2 + $0xf0] sm:$0xff] %v1084
    %1341 = vst [vmem:[#allocation2 + $0xf8] sm:$0xff] %v1085
    %1342 = vst [vmem:[#allocation2 + $0x100] sm:$0xff] %v1086
    %1343 = vst [vmem:[#allocation2 + $0x108] sm:$0xff] %v1087
    %1344 = vst [vmem:[#allocation2 + $0x110] sm:$0xff] %v1088
    %1345 = vst [vmem:[#allocation2 + $0x118] sm:$0xff] %v1089
    %1346 = vst [vmem:[#allocation2 + $0x120] sm:$0xff] %v1090
    %1347 = vst [vmem:[#allocation2 + $0x128] sm:$0xff] %v1091
    %1348 = vst [vmem:[#allocation2 + $0x130] sm:$0xff] %v1092
    %1349 = vst [vmem:[#allocation2 + $0x138] sm:$0xff] %v1093
    %1350 = vst [vmem:[#allocation2 + $0x140] sm:$0xff] %v1094
    %1351 = vst [vmem:[#allocation2 + $0x148] sm:$0xff] %v1095
    %1352 = vst [vmem:[#allocation2 + $0x150] sm:$0xff] %v1096
    %1353 = vst [vmem:[#allocation2 + $0x158] sm:$0xff] %v1097
    %1354 = vst [vmem:[#allocation2 + $0x160] sm:$0xff] %v1098
    %1355 = vst [vmem:[#allocation2 + $0x168] sm:$0xff] %v1099
    %1356 = vst [vmem:[#allocation2 + $0x170] sm:$0xff] %v1100
    %1357 = vst [vmem:[#allocation2 + $0x178] sm:$0xff] %v1101
    %1358 = vst [vmem:[#allocation2 + $0x180] sm:$0xff] %v1102
    %1359 = vst [vmem:[#allocation2 + $0x188] sm:$0xff] %v1103
    %1360 = vst [vmem:[#allocation2 + $0x190] sm:$0xff] %v1104
    %1361 = vst [vmem:[#allocation2 + $0x198] sm:$0xff] %v1105
    %1362 = vst [vmem:[#allocation2 + $0x1a0] sm:$0xff] %v1106
    %1363 = vst [vmem:[#allocation2 + $0x1a8] sm:$0xff] %v1107
    %1364 = vst [vmem:[#allocation2 + $0x1b0] sm:$0xff] %v1108
    %1365 = vst [vmem:[#allocation2 + $0x1b8] sm:$0xff] %v1109
    %1366 = vst [vmem:[#allocation2 + $0x1c0] sm:$0xff] %v1110
    %1367 = vst [vmem:[#allocation2 + $0x1c8] sm:$0xff] %v1111
    %1368 = vst [vmem:[#allocation2 + $0x1d0] sm:$0xff] %v1112
    %1369 = vst [vmem:[#allocation2 + $0x1d8] sm:$0xff] %v1113
    %1370 = vst [vmem:[#allocation2 + $0x1e0] sm:$0xff] %v1114
    %1371 = vst [vmem:[#allocation2 + $0x1e8] sm:$0xff] %v1115
    %1372 = vst [vmem:[#allocation2 + $0x1f0] sm:$0xff] %v1116
    %1373 = vst [vmem:[#allocation2 + $0x1f8] sm:$0xff] %v1117
    %1374 = vst [vmem:[#allocation2 + $0x200] sm:$0xff] %v1118
    %1375 = vst [vmem:[#allocation2 + $0x208] sm:$0xff] %v1119
    %1376 = vst [vmem:[#allocation2 + $0x210] sm:$0xff] %v1120
    %1377 = vst [vmem:[#allocation2 + $0x218] sm:$0xff] %v1121
    %1378 = vst [vmem:[#allocation2 + $0x220] sm:$0xff] %v1122
    %1379 = vst [vmem:[#allocation2 + $0x228] sm:$0xff] %v1123
    %1380 = vst [vmem:[#allocation2 + $0x230] sm:$0xff] %v1124
    %1381 = vst [vmem:[#allocation2 + $0x238] sm:$0xff] %v1125
    %1382 = vst [vmem:[#allocation2 + $0x240] sm:$0xff] %v1126
    %1383 = vst [vmem:[#allocation2 + $0x248] sm:$0xff] %v1127
    %1384 = vst [vmem:[#allocation2 + $0x250] sm:$0xff] %v1128
    %1385 = vst [vmem:[#allocation2 + $0x258] sm:$0xff] %v1129
    %1386 = vst [vmem:[#allocation2 + $0x260] sm:$0xff] %v1130
    %1387 = vst [vmem:[#allocation2 + $0x268] sm:$0xff] %v1131
    %1388 = vst [vmem:[#allocation2 + $0x270] sm:$0xff] %v1132
    %1389 = vst [vmem:[#allocation2 + $0x278] sm:$0xff] %v1133
    %1390 = vst [vmem:[#allocation2 + $0x280] sm:$0xff] %v1134
    %1391 = vst [vmem:[#allocation2 + $0x288] sm:$0xff] %v1135
    %1392 = vst [vmem:[#allocation2 + $0x290] sm:$0xff] %v1136
    %1393 = vst [vmem:[#allocation2 + $0x298] sm:$0xff] %v1137
    %1394 = vst [vmem:[#allocation2 + $0x2a0] sm:$0xff] %v1138
    %1395 = vst [vmem:[#allocation2 + $0x2a8] sm:$0xff] %v1139
    %1396 = vst [vmem:[#allocation2 + $0x2b0] sm:$0xff] %v1140
    %1397 = vst [vmem:[#allocation2 + $0x2b8] sm:$0xff] %v1141
    %1398 = vst [vmem:[#allocation2 + $0x2c0] sm:$0xff] %v1142
    %1399 = vst [vmem:[#allocation2 + $0x2c8] sm:$0xff] %v1143
    %1400 = vst [vmem:[#allocation2 + $0x2d0] sm:$0xff] %v1144
    %1401 = vst [vmem:[#allocation2 + $0x2d8] sm:$0xff] %v1145
    %1402 = vst [vmem:[#allocation2 + $0x2e0] sm:$0xff] %v1146
    %1403 = vst [vmem:[#allocation2 + $0x2e8] sm:$0xff] %v1147
    %1404 = vst [vmem:[#allocation2 + $0x2f0] sm:$0xff] %v1148
    %1405 = vst [vmem:[#allocation2 + $0x2f8] sm:$0xff] %v1149
    %1406 = vst [vmem:[#allocation2 + $0x300] sm:$0xff] %v1150
    %1407 = vst [vmem:[#allocation2 + $0x308] sm:$0xff] %v1151
    %1408 = vst [vmem:[#allocation2 + $0x310] sm:$0xff] %v1152
    %1409 = vst [vmem:[#allocation2 + $0x318] sm:$0xff] %v1153
    %1410 = vst [vmem:[#allocation2 + $0x320] sm:$0xff] %v1154
    %1411 = vst [vmem:[#allocation2 + $0x328] sm:$0xff] %v1155
    %1412 = vst [vmem:[#allocation2 + $0x330] sm:$0xff] %v1156
    %1413 = vst [vmem:[#allocation2 + $0x338] sm:$0xff] %v1157
    %1414 = vst [vmem:[#allocation2 + $0x340] sm:$0xff] %v1158
    %1415 = vst [vmem:[#allocation2 + $0x348] sm:$0xff] %v1159
    %1416 = vst [vmem:[#allocation2 + $0x350] sm:$0xff] %v1160
    %1417 = vst [vmem:[#allocation2 + $0x358] sm:$0xff] %v1161
    %1418 = vst [vmem:[#allocation2 + $0x360] sm:$0xff] %v1162
    %1419 = vst [vmem:[#allocation2 + $0x368] sm:$0xff] %v1163
    %1420 = vst [vmem:[#allocation2 + $0x370] sm:$0xff] %v1164
    %1421 = vst [vmem:[#allocation2 + $0x378] sm:$0xff] %v1165
    %1422 = vst [vmem:[#allocation2 + $0x380] sm:$0xff] %v1166
    %1423 = vst [vmem:[#allocation2 + $0x388] sm:$0xff] %v1167
    %1424 = vst [vmem:[#allocation2 + $0x390] sm:$0xff] %v1168
    %1425 = vst [vmem:[#allocation2 + $0x398] sm:$0xff] %v1169
    %1426 = vst [vmem:[#allocation2 + $0x3a0] sm:$0xff] %v1170
    %1427 = vst [vmem:[#allocation2 + $0x3a8] sm:$0xff] %v1171
    %1428 = vst [vmem:[#allocation2 + $0x3b0] sm:$0xff] %v1172
    %1429 = vst [vmem:[#allocation2 + $0x3b8] sm:$0xff] %v1173
    %1430 = vst [vmem:[#allocation2 + $0x3c0] sm:$0xff] %v1174
    %1431 = vst [vmem:[#allocation2 + $0x3c8] sm:$0xff] %v1175
    %1432 = vst [vmem:[#allocation2 + $0x3d0] sm:$0xff] %v1176
    %1433 = vst [vmem:[#allocation2 + $0x3d8] sm:$0xff] %v1177
    %1434 = vst [vmem:[#allocation2 + $0x3e0] sm:$0xff] %v1178
    %1435 = vst [vmem:[#allocation2 + $0x3e8] sm:$0xff] %v1179
    %1436 = vst [vmem:[#allocation2 + $0x3f0] sm:$0xff] %v1180
    %1437 = vst [vmem:[#allocation2 + $0x3f8] sm:$0xff] %v1181
    %1438 = vst [vmem:[#allocation2 + $0x400] sm:$0xff] %v1182
    %1439 = vst [vmem:[#allocation2 + $0x408] sm:$0xff] %v1183
    %1440 = vst [vmem:[#allocation2 + $0x410] sm:$0xff] %v1184
    %1441 = vst [vmem:[#allocation2 + $0x418] sm:$0xff] %v1185
    %1442 = vst [vmem:[#allocation2 + $0x420] sm:$0xff] %v1186
    %1443 = vst [vmem:[#allocation2 + $0x428] sm:$0xff] %v1187
    %1444 = vst [vmem:[#allocation2 + $0x430] sm:$0xff] %v1188
    %1445 = vst [vmem:[#allocation2 + $0x438] sm:$0xff] %v1189
    %1446 = vst [vmem:[#allocation2 + $0x440] sm:$0xff] %v1190
    %1447 = vst [vmem:[#allocation2 + $0x448] sm:$0xff] %v1191
    %1448 = vst [vmem:[#allocation2 + $0x450] sm:$0xff] %v1192
    %1449 = vst [vmem:[#allocation2 + $0x458] sm:$0xff] %v1193
    %1450 = vst [vmem:[#allocation2 + $0x460] sm:$0xff] %v1194
    %1451 = vst [vmem:[#allocation2 + $0x468] sm:$0xff] %v1195
    %1452 = vst [vmem:[#allocation2 + $0x470] sm:$0xff] %v1196
    %1453 = vst [vmem:[#allocation2 + $0x478] sm:$0xff] %v1197
    %1454 = vst [vmem:[#allocation2 + $0x480] sm:$0xff] %v1198
    %1455 = vst [vmem:[#allocation2 + $0x488] sm:$0xff] %v1199
    %1456 = vst [vmem:[#allocation2 + $0x490] sm:$0xff] %v1200
    %1457 = vst [vmem:[#allocation2 + $0x498] sm:$0xff] %v1201
    %1458 = vst [vmem:[#allocation2 + $0x4a0] sm:$0xff] %v1202
    %1459 = vst [vmem:[#allocation2 + $0x4a8] sm:$0xff] %v1203
    %1460 = vst [vmem:[#allocation2 + $0x4b0] sm:$0xff] %v1204
    %1461 = vst [vmem:[#allocation2 + $0x4b8] sm:$0xff] %v1205
    %1462 = vst [vmem:[#allocation2 + $0x4c0] sm:$0xff] %v1206
    %1463 = vst [vmem:[#allocation2 + $0x4c8] sm:$0xff] %v1207
    %1464 = vst [vmem:[#allocation2 + $0x4d0] sm:$0xff] %v1208
    %1465 = vst [vmem:[#allocation2 + $0x4d8] sm:$0xff] %v1209
    %1466 = vst [vmem:[#allocation2 + $0x4e0] sm:$0xff] %v1210
    %1467 = vst [vmem:[#allocation2 + $0x4e8] sm:$0xff] %v1211
    %1468 = vst [vmem:[#allocation2 + $0x4f0] sm:$0xff] %v1212
    %1469 = vst [vmem:[#allocation2 + $0x4f8] sm:$0xff] %v1213
    %1470 = vst [vmem:[#allocation2 + $0x500] sm:$0xff] %v1214
    %1471 = vst [vmem:[#allocation2 + $0x508] sm:$0xff] %v1215
    %1472 = vst [vmem:[#allocation2 + $0x510] sm:$0xff] %v1216
    %1473 = vst [vmem:[#allocation2 + $0x518] sm:$0xff] %v1217
    %1474 = vst [vmem:[#allocation2 + $0x520] sm:$0xff] %v1218
    %1475 = vst [vmem:[#allocation2 + $0x528] sm:$0xff] %v1219
    %1476 = vst [vmem:[#allocation2 + $0x530] sm:$0xff] %v1220
    %1477 = vst [vmem:[#allocation2 + $0x538] sm:$0xff] %v1221
    %1478 = vst [vmem:[#allocation2 + $0x540] sm:$0xff] %v1222
    %1479 = vst [vmem:[#allocation2 + $0x548] sm:$0xff] %v1223
    %1480 = vst [vmem:[#allocation2 + $0x550] sm:$0xff] %v1224
    %1481 = vst [vmem:[#allocation2 + $0x558] sm:$0xff] %v1225
    %1482 = vst [vmem:[#allocation2 + $0x560] sm:$0xff] %v1226
    %1483 = vst [vmem:[#allocation2 + $0x568] sm:$0xff] %v1227
    %1484 = vst [vmem:[#allocation2 + $0x570] sm:$0xff] %v1228
    %1485 = vst [vmem:[#allocation2 + $0x578] sm:$0xff] %v1229
    %1486 = vst [vmem:[#allocation2 + $0x580] sm:$0xff] %v1230
    %1487 = vst [vmem:[#allocation2 + $0x588] sm:$0xff] %v1231
    %1488 = vst [vmem:[#allocation2 + $0x590] sm:$0xff] %v1232
    %1489 = vst [vmem:[#allocation2 + $0x598] sm:$0xff] %v1233
    %1490 = vst [vmem:[#allocation2 + $0x5a0] sm:$0xff] %v1234
    %1491 = vst [vmem:[#allocation2 + $0x5a8] sm:$0xff] %v1235
    %1492 = vst [vmem:[#allocation2 + $0x5b0] sm:$0xff] %v1236
    %1493 = vst [vmem:[#allocation2 + $0x5b8] sm:$0xff] %v1237
    %1494 = vst [vmem:[#allocation2 + $0x5c0] sm:$0xff] %v1238
    %1495 = vst [vmem:[#allocation2 + $0x5c8] sm:$0xff] %v1239
    %1496 = vst [vmem:[#allocation2 + $0x5d0] sm:$0xff] %v1240
    %1497 = vst [vmem:[#allocation2 + $0x5d8] sm:$0xff] %v1241
    %1498 = vst [vmem:[#allocation2 + $0x5e0] sm:$0xff] %v1242
    %1499 = vst [vmem:[#allocation2 + $0x5e8] sm:$0xff] %v1243
    %1500 = vst [vmem:[#allocation2 + $0x5f0] sm:$0xff] %v1244
    %1501 = vst [vmem:[#allocation2 + $0x5f8] sm:$0xff] %v1245
    %1502 = vst [vmem:[#allocation2 + $0x600] sm:$0xff] %v1246
    %1503 = vst [vmem:[#allocation2 + $0x608] sm:$0xff] %v1247
    %1504 = vst [vmem:[#allocation2 + $0x610] sm:$0xff] %v1248
    %1505 = vst [vmem:[#allocation2 + $0x618] sm:$0xff] %v1249
    %1506 = vst [vmem:[#allocation2 + $0x620] sm:$0xff] %v1250
    %1507 = vst [vmem:[#allocation2 + $0x628] sm:$0xff] %v1251
    %1508 = vst [vmem:[#allocation2 + $0x630] sm:$0xff] %v1252
    %1509 = vst [vmem:[#allocation2 + $0x638] sm:$0xff] %v1253
    %1510 = vst [vmem:[#allocation2 + $0x640] sm:$0xff] %v1254
    %1511 = vst [vmem:[#allocation2 + $0x648] sm:$0xff] %v1255
    %1512 = vst [vmem:[#allocation2 + $0x650] sm:$0xff] %v1256
    %1513 = vst [vmem:[#allocation2 + $0x658] sm:$0xff] %v1257
    %1514 = vst [vmem:[#allocation2 + $0x660] sm:$0xff] %v1258
    %1515 = vst [vmem:[#allocation2 + $0x668] sm:$0xff] %v1259
    %1516 = vst [vmem:[#allocation2 + $0x670] sm:$0xff] %v1260
    %1517 = vst [vmem:[#allocation2 + $0x678] sm:$0xff] %v1261
    %1518 = vst [vmem:[#allocation2 + $0x680] sm:$0xff] %v1262
    %1519 = vst [vmem:[#allocation2 + $0x688] sm:$0xff] %v1263
    %1520 = vst [vmem:[#allocation2 + $0x690] sm:$0xff] %v1264
    %1521 = vst [vmem:[#allocation2 + $0x698] sm:$0xff] %v1265
    %1522 = vst [vmem:[#allocation2 + $0x6a0] sm:$0xff] %v1266
    %1523 = vst [vmem:[#allocation2 + $0x6a8] sm:$0xff] %v1267
    %1524 = vst [vmem:[#allocation2 + $0x6b0] sm:$0xff] %v1268
    %1525 = vst [vmem:[#allocation2 + $0x6b8] sm:$0xff] %v1269
    %1526 = vst [vmem:[#allocation2 + $0x6c0] sm:$0xff] %v1270
    %1527 = vst [vmem:[#allocation2 + $0x6c8] sm:$0xff] %v1271
    %1528 = vst [vmem:[#allocation2 + $0x6d0] sm:$0xff] %v1272
    %1529 = vst [vmem:[#allocation2 + $0x6d8] sm:$0xff] %v1273
    %1530 = vst [vmem:[#allocation2 + $0x6e0] sm:$0xff] %v1274
    %1531 = vst [vmem:[#allocation2 + $0x6e8] sm:$0xff] %v1275
    %1532 = vst [vmem:[#allocation2 + $0x6f0] sm:$0xff] %v1276
    %1533 = vst [vmem:[#allocation2 + $0x6f8] sm:$0xff] %v1277
    %1534 = vst [vmem:[#allocation2 + $0x700] sm:$0xff] %v1278
    %1535 = vst [vmem:[#allocation2 + $0x708] sm:$0xff] %v1279
    %1536 = vst [vmem:[#allocation2 + $0x710] sm:$0xff] %v1280
    %1537 = vst [vmem:[#allocation2 + $0x718] sm:$0xff] %v1281
    %1538 = vst [vmem:[#allocation2 + $0x720] sm:$0xff] %v1282
    %1539 = vst [vmem:[#allocation2 + $0x728] sm:$0xff] %v1283
    %1540 = vst [vmem:[#allocation2 + $0x730] sm:$0xff] %v1284
    %1541 = vst [vmem:[#allocation2 + $0x738] sm:$0xff] %v1285
    %1542 = vst [vmem:[#allocation2 + $0x740] sm:$0xff] %v1286
    %1543 = vst [vmem:[#allocation2 + $0x748] sm:$0xff] %v1287
    %1544 = vst [vmem:[#allocation2 + $0x750] sm:$0xff] %v1288
    %1545 = vst [vmem:[#allocation2 + $0x758] sm:$0xff] %v1289
    %1546 = vst [vmem:[#allocation2 + $0x760] sm:$0xff] %v1290
    %1547 = vst [vmem:[#allocation2 + $0x768] sm:$0xff] %v1291
    %1548 = vst [vmem:[#allocation2 + $0x770] sm:$0xff] %v1292
    %1549 = vst [vmem:[#allocation2 + $0x778] sm:$0xff] %v1293
    %1550 = vst [vmem:[#allocation2 + $0x780] sm:$0xff] %v1294
    %1551 = vst [vmem:[#allocation2 + $0x788] sm:$0xff] %v1295
    %1552 = vst [vmem:[#allocation2 + $0x790] sm:$0xff] %v1296
    %1553 = vst [vmem:[#allocation2 + $0x798] sm:$0xff] %v1297
    %1554 = vst [vmem:[#allocation2 + $0x7a0] sm:$0xff] %v1298
    %1555 = vst [vmem:[#allocation2 + $0x7a8] sm:$0xff] %v1299
    %1556 = vst [vmem:[#allocation2 + $0x7b0] sm:$0xff] %v1300
    %1557 = vst [vmem:[#allocation2 + $0x7b8] sm:$0xff] %v1301
    %1558 = vst [vmem:[#allocation2 + $0x7c0] sm:$0xff] %v1302
    %1559 = vst [vmem:[#allocation2 + $0x7c8] sm:$0xff] %v1303
    %1560 = vst [vmem:[#allocation2 + $0x7d0] sm:$0xff] %v1304
    %1561 = vst [vmem:[#allocation2 + $0x7d8] sm:$0xff] %v1305
    %1562 = vst [vmem:[#allocation2 + $0x7e0] sm:$0xff] %v1306
    %1563 = vst [vmem:[#allocation2 + $0x7e8] sm:$0xff] %v1307
    %1564 = vst [vmem:[#allocation2 + $0x7f0] sm:$0xff] %v1308
    %1565 = vst [vmem:[#allocation2 + $0x7f8] sm:$0xff] %v1309
    %v1566 = vld [vmem:[#allocation3] sm:$0xff]
    %v1567 = vld [vmem:[#allocation3 + $0x8] sm:$0xff]
    %v1568 = vld [vmem:[#allocation3 + $0x10] sm:$0xff]
    %v1569 = vld [vmem:[#allocation3 + $0x18] sm:$0xff]
    %v1570 = vld [vmem:[#allocation3 + $0x20] sm:$0xff]
    %v1571 = vld [vmem:[#allocation3 + $0x28] sm:$0xff]
    %v1572 = vld [vmem:[#allocation3 + $0x30] sm:$0xff]
    %v1573 = vld [vmem:[#allocation3 + $0x38] sm:$0xff]
    %v1574 = vld [vmem:[#allocation3 + $0x40] sm:$0xff]
    %v1575 = vld [vmem:[#allocation3 + $0x48] sm:$0xff]
    %v1576 = vld [vmem:[#allocation3 + $0x50] sm:$0xff]
    %v1577 = vld [vmem:[#allocation3 + $0x58] sm:$0xff]
    %v1578 = vld [vmem:[#allocation3 + $0x60] sm:$0xff]
    %v1579 = vld [vmem:[#allocation3 + $0x68] sm:$0xff]
    %v1580 = vld [vmem:[#allocation3 + $0x70] sm:$0xff]
    %v1581 = vld [vmem:[#allocation3 + $0x78] sm:$0xff]
    %v1582 = vld [vmem:[#allocation3 + $0x80] sm:$0xff]
    %v1583 = vld [vmem:[#allocation3 + $0x88] sm:$0xff]
    %v1584 = vld [vmem:[#allocation3 + $0x90] sm:$0xff]
    %v1585 = vld [vmem:[#allocation3 + $0x98] sm:$0xff]
    %v1586 = vld [vmem:[#allocation3 + $0xa0] sm:$0xff]
    %v1587 = vld [vmem:[#allocation3 + $0xa8] sm:$0xff]
    %v1588 = vld [vmem:[#allocation3 + $0xb0] sm:$0xff]
    %v1589 = vld [vmem:[#allocation3 + $0xb8] sm:$0xff]
    %v1590 = vld [vmem:[#allocation3 + $0xc0] sm:$0xff]
    %v1591 = vld [vmem:[#allocation3 + $0xc8] sm:$0xff]
    %v1592 = vld [vmem:[#allocation3 + $0xd0] sm:$0xff]
    %v1593 = vld [vmem:[#allocation3 + $0xd8] sm:$0xff]
    %v1594 = vld [vmem:[#allocation3 + $0xe0] sm:$0xff]
    %v1595 = vld [vmem:[#allocation3 + $0xe8] sm:$0xff]
    %v1596 = vld [vmem:[#allocation3 + $0xf0] sm:$0xff]
    %v1597 = vld [vmem:[#allocation3 + $0xf8] sm:$0xff]
    %v1598 = vld [vmem:[#allocation3 + $0x100] sm:$0xff]
    %v1599 = vld [vmem:[#allocation3 + $0x108] sm:$0xff]
    %v1600 = vld [vmem:[#allocation3 + $0x110] sm:$0xff]
    %v1601 = vld [vmem:[#allocation3 + $0x118] sm:$0xff]
    %v1602 = vld [vmem:[#allocation3 + $0x120] sm:$0xff]
    %v1603 = vld [vmem:[#allocation3 + $0x128] sm:$0xff]
    %v1604 = vld [vmem:[#allocation3 + $0x130] sm:$0xff]
    %v1605 = vld [vmem:[#allocation3 + $0x138] sm:$0xff]
    %v1606 = vld [vmem:[#allocation3 + $0x140] sm:$0xff]
    %v1607 = vld [vmem:[#allocation3 + $0x148] sm:$0xff]
    %v1608 = vld [vmem:[#allocation3 + $0x150] sm:$0xff]
    %v1609 = vld [vmem:[#allocation3 + $0x158] sm:$0xff]
    %v1610 = vld [vmem:[#allocation3 + $0x160] sm:$0xff]
    %v1611 = vld [vmem:[#allocation3 + $0x168] sm:$0xff]
    %v1612 = vld [vmem:[#allocation3 + $0x170] sm:$0xff]
    %v1613 = vld [vmem:[#allocation3 + $0x178] sm:$0xff]
    %v1614 = vld [vmem:[#allocation3 + $0x180] sm:$0xff]
    %v1615 = vld [vmem:[#allocation3 + $0x188] sm:$0xff]
    %v1616 = vld [vmem:[#allocation3 + $0x190] sm:$0xff]
    %v1617 = vld [vmem:[#allocation3 + $0x198] sm:$0xff]
    %v1618 = vld [vmem:[#allocation3 + $0x1a0] sm:$0xff]
    %v1619 = vld [vmem:[#allocation3 + $0x1a8] sm:$0xff]
    %v1620 = vld [vmem:[#allocation3 + $0x1b0] sm:$0xff]
    %v1621 = vld [vmem:[#allocation3 + $0x1b8] sm:$0xff]
    %v1622 = vld [vmem:[#allocation3 + $0x1c0] sm:$0xff]
    %v1623 = vld [vmem:[#allocation3 + $0x1c8] sm:$0xff]
    %v1624 = vld [vmem:[#allocation3 + $0x1d0] sm:$0xff]
    %v1625 = vld [vmem:[#allocation3 + $0x1d8] sm:$0xff]
    %v1626 = vld [vmem:[#allocation3 + $0x1e0] sm:$0xff]
    %v1627 = vld [vmem:[#allocation3 + $0x1e8] sm:$0xff]
    %v1628 = vld [vmem:[#allocation3 + $0x1f0] sm:$0xff]
    %v1629 = vld [vmem:[#allocation3 + $0x1f8] sm:$0xff]
    %v1630 = vld [vmem:[#allocation3 + $0x200] sm:$0xff]
    %v1631 = vld [vmem:[#allocation3 + $0x208] sm:$0xff]
    %v1632 = vld [vmem:[#allocation3 + $0x210] sm:$0xff]
    %v1633 = vld [vmem:[#allocation3 + $0x218] sm:$0xff]
    %v1634 = vld [vmem:[#allocation3 + $0x220] sm:$0xff]
    %v1635 = vld [vmem:[#allocation3 + $0x228] sm:$0xff]
    %v1636 = vld [vmem:[#allocation3 + $0x230] sm:$0xff]
    %v1637 = vld [vmem:[#allocation3 + $0x238] sm:$0xff]
    %v1638 = vld [vmem:[#allocation3 + $0x240] sm:$0xff]
    %v1639 = vld [vmem:[#allocation3 + $0x248] sm:$0xff]
    %v1640 = vld [vmem:[#allocation3 + $0x250] sm:$0xff]
    %v1641 = vld [vmem:[#allocation3 + $0x258] sm:$0xff]
    %v1642 = vld [vmem:[#allocation3 + $0x260] sm:$0xff]
    %v1643 = vld [vmem:[#allocation3 + $0x268] sm:$0xff]
    %v1644 = vld [vmem:[#allocation3 + $0x270] sm:$0xff]
    %v1645 = vld [vmem:[#allocation3 + $0x278] sm:$0xff]
    %v1646 = vld [vmem:[#allocation3 + $0x280] sm:$0xff]
    %v1647 = vld [vmem:[#allocation3 + $0x288] sm:$0xff]
    %v1648 = vld [vmem:[#allocation3 + $0x290] sm:$0xff]
    %v1649 = vld [vmem:[#allocation3 + $0x298] sm:$0xff]
    %v1650 = vld [vmem:[#allocation3 + $0x2a0] sm:$0xff]
    %v1651 = vld [vmem:[#allocation3 + $0x2a8] sm:$0xff]
    %v1652 = vld [vmem:[#allocation3 + $0x2b0] sm:$0xff]
    %v1653 = vld [vmem:[#allocation3 + $0x2b8] sm:$0xff]
    %v1654 = vld [vmem:[#allocation3 + $0x2c0] sm:$0xff]
    %v1655 = vld [vmem:[#allocation3 + $0x2c8] sm:$0xff]
    %v1656 = vld [vmem:[#allocation3 + $0x2d0] sm:$0xff]
    %v1657 = vld [vmem:[#allocation3 + $0x2d8] sm:$0xff]
    %v1658 = vld [vmem:[#allocation3 + $0x2e0] sm:$0xff]
    %v1659 = vld [vmem:[#allocation3 + $0x2e8] sm:$0xff]
    %v1660 = vld [vmem:[#allocation3 + $0x2f0] sm:$0xff]
    %v1661 = vld [vmem:[#allocation3 + $0x2f8] sm:$0xff]
    %v1662 = vld [vmem:[#allocation3 + $0x300] sm:$0xff]
    %v1663 = vld [vmem:[#allocation3 + $0x308] sm:$0xff]
    %v1664 = vld [vmem:[#allocation3 + $0x310] sm:$0xff]
    %v1665 = vld [vmem:[#allocation3 + $0x318] sm:$0xff]
    %v1666 = vld [vmem:[#allocation3 + $0x320] sm:$0xff]
    %v1667 = vld [vmem:[#allocation3 + $0x328] sm:$0xff]
    %v1668 = vld [vmem:[#allocation3 + $0x330] sm:$0xff]
    %v1669 = vld [vmem:[#allocation3 + $0x338] sm:$0xff]
    %v1670 = vld [vmem:[#allocation3 + $0x340] sm:$0xff]
    %v1671 = vld [vmem:[#allocation3 + $0x348] sm:$0xff]
    %v1672 = vld [vmem:[#allocation3 + $0x350] sm:$0xff]
    %v1673 = vld [vmem:[#allocation3 + $0x358] sm:$0xff]
    %v1674 = vld [vmem:[#allocation3 + $0x360] sm:$0xff]
    %v1675 = vld [vmem:[#allocation3 + $0x368] sm:$0xff]
    %v1676 = vld [vmem:[#allocation3 + $0x370] sm:$0xff]
    %v1677 = vld [vmem:[#allocation3 + $0x378] sm:$0xff]
    %v1678 = vld [vmem:[#allocation3 + $0x380] sm:$0xff]
    %v1679 = vld [vmem:[#allocation3 + $0x388] sm:$0xff]
    %v1680 = vld [vmem:[#allocation3 + $0x390] sm:$0xff]
    %v1681 = vld [vmem:[#allocation3 + $0x398] sm:$0xff]
    %v1682 = vld [vmem:[#allocation3 + $0x3a0] sm:$0xff]
    %v1683 = vld [vmem:[#allocation3 + $0x3a8] sm:$0xff]
    %v1684 = vld [vmem:[#allocation3 + $0x3b0] sm:$0xff]
    %v1685 = vld [vmem:[#allocation3 + $0x3b8] sm:$0xff]
    %v1686 = vld [vmem:[#allocation3 + $0x3c0] sm:$0xff]
    %v1687 = vld [vmem:[#allocation3 + $0x3c8] sm:$0xff]
    %v1688 = vld [vmem:[#allocation3 + $0x3d0] sm:$0xff]
    %v1689 = vld [vmem:[#allocation3 + $0x3d8] sm:$0xff]
    %v1690 = vld [vmem:[#allocation3 + $0x3e0] sm:$0xff]
    %v1691 = vld [vmem:[#allocation3 + $0x3e8] sm:$0xff]
    %v1692 = vld [vmem:[#allocation3 + $0x3f0] sm:$0xff]
    %v1693 = vld [vmem:[#allocation3 + $0x3f8] sm:$0xff]
    %v1694 = vld [vmem:[#allocation3 + $0x400] sm:$0xff]
    %v1695 = vld [vmem:[#allocation3 + $0x408] sm:$0xff]
    %v1696 = vld [vmem:[#allocation3 + $0x410] sm:$0xff]
    %v1697 = vld [vmem:[#allocation3 + $0x418] sm:$0xff]
    %v1698 = vld [vmem:[#allocation3 + $0x420] sm:$0xff]
    %v1699 = vld [vmem:[#allocation3 + $0x428] sm:$0xff]
    %v1700 = vld [vmem:[#allocation3 + $0x430] sm:$0xff]
    %v1701 = vld [vmem:[#allocation3 + $0x438] sm:$0xff]
    %v1702 = vld [vmem:[#allocation3 + $0x440] sm:$0xff]
    %v1703 = vld [vmem:[#allocation3 + $0x448] sm:$0xff]
    %v1704 = vld [vmem:[#allocation3 + $0x450] sm:$0xff]
    %v1705 = vld [vmem:[#allocation3 + $0x458] sm:$0xff]
    %v1706 = vld [vmem:[#allocation3 + $0x460] sm:$0xff]
    %v1707 = vld [vmem:[#allocation3 + $0x468] sm:$0xff]
    %v1708 = vld [vmem:[#allocation3 + $0x470] sm:$0xff]
    %v1709 = vld [vmem:[#allocation3 + $0x478] sm:$0xff]
    %v1710 = vld [vmem:[#allocation3 + $0x480] sm:$0xff]
    %v1711 = vld [vmem:[#allocation3 + $0x488] sm:$0xff]
    %v1712 = vld [vmem:[#allocation3 + $0x490] sm:$0xff]
    %v1713 = vld [vmem:[#allocation3 + $0x498] sm:$0xff]
    %v1714 = vld [vmem:[#allocation3 + $0x4a0] sm:$0xff]
    %v1715 = vld [vmem:[#allocation3 + $0x4a8] sm:$0xff]
    %v1716 = vld [vmem:[#allocation3 + $0x4b0] sm:$0xff]
    %v1717 = vld [vmem:[#allocation3 + $0x4b8] sm:$0xff]
    %v1718 = vld [vmem:[#allocation3 + $0x4c0] sm:$0xff]
    %v1719 = vld [vmem:[#allocation3 + $0x4c8] sm:$0xff]
    %v1720 = vld [vmem:[#allocation3 + $0x4d0] sm:$0xff]
    %v1721 = vld [vmem:[#allocation3 + $0x4d8] sm:$0xff]
    %v1722 = vld [vmem:[#allocation3 + $0x4e0] sm:$0xff]
    %v1723 = vld [vmem:[#allocation3 + $0x4e8] sm:$0xff]
    %v1724 = vld [vmem:[#allocation3 + $0x4f0] sm:$0xff]
    %v1725 = vld [vmem:[#allocation3 + $0x4f8] sm:$0xff]
    %v1726 = vld [vmem:[#allocation3 + $0x500] sm:$0xff]
    %v1727 = vld [vmem:[#allocation3 + $0x508] sm:$0xff]
    %v1728 = vld [vmem:[#allocation3 + $0x510] sm:$0xff]
    %v1729 = vld [vmem:[#allocation3 + $0x518] sm:$0xff]
    %v1730 = vld [vmem:[#allocation3 + $0x520] sm:$0xff]
    %v1731 = vld [vmem:[#allocation3 + $0x528] sm:$0xff]
    %v1732 = vld [vmem:[#allocation3 + $0x530] sm:$0xff]
    %v1733 = vld [vmem:[#allocation3 + $0x538] sm:$0xff]
    %v1734 = vld [vmem:[#allocation3 + $0x540] sm:$0xff]
    %v1735 = vld [vmem:[#allocation3 + $0x548] sm:$0xff]
    %v1736 = vld [vmem:[#allocation3 + $0x550] sm:$0xff]
    %v1737 = vld [vmem:[#allocation3 + $0x558] sm:$0xff]
    %v1738 = vld [vmem:[#allocation3 + $0x560] sm:$0xff]
    %v1739 = vld [vmem:[#allocation3 + $0x568] sm:$0xff]
    %v1740 = vld [vmem:[#allocation3 + $0x570] sm:$0xff]
    %v1741 = vld [vmem:[#allocation3 + $0x578] sm:$0xff]
    %v1742 = vld [vmem:[#allocation3 + $0x580] sm:$0xff]
    %v1743 = vld [vmem:[#allocation3 + $0x588] sm:$0xff]
    %v1744 = vld [vmem:[#allocation3 + $0x590] sm:$0xff]
    %v1745 = vld [vmem:[#allocation3 + $0x598] sm:$0xff]
    %v1746 = vld [vmem:[#allocation3 + $0x5a0] sm:$0xff]
    %v1747 = vld [vmem:[#allocation3 + $0x5a8] sm:$0xff]
    %v1748 = vld [vmem:[#allocation3 + $0x5b0] sm:$0xff]
    %v1749 = vld [vmem:[#allocation3 + $0x5b8] sm:$0xff]
    %v1750 = vld [vmem:[#allocation3 + $0x5c0] sm:$0xff]
    %v1751 = vld [vmem:[#allocation3 + $0x5c8] sm:$0xff]
    %v1752 = vld [vmem:[#allocation3 + $0x5d0] sm:$0xff]
    %v1753 = vld [vmem:[#allocation3 + $0x5d8] sm:$0xff]
    %v1754 = vld [vmem:[#allocation3 + $0x5e0] sm:$0xff]
    %v1755 = vld [vmem:[#allocation3 + $0x5e8] sm:$0xff]
    %v1756 = vld [vmem:[#allocation3 + $0x5f0] sm:$0xff]
    %v1757 = vld [vmem:[#allocation3 + $0x5f8] sm:$0xff]
    %v1758 = vld [vmem:[#allocation3 + $0x600] sm:$0xff]
    %v1759 = vld [vmem:[#allocation3 + $0x608] sm:$0xff]
    %v1760 = vld [vmem:[#allocation3 + $0x610] sm:$0xff]
    %v1761 = vld [vmem:[#allocation3 + $0x618] sm:$0xff]
    %v1762 = vld [vmem:[#allocation3 + $0x620] sm:$0xff]
    %v1763 = vld [vmem:[#allocation3 + $0x628] sm:$0xff]
    %v1764 = vld [vmem:[#allocation3 + $0x630] sm:$0xff]
    %v1765 = vld [vmem:[#allocation3 + $0x638] sm:$0xff]
    %v1766 = vld [vmem:[#allocation3 + $0x640] sm:$0xff]
    %v1767 = vld [vmem:[#allocation3 + $0x648] sm:$0xff]
    %v1768 = vld [vmem:[#allocation3 + $0x650] sm:$0xff]
    %v1769 = vld [vmem:[#allocation3 + $0x658] sm:$0xff]
    %v1770 = vld [vmem:[#allocation3 + $0x660] sm:$0xff]
    %v1771 = vld [vmem:[#allocation3 + $0x668] sm:$0xff]
    %v1772 = vld [vmem:[#allocation3 + $0x670] sm:$0xff]
    %v1773 = vld [vmem:[#allocation3 + $0x678] sm:$0xff]
    %v1774 = vld [vmem:[#allocation3 + $0x680] sm:$0xff]
    %v1775 = vld [vmem:[#allocation3 + $0x688] sm:$0xff]
    %v1776 = vld [vmem:[#allocation3 + $0x690] sm:$0xff]
    %v1777 = vld [vmem:[#allocation3 + $0x698] sm:$0xff]
    %v1778 = vld [vmem:[#allocation3 + $0x6a0] sm:$0xff]
    %v1779 = vld [vmem:[#allocation3 + $0x6a8] sm:$0xff]
    %v1780 = vld [vmem:[#allocation3 + $0x6b0] sm:$0xff]
    %v1781 = vld [vmem:[#allocation3 + $0x6b8] sm:$0xff]
    %v1782 = vld [vmem:[#allocation3 + $0x6c0] sm:$0xff]
    %v1783 = vld [vmem:[#allocation3 + $0x6c8] sm:$0xff]
    %v1784 = vld [vmem:[#allocation3 + $0x6d0] sm:$0xff]
    %v1785 = vld [vmem:[#allocation3 + $0x6d8] sm:$0xff]
    %v1786 = vld [vmem:[#allocation3 + $0x6e0] sm:$0xff]
    %v1787 = vld [vmem:[#allocation3 + $0x6e8] sm:$0xff]
    %v1788 = vld [vmem:[#allocation3 + $0x6f0] sm:$0xff]
    %v1789 = vld [vmem:[#allocation3 + $0x6f8] sm:$0xff]
    %v1790 = vld [vmem:[#allocation3 + $0x700] sm:$0xff]
    %v1791 = vld [vmem:[#allocation3 + $0x708] sm:$0xff]
    %v1792 = vld [vmem:[#allocation3 + $0x710] sm:$0xff]
    %v1793 = vld [vmem:[#allocation3 + $0x718] sm:$0xff]
    %v1794 = vld [vmem:[#allocation3 + $0x720] sm:$0xff]
    %v1795 = vld [vmem:[#allocation3 + $0x728] sm:$0xff]
    %v1796 = vld [vmem:[#allocation3 + $0x730] sm:$0xff]
    %v1797 = vld [vmem:[#allocation3 + $0x738] sm:$0xff]
    %v1798 = vld [vmem:[#allocation3 + $0x740] sm:$0xff]
    %v1799 = vld [vmem:[#allocation3 + $0x748] sm:$0xff]
    %v1800 = vld [vmem:[#allocation3 + $0x750] sm:$0xff]
    %v1801 = vld [vmem:[#allocation3 + $0x758] sm:$0xff]
    %v1802 = vld [vmem:[#allocation3 + $0x760] sm:$0xff]
    %v1803 = vld [vmem:[#allocation3 + $0x768] sm:$0xff]
    %v1804 = vld [vmem:[#allocation3 + $0x770] sm:$0xff]
    %v1805 = vld [vmem:[#allocation3 + $0x778] sm:$0xff]
    %v1806 = vld [vmem:[#allocation3 + $0x780] sm:$0xff]
    %v1807 = vld [vmem:[#allocation3 + $0x788] sm:$0xff]
    %v1808 = vld [vmem:[#allocation3 + $0x790] sm:$0xff]
    %v1809 = vld [vmem:[#allocation3 + $0x798] sm:$0xff]
    %v1810 = vld [vmem:[#allocation3 + $0x7a0] sm:$0xff]
    %v1811 = vld [vmem:[#allocation3 + $0x7a8] sm:$0xff]
    %v1812 = vld [vmem:[#allocation3 + $0x7b0] sm:$0xff]
    %v1813 = vld [vmem:[#allocation3 + $0x7b8] sm:$0xff]
    %v1814 = vld [vmem:[#allocation3 + $0x7c0] sm:$0xff]
    %v1815 = vld [vmem:[#allocation3 + $0x7c8] sm:$0xff]
    %v1816 = vld [vmem:[#allocation3 + $0x7d0] sm:$0xff]
    %v1817 = vld [vmem:[#allocation3 + $0x7d8] sm:$0xff]
    %v1818 = vld [vmem:[#allocation3 + $0x7e0] sm:$0xff]
    %v1819 = vld [vmem:[#allocation3 + $0x7e8] sm:$0xff]
    %v1820 = vld [vmem:[#allocation3 + $0x7f0] sm:$0xff]
    %v1821 = vld [vmem:[#allocation3 + $0x7f8] sm:$0xff]
    %v1822 = vmul.f32 %v542, %v542
    %v1823 = vmul.f32 %v543, %v543
    %v1824 = vmul.f32 %v544, %v544
    %v1825 = vmul.f32 %v545, %v545
    %v1826 = vmul.f32 %v546, %v546
    %v1827 = vmul.f32 %v547, %v547
    %v1828 = vmul.f32 %v548, %v548
    %v1829 = vmul.f32 %v549, %v549
    %v1830 = vmul.f32 %v550, %v550
    %v1831 = vmul.f32 %v551, %v551
    %v1832 = vmul.f32 %v552, %v552
    %v1833 = vmul.f32 %v553, %v553
    %v1834 = vmul.f32 %v554, %v554
    %v1835 = vmul.f32 %v555, %v555
    %v1836 = vmul.f32 %v556, %v556
    %v1837 = vmul.f32 %v557, %v557
    %v1838 = vmul.f32 %v558, %v558
    %v1839 = vmul.f32 %v559, %v559
    %v1840 = vmul.f32 %v560, %v560
    %v1841 = vmul.f32 %v561, %v561
    %v1842 = vmul.f32 %v562, %v562
    %v1843 = vmul.f32 %v563, %v563
    %v1844 = vmul.f32 %v564, %v564
    %v1845 = vmul.f32 %v565, %v565
    %v1846 = vmul.f32 %v566, %v566
    %v1847 = vmul.f32 %v567, %v567
    %v1848 = vmul.f32 %v568, %v568
    %v1849 = vmul.f32 %v569, %v569
    %v1850 = vmul.f32 %v570, %v570
    %v1851 = vmul.f32 %v571, %v571
    %v1852 = vmul.f32 %v572, %v572
    %v1853 = vmul.f32 %v573, %v573
    %v1854 = vmul.f32 %v574, %v574
    %v1855 = vmul.f32 %v575, %v575
    %v1856 = vmul.f32 %v576, %v576
    %v1857 = vmul.f32 %v577, %v577
    %v1858 = vmul.f32 %v578, %v578
    %v1859 = vmul.f32 %v579, %v579
    %v1860 = vmul.f32 %v580, %v580
    %v1861 = vmul.f32 %v581, %v581
    %v1862 = vmul.f32 %v582, %v582
    %v1863 = vmul.f32 %v583, %v583
    %v1864 = vmul.f32 %v584, %v584
    %v1865 = vmul.f32 %v585, %v585
    %v1866 = vmul.f32 %v586, %v586
    %v1867 = vmul.f32 %v587, %v587
    %v1868 = vmul.f32 %v588, %v588
    %v1869 = vmul.f32 %v589, %v589
    %v1870 = vmul.f32 %v590, %v590
    %v1871 = vmul.f32 %v591, %v591
    %v1872 = vmul.f32 %v592, %v592
    %v1873 = vmul.f32 %v593, %v593
    %v1874 = vmul.f32 %v594, %v594
    %v1875 = vmul.f32 %v595, %v595
    %v1876 = vmul.f32 %v596, %v596
    %v1877 = vmul.f32 %v597, %v597
    %v1878 = vmul.f32 %v598, %v598
    %v1879 = vmul.f32 %v599, %v599
    %v1880 = vmul.f32 %v600, %v600
    %v1881 = vmul.f32 %v601, %v601
    %v1882 = vmul.f32 %v602, %v602
    %v1883 = vmul.f32 %v603, %v603
    %v1884 = vmul.f32 %v604, %v604
    %v1885 = vmul.f32 %v605, %v605
    %v1886 = vmul.f32 %v606, %v606
    %v1887 = vmul.f32 %v607, %v607
    %v1888 = vmul.f32 %v608, %v608
    %v1889 = vmul.f32 %v609, %v609
    %v1890 = vmul.f32 %v610, %v610
    %v1891 = vmul.f32 %v611, %v611
    %v1892 = vmul.f32 %v612, %v612
    %v1893 = vmul.f32 %v613, %v613
    %v1894 = vmul.f32 %v614, %v614
    %v1895 = vmul.f32 %v615, %v615
    %v1896 = vmul.f32 %v616, %v616
    %v1897 = vmul.f32 %v617, %v617
    %v1898 = vmul.f32 %v618, %v618
    %v1899 = vmul.f32 %v619, %v619
    %v1900 = vmul.f32 %v620, %v620
    %v1901 = vmul.f32 %v621, %v621
    %v1902 = vmul.f32 %v622, %v622
    %v1903 = vmul.f32 %v623, %v623
    %v1904 = vmul.f32 %v624, %v624
    %v1905 = vmul.f32 %v625, %v625
    %v1906 = vmul.f32 %v626, %v626
    %v1907 = vmul.f32 %v627, %v627
    %v1908 = vmul.f32 %v628, %v628
    %v1909 = vmul.f32 %v629, %v629
    %v1910 = vmul.f32 %v630, %v630
    %v1911 = vmul.f32 %v631, %v631
    %v1912 = vmul.f32 %v632, %v632
    %v1913 = vmul.f32 %v633, %v633
    %v1914 = vmul.f32 %v634, %v634
    %v1915 = vmul.f32 %v635, %v635
    %v1916 = vmul.f32 %v636, %v636
    %v1917 = vmul.f32 %v637, %v637
    %v1918 = vmul.f32 %v638, %v638
    %v1919 = vmul.f32 %v639, %v639
    %v1920 = vmul.f32 %v640, %v640
    %v1921 = vmul.f32 %v641, %v641
    %v1922 = vmul.f32 %v642, %v642
    %v1923 = vmul.f32 %v643, %v643
    %v1924 = vmul.f32 %v644, %v644
    %v1925 = vmul.f32 %v645, %v645
    %v1926 = vmul.f32 %v646, %v646
    %v1927 = vmul.f32 %v647, %v647
    %v1928 = vmul.f32 %v648, %v648
    %v1929 = vmul.f32 %v649, %v649
    %v1930 = vmul.f32 %v650, %v650
    %v1931 = vmul.f32 %v651, %v651
    %v1932 = vmul.f32 %v652, %v652
    %v1933 = vmul.f32 %v653, %v653
    %v1934 = vmul.f32 %v654, %v654
    %v1935 = vmul.f32 %v655, %v655
    %v1936 = vmul.f32 %v656, %v656
    %v1937 = vmul.f32 %v657, %v657
    %v1938 = vmul.f32 %v658, %v658
    %v1939 = vmul.f32 %v659, %v659
    %v1940 = vmul.f32 %v660, %v660
    %v1941 = vmul.f32 %v661, %v661
    %v1942 = vmul.f32 %v662, %v662
    %v1943 = vmul.f32 %v663, %v663
    %v1944 = vmul.f32 %v664, %v664
    %v1945 = vmul.f32 %v665, %v665
    %v1946 = vmul.f32 %v666, %v666
    %v1947 = vmul.f32 %v667, %v667
    %v1948 = vmul.f32 %v668, %v668
    %v1949 = vmul.f32 %v669, %v669
    %v1950 = vmul.f32 %v670, %v670
    %v1951 = vmul.f32 %v671, %v671
    %v1952 = vmul.f32 %v672, %v672
    %v1953 = vmul.f32 %v673, %v673
    %v1954 = vmul.f32 %v674, %v674
    %v1955 = vmul.f32 %v675, %v675
    %v1956 = vmul.f32 %v676, %v676
    %v1957 = vmul.f32 %v677, %v677
    %v1958 = vmul.f32 %v678, %v678
    %v1959 = vmul.f32 %v679, %v679
    %v1960 = vmul.f32 %v680, %v680
    %v1961 = vmul.f32 %v681, %v681
    %v1962 = vmul.f32 %v682, %v682
    %v1963 = vmul.f32 %v683, %v683
    %v1964 = vmul.f32 %v684, %v684
    %v1965 = vmul.f32 %v685, %v685
    %v1966 = vmul.f32 %v686, %v686
    %v1967 = vmul.f32 %v687, %v687
    %v1968 = vmul.f32 %v688, %v688
    %v1969 = vmul.f32 %v689, %v689
    %v1970 = vmul.f32 %v690, %v690
    %v1971 = vmul.f32 %v691, %v691
    %v1972 = vmul.f32 %v692, %v692
    %v1973 = vmul.f32 %v693, %v693
    %v1974 = vmul.f32 %v694, %v694
    %v1975 = vmul.f32 %v695, %v695
    %v1976 = vmul.f32 %v696, %v696
    %v1977 = vmul.f32 %v697, %v697
    %v1978 = vmul.f32 %v698, %v698
    %v1979 = vmul.f32 %v699, %v699
    %v1980 = vmul.f32 %v700, %v700
    %v1981 = vmul.f32 %v701, %v701
    %v1982 = vmul.f32 %v702, %v702
    %v1983 = vmul.f32 %v703, %v703
    %v1984 = vmul.f32 %v704, %v704
    %v1985 = vmul.f32 %v705, %v705
    %v1986 = vmul.f32 %v706, %v706
    %v1987 = vmul.f32 %v707, %v707
    %v1988 = vmul.f32 %v708, %v708
    %v1989 = vmul.f32 %v709, %v709
    %v1990 = vmul.f32 %v710, %v710
    %v1991 = vmul.f32 %v711, %v711
    %v1992 = vmul.f32 %v712, %v712
    %v1993 = vmul.f32 %v713, %v713
    %v1994 = vmul.f32 %v714, %v714
    %v1995 = vmul.f32 %v715, %v715
    %v1996 = vmul.f32 %v716, %v716
    %v1997 = vmul.f32 %v717, %v717
    %v1998 = vmul.f32 %v718, %v718
    %v1999 = vmul.f32 %v719, %v719
    %v2000 = vmul.f32 %v720, %v720
    %v2001 = vmul.f32 %v721, %v721
    %v2002 = vmul.f32 %v722, %v722
    %v2003 = vmul.f32 %v723, %v723
    %v2004 = vmul.f32 %v724, %v724
    %v2005 = vmul.f32 %v725, %v725
    %v2006 = vmul.f32 %v726, %v726
    %v2007 = vmul.f32 %v727, %v727
    %v2008 = vmul.f32 %v728, %v728
    %v2009 = vmul.f32 %v729, %v729
    %v2010 = vmul.f32 %v730, %v730
    %v2011 = vmul.f32 %v731, %v731
    %v2012 = vmul.f32 %v732, %v732
    %v2013 = vmul.f32 %v733, %v733
    %v2014 = vmul.f32 %v734, %v734
    %v2015 = vmul.f32 %v735, %v735
    %v2016 = vmul.f32 %v736, %v736
    %v2017 = vmul.f32 %v737, %v737
    %v2018 = vmul.f32 %v738, %v738
    %v2019 = vmul.f32 %v739, %v739
    %v2020 = vmul.f32 %v740, %v740
    %v2021 = vmul.f32 %v741, %v741
    %v2022 = vmul.f32 %v742, %v742
    %v2023 = vmul.f32 %v743, %v743
    %v2024 = vmul.f32 %v744, %v744
    %v2025 = vmul.f32 %v745, %v745
    %v2026 = vmul.f32 %v746, %v746
    %v2027 = vmul.f32 %v747, %v747
    %v2028 = vmul.f32 %v748, %v748
    %v2029 = vmul.f32 %v749, %v749
    %v2030 = vmul.f32 %v750, %v750
    %v2031 = vmul.f32 %v751, %v751
    %v2032 = vmul.f32 %v752, %v752
    %v2033 = vmul.f32 %v753, %v753
    %v2034 = vmul.f32 %v754, %v754
    %v2035 = vmul.f32 %v755, %v755
    %v2036 = vmul.f32 %v756, %v756
    %v2037 = vmul.f32 %v757, %v757
    %v2038 = vmul.f32 %v758, %v758
    %v2039 = vmul.f32 %v759, %v759
    %v2040 = vmul.f32 %v760, %v760
    %v2041 = vmul.f32 %v761, %v761
    %v2042 = vmul.f32 %v762, %v762
    %v2043 = vmul.f32 %v763, %v763
    %v2044 = vmul.f32 %v764, %v764
    %v2045 = vmul.f32 %v765, %v765
    %v2046 = vmul.f32 %v766, %v766
    %v2047 = vmul.f32 %v767, %v767
    %v2048 = vmul.f32 %v768, %v768
    %v2049 = vmul.f32 %v769, %v769
    %v2050 = vmul.f32 %v770, %v770
    %v2051 = vmul.f32 %v771, %v771
    %v2052 = vmul.f32 %v772, %v772
    %v2053 = vmul.f32 %v773, %v773
    %v2054 = vmul.f32 %v774, %v774
    %v2055 = vmul.f32 %v775, %v775
    %v2056 = vmul.f32 %v776, %v776
    %v2057 = vmul.f32 %v777, %v777
    %v2058 = vmul.f32 %v778, %v778
    %v2059 = vmul.f32 %v779, %v779
    %v2060 = vmul.f32 %v780, %v780
    %v2061 = vmul.f32 %v781, %v781
    %v2062 = vmul.f32 %v782, %v782
    %v2063 = vmul.f32 %v783, %v783
    %v2064 = vmul.f32 %v784, %v784
    %v2065 = vmul.f32 %v785, %v785
    %v2066 = vmul.f32 %v786, %v786
    %v2067 = vmul.f32 %v787, %v787
    %v2068 = vmul.f32 %v788, %v788
    %v2069 = vmul.f32 %v789, %v789
    %v2070 = vmul.f32 %v790, %v790
    %v2071 = vmul.f32 %v791, %v791
    %v2072 = vmul.f32 %v792, %v792
    %v2073 = vmul.f32 %v793, %v793
    %v2074 = vmul.f32 %v794, %v794
    %v2075 = vmul.f32 %v795, %v795
    %v2076 = vmul.f32 %v796, %v796
    %v2077 = vmul.f32 %v797, %v797
    %v2078 = vadd.f32 %v1566, %v1822
    %v2079 = vadd.f32 %v1567, %v1823
    %v2080 = vadd.f32 %v1568, %v1824
    %v2081 = vadd.f32 %v1569, %v1825
    %v2082 = vadd.f32 %v1570, %v1826
    %v2083 = vadd.f32 %v1571, %v1827
    %v2084 = vadd.f32 %v1572, %v1828
    %v2085 = vadd.f32 %v1573, %v1829
    %v2086 = vadd.f32 %v1574, %v1830
    %v2087 = vadd.f32 %v1575, %v1831
    %v2088 = vadd.f32 %v1576, %v1832
    %v2089 = vadd.f32 %v1577, %v1833
    %v2090 = vadd.f32 %v1578, %v1834
    %v2091 = vadd.f32 %v1579, %v1835
    %v2092 = vadd.f32 %v1580, %v1836
    %v2093 = vadd.f32 %v1581, %v1837
    %v2094 = vadd.f32 %v1582, %v1838
    %v2095 = vadd.f32 %v1583, %v1839
    %v2096 = vadd.f32 %v1584, %v1840
    %v2097 = vadd.f32 %v1585, %v1841
    %v2098 = vadd.f32 %v1586, %v1842
    %v2099 = vadd.f32 %v1587, %v1843
    %v2100 = vadd.f32 %v1588, %v1844
    %v2101 = vadd.f32 %v1589, %v1845
    %v2102 = vadd.f32 %v1590, %v1846
    %v2103 = vadd.f32 %v1591, %v1847
    %v2104 = vadd.f32 %v1592, %v1848
    %v2105 = vadd.f32 %v1593, %v1849
    %v2106 = vadd.f32 %v1594, %v1850
    %v2107 = vadd.f32 %v1595, %v1851
    %v2108 = vadd.f32 %v1596, %v1852
    %v2109 = vadd.f32 %v1597, %v1853
    %v2110 = vadd.f32 %v1598, %v1854
    %v2111 = vadd.f32 %v1599, %v1855
    %v2112 = vadd.f32 %v1600, %v1856
    %v2113 = vadd.f32 %v1601, %v1857
    %v2114 = vadd.f32 %v1602, %v1858
    %v2115 = vadd.f32 %v1603, %v1859
    %v2116 = vadd.f32 %v1604, %v1860
    %v2117 = vadd.f32 %v1605, %v1861
    %v2118 = vadd.f32 %v1606, %v1862
    %v2119 = vadd.f32 %v1607, %v1863
    %v2120 = vadd.f32 %v1608, %v1864
    %v2121 = vadd.f32 %v1609, %v1865
    %v2122 = vadd.f32 %v1610, %v1866
    %v2123 = vadd.f32 %v1611, %v1867
    %v2124 = vadd.f32 %v1612, %v1868
    %v2125 = vadd.f32 %v1613, %v1869
    %v2126 = vadd.f32 %v1614, %v1870
    %v2127 = vadd.f32 %v1615, %v1871
    %v2128 = vadd.f32 %v1616, %v1872
    %v2129 = vadd.f32 %v1617, %v1873
    %v2130 = vadd.f32 %v1618, %v1874
    %v2131 = vadd.f32 %v1619, %v1875
    %v2132 = vadd.f32 %v1620, %v1876
    %v2133 = vadd.f32 %v1621, %v1877
    %v2134 = vadd.f32 %v1622, %v1878
    %v2135 = vadd.f32 %v1623, %v1879
    %v2136 = vadd.f32 %v1624, %v1880
    %v2137 = vadd.f32 %v1625, %v1881
    %v2138 = vadd.f32 %v1626, %v1882
    %v2139 = vadd.f32 %v1627, %v1883
    %v2140 = vadd.f32 %v1628, %v1884
    %v2141 = vadd.f32 %v1629, %v1885
    %v2142 = vadd.f32 %v1630, %v1886
    %v2143 = vadd.f32 %v1631, %v1887
    %v2144 = vadd.f32 %v1632, %v1888
    %v2145 = vadd.f32 %v1633, %v1889
    %v2146 = vadd.f32 %v1634, %v1890
    %v2147 = vadd.f32 %v1635, %v1891
    %v2148 = vadd.f32 %v1636, %v1892
    %v2149 = vadd.f32 %v1637, %v1893
    %v2150 = vadd.f32 %v1638, %v1894
    %v2151 = vadd.f32 %v1639, %v1895
    %v2152 = vadd.f32 %v1640, %v1896
    %v2153 = vadd.f32 %v1641, %v1897
    %v2154 = vadd.f32 %v1642, %v1898
    %v2155 = vadd.f32 %v1643, %v1899
    %v2156 = vadd.f32 %v1644, %v1900
    %v2157 = vadd.f32 %v1645, %v1901
    %v2158 = vadd.f32 %v1646, %v1902
    %v2159 = vadd.f32 %v1647, %v1903
    %v2160 = vadd.f32 %v1648, %v1904
    %v2161 = vadd.f32 %v1649, %v1905
    %v2162 = vadd.f32 %v1650, %v1906
    %v2163 = vadd.f32 %v1651, %v1907
    %v2164 = vadd.f32 %v1652, %v1908
    %v2165 = vadd.f32 %v1653, %v1909
    %v2166 = vadd.f32 %v1654, %v1910
    %v2167 = vadd.f32 %v1655, %v1911
    %v2168 = vadd.f32 %v1656, %v1912
    %v2169 = vadd.f32 %v1657, %v1913
    %v2170 = vadd.f32 %v1658, %v1914
    %v2171 = vadd.f32 %v1659, %v1915
    %v2172 = vadd.f32 %v1660, %v1916
    %v2173 = vadd.f32 %v1661, %v1917
    %v2174 = vadd.f32 %v1662, %v1918
    %v2175 = vadd.f32 %v1663, %v1919
    %v2176 = vadd.f32 %v1664, %v1920
    %v2177 = vadd.f32 %v1665, %v1921
    %v2178 = vadd.f32 %v1666, %v1922
    %v2179 = vadd.f32 %v1667, %v1923
    %v2180 = vadd.f32 %v1668, %v1924
    %v2181 = vadd.f32 %v1669, %v1925
    %v2182 = vadd.f32 %v1670, %v1926
    %v2183 = vadd.f32 %v1671, %v1927
    %v2184 = vadd.f32 %v1672, %v1928
    %v2185 = vadd.f32 %v1673, %v1929
    %v2186 = vadd.f32 %v1674, %v1930
    %v2187 = vadd.f32 %v1675, %v1931
    %v2188 = vadd.f32 %v1676, %v1932
    %v2189 = vadd.f32 %v1677, %v1933
    %v2190 = vadd.f32 %v1678, %v1934
    %v2191 = vadd.f32 %v1679, %v1935
    %v2192 = vadd.f32 %v1680, %v1936
    %v2193 = vadd.f32 %v1681, %v1937
    %v2194 = vadd.f32 %v1682, %v1938
    %v2195 = vadd.f32 %v1683, %v1939
    %v2196 = vadd.f32 %v1684, %v1940
    %v2197 = vadd.f32 %v1685, %v1941
    %v2198 = vadd.f32 %v1686, %v1942
    %v2199 = vadd.f32 %v1687, %v1943
    %v2200 = vadd.f32 %v1688, %v1944
    %v2201 = vadd.f32 %v1689, %v1945
    %v2202 = vadd.f32 %v1690, %v1946
    %v2203 = vadd.f32 %v1691, %v1947
    %v2204 = vadd.f32 %v1692, %v1948
    %v2205 = vadd.f32 %v1693, %v1949
    %v2206 = vadd.f32 %v1694, %v1950
    %v2207 = vadd.f32 %v1695, %v1951
    %v2208 = vadd.f32 %v1696, %v1952
    %v2209 = vadd.f32 %v1697, %v1953
    %v2210 = vadd.f32 %v1698, %v1954
    %v2211 = vadd.f32 %v1699, %v1955
    %v2212 = vadd.f32 %v1700, %v1956
    %v2213 = vadd.f32 %v1701, %v1957
    %v2214 = vadd.f32 %v1702, %v1958
    %v2215 = vadd.f32 %v1703, %v1959
    %v2216 = vadd.f32 %v1704, %v1960
    %v2217 = vadd.f32 %v1705, %v1961
    %v2218 = vadd.f32 %v1706, %v1962
    %v2219 = vadd.f32 %v1707, %v1963
    %v2220 = vadd.f32 %v1708, %v1964
    %v2221 = vadd.f32 %v1709, %v1965
    %v2222 = vadd.f32 %v1710, %v1966
    %v2223 = vadd.f32 %v1711, %v1967
    %v2224 = vadd.f32 %v1712, %v1968
    %v2225 = vadd.f32 %v1713, %v1969
    %v2226 = vadd.f32 %v1714, %v1970
    %v2227 = vadd.f32 %v1715, %v1971
    %v2228 = vadd.f32 %v1716, %v1972
    %v2229 = vadd.f32 %v1717, %v1973
    %v2230 = vadd.f32 %v1718, %v1974
    %v2231 = vadd.f32 %v1719, %v1975
    %v2232 = vadd.f32 %v1720, %v1976
    %v2233 = vadd.f32 %v1721, %v1977
    %v2234 = vadd.f32 %v1722, %v1978
    %v2235 = vadd.f32 %v1723, %v1979
    %v2236 = vadd.f32 %v1724, %v1980
    %v2237 = vadd.f32 %v1725, %v1981
    %v2238 = vadd.f32 %v1726, %v1982
    %v2239 = vadd.f32 %v1727, %v1983
    %v2240 = vadd.f32 %v1728, %v1984
    %v2241 = vadd.f32 %v1729, %v1985
    %v2242 = vadd.f32 %v1730, %v1986
    %v2243 = vadd.f32 %v1731, %v1987
    %v2244 = vadd.f32 %v1732, %v1988
    %v2245 = vadd.f32 %v1733, %v1989
    %v2246 = vadd.f32 %v1734, %v1990
    %v2247 = vadd.f32 %v1735, %v1991
    %v2248 = vadd.f32 %v1736, %v1992
    %v2249 = vadd.f32 %v1737, %v1993
    %v2250 = vadd.f32 %v1738, %v1994
    %v2251 = vadd.f32 %v1739, %v1995
    %v2252 = vadd.f32 %v1740, %v1996
    %v2253 = vadd.f32 %v1741, %v1997
    %v2254 = vadd.f32 %v1742, %v1998
    %v2255 = vadd.f32 %v1743, %v1999
    %v2256 = vadd.f32 %v1744, %v2000
    %v2257 = vadd.f32 %v1745, %v2001
    %v2258 = vadd.f32 %v1746, %v2002
    %v2259 = vadd.f32 %v1747, %v2003
    %v2260 = vadd.f32 %v1748, %v2004
    %v2261 = vadd.f32 %v1749, %v2005
    %v2262 = vadd.f32 %v1750, %v2006
    %v2263 = vadd.f32 %v1751, %v2007
    %v2264 = vadd.f32 %v1752, %v2008
    %v2265 = vadd.f32 %v1753, %v2009
    %v2266 = vadd.f32 %v1754, %v2010
    %v2267 = vadd.f32 %v1755, %v2011
    %v2268 = vadd.f32 %v1756, %v2012
    %v2269 = vadd.f32 %v1757, %v2013
    %v2270 = vadd.f32 %v1758, %v2014
    %v2271 = vadd.f32 %v1759, %v2015
    %v2272 = vadd.f32 %v1760, %v2016
    %v2273 = vadd.f32 %v1761, %v2017
    %v2274 = vadd.f32 %v1762, %v2018
    %v2275 = vadd.f32 %v1763, %v2019
    %v2276 = vadd.f32 %v1764, %v2020
    %v2277 = vadd.f32 %v1765, %v2021
    %v2278 = vadd.f32 %v1766, %v2022
    %v2279 = vadd.f32 %v1767, %v2023
    %v2280 = vadd.f32 %v1768, %v2024
    %v2281 = vadd.f32 %v1769, %v2025
    %v2282 = vadd.f32 %v1770, %v2026
    %v2283 = vadd.f32 %v1771, %v2027
    %v2284 = vadd.f32 %v1772, %v2028
    %v2285 = vadd.f32 %v1773, %v2029
    %v2286 = vadd.f32 %v1774, %v2030
    %v2287 = vadd.f32 %v1775, %v2031
    %v2288 = vadd.f32 %v1776, %v2032
    %v2289 = vadd.f32 %v1777, %v2033
    %v2290 = vadd.f32 %v1778, %v2034
    %v2291 = vadd.f32 %v1779, %v2035
    %v2292 = vadd.f32 %v1780, %v2036
    %v2293 = vadd.f32 %v1781, %v2037
    %v2294 = vadd.f32 %v1782, %v2038
    %v2295 = vadd.f32 %v1783, %v2039
    %v2296 = vadd.f32 %v1784, %v2040
    %v2297 = vadd.f32 %v1785, %v2041
    %v2298 = vadd.f32 %v1786, %v2042
    %v2299 = vadd.f32 %v1787, %v2043
    %v2300 = vadd.f32 %v1788, %v2044
    %v2301 = vadd.f32 %v1789, %v2045
    %v2302 = vadd.f32 %v1790, %v2046
    %v2303 = vadd.f32 %v1791, %v2047
    %v2304 = vadd.f32 %v1792, %v2048
    %v2305 = vadd.f32 %v1793, %v2049
    %v2306 = vadd.f32 %v1794, %v2050
    %v2307 = vadd.f32 %v1795, %v2051
    %v2308 = vadd.f32 %v1796, %v2052
    %v2309 = vadd.f32 %v1797, %v2053
    %v2310 = vadd.f32 %v1798, %v2054
    %v2311 = vadd.f32 %v1799, %v2055
    %v2312 = vadd.f32 %v1800, %v2056
    %v2313 = vadd.f32 %v1801, %v2057
    %v2314 = vadd.f32 %v1802, %v2058
    %v2315 = vadd.f32 %v1803, %v2059
    %v2316 = vadd.f32 %v1804, %v2060
    %v2317 = vadd.f32 %v1805, %v2061
    %v2318 = vadd.f32 %v1806, %v2062
    %v2319 = vadd.f32 %v1807, %v2063
    %v2320 = vadd.f32 %v1808, %v2064
    %v2321 = vadd.f32 %v1809, %v2065
    %v2322 = vadd.f32 %v1810, %v2066
    %v2323 = vadd.f32 %v1811, %v2067
    %v2324 = vadd.f32 %v1812, %v2068
    %v2325 = vadd.f32 %v1813, %v2069
    %v2326 = vadd.f32 %v1814, %v2070
    %v2327 = vadd.f32 %v1815, %v2071
    %v2328 = vadd.f32 %v1816, %v2072
    %v2329 = vadd.f32 %v1817, %v2073
    %v2330 = vadd.f32 %v1818, %v2074
    %v2331 = vadd.f32 %v1819, %v2075
    %v2332 = vadd.f32 %v1820, %v2076
    %v2333 = vadd.f32 %v1821, %v2077
    %2334 = vst [vmem:[#allocation3] sm:$0xff] %v2078
    %2335 = vst [vmem:[#allocation3 + $0x8] sm:$0xff] %v2079
    %2336 = vst [vmem:[#allocation3 + $0x10] sm:$0xff] %v2080
    %2337 = vst [vmem:[#allocation3 + $0x18] sm:$0xff] %v2081
    %2338 = vst [vmem:[#allocation3 + $0x20] sm:$0xff] %v2082
    %2339 = vst [vmem:[#allocation3 + $0x28] sm:$0xff] %v2083
    %2340 = vst [vmem:[#allocation3 + $0x30] sm:$0xff] %v2084
    %2341 = vst [vmem:[#allocation3 + $0x38] sm:$0xff] %v2085
    %2342 = vst [vmem:[#allocation3 + $0x40] sm:$0xff] %v2086
    %2343 = vst [vmem:[#allocation3 + $0x48] sm:$0xff] %v2087
    %2344 = vst [vmem:[#allocation3 + $0x50] sm:$0xff] %v2088
    %2345 = vst [vmem:[#allocation3 + $0x58] sm:$0xff] %v2089
    %2346 = vst [vmem:[#allocation3 + $0x60] sm:$0xff] %v2090
    %2347 = vst [vmem:[#allocation3 + $0x68] sm:$0xff] %v2091
    %2348 = vst [vmem:[#allocation3 + $0x70] sm:$0xff] %v2092
    %2349 = vst [vmem:[#allocation3 + $0x78] sm:$0xff] %v2093
    %2350 = vst [vmem:[#allocation3 + $0x80] sm:$0xff] %v2094
    %2351 = vst [vmem:[#allocation3 + $0x88] sm:$0xff] %v2095
    %2352 = vst [vmem:[#allocation3 + $0x90] sm:$0xff] %v2096
    %2353 = vst [vmem:[#allocation3 + $0x98] sm:$0xff] %v2097
    %2354 = vst [vmem:[#allocation3 + $0xa0] sm:$0xff] %v2098
    %2355 = vst [vmem:[#allocation3 + $0xa8] sm:$0xff] %v2099
    %2356 = vst [vmem:[#allocation3 + $0xb0] sm:$0xff] %v2100
    %2357 = vst [vmem:[#allocation3 + $0xb8] sm:$0xff] %v2101
    %2358 = vst [vmem:[#allocation3 + $0xc0] sm:$0xff] %v2102
    %2359 = vst [vmem:[#allocation3 + $0xc8] sm:$0xff] %v2103
    %2360 = vst [vmem:[#allocation3 + $0xd0] sm:$0xff] %v2104
    %2361 = vst [vmem:[#allocation3 + $0xd8] sm:$0xff] %v2105
    %2362 = vst [vmem:[#allocation3 + $0xe0] sm:$0xff] %v2106
    %2363 = vst [vmem:[#allocation3 + $0xe8] sm:$0xff] %v2107
    %2364 = vst [vmem:[#allocation3 + $0xf0] sm:$0xff] %v2108
    %2365 = vst [vmem:[#allocation3 + $0xf8] sm:$0xff] %v2109
    %2366 = vst [vmem:[#allocation3 + $0x100] sm:$0xff] %v2110
    %2367 = vst [vmem:[#allocation3 + $0x108] sm:$0xff] %v2111
    %2368 = vst [vmem:[#allocation3 + $0x110] sm:$0xff] %v2112
    %2369 = vst [vmem:[#allocation3 + $0x118] sm:$0xff] %v2113
    %2370 = vst [vmem:[#allocation3 + $0x120] sm:$0xff] %v2114
    %2371 = vst [vmem:[#allocation3 + $0x128] sm:$0xff] %v2115
    %2372 = vst [vmem:[#allocation3 + $0x130] sm:$0xff] %v2116
    %2373 = vst [vmem:[#allocation3 + $0x138] sm:$0xff] %v2117
    %2374 = vst [vmem:[#allocation3 + $0x140] sm:$0xff] %v2118
    %2375 = vst [vmem:[#allocation3 + $0x148] sm:$0xff] %v2119
    %2376 = vst [vmem:[#allocation3 + $0x150] sm:$0xff] %v2120
    %2377 = vst [vmem:[#allocation3 + $0x158] sm:$0xff] %v2121
    %2378 = vst [vmem:[#allocation3 + $0x160] sm:$0xff] %v2122
    %2379 = vst [vmem:[#allocation3 + $0x168] sm:$0xff] %v2123
    %2380 = vst [vmem:[#allocation3 + $0x170] sm:$0xff] %v2124
    %2381 = vst [vmem:[#allocation3 + $0x178] sm:$0xff] %v2125
    %2382 = vst [vmem:[#allocation3 + $0x180] sm:$0xff] %v2126
    %2383 = vst [vmem:[#allocation3 + $0x188] sm:$0xff] %v2127
    %2384 = vst [vmem:[#allocation3 + $0x190] sm:$0xff] %v2128
    %2385 = vst [vmem:[#allocation3 + $0x198] sm:$0xff] %v2129
    %2386 = vst [vmem:[#allocation3 + $0x1a0] sm:$0xff] %v2130
    %2387 = vst [vmem:[#allocation3 + $0x1a8] sm:$0xff] %v2131
    %2388 = vst [vmem:[#allocation3 + $0x1b0] sm:$0xff] %v2132
    %2389 = vst [vmem:[#allocation3 + $0x1b8] sm:$0xff] %v2133
    %2390 = vst [vmem:[#allocation3 + $0x1c0] sm:$0xff] %v2134
    %2391 = vst [vmem:[#allocation3 + $0x1c8] sm:$0xff] %v2135
    %2392 = vst [vmem:[#allocation3 + $0x1d0] sm:$0xff] %v2136
    %2393 = vst [vmem:[#allocation3 + $0x1d8] sm:$0xff] %v2137
    %2394 = vst [vmem:[#allocation3 + $0x1e0] sm:$0xff] %v2138
    %2395 = vst [vmem:[#allocation3 + $0x1e8] sm:$0xff] %v2139
    %2396 = vst [vmem:[#allocation3 + $0x1f0] sm:$0xff] %v2140
    %2397 = vst [vmem:[#allocation3 + $0x1f8] sm:$0xff] %v2141
    %2398 = vst [vmem:[#allocation3 + $0x200] sm:$0xff] %v2142
    %2399 = vst [vmem:[#allocation3 + $0x208] sm:$0xff] %v2143
    %2400 = vst [vmem:[#allocation3 + $0x210] sm:$0xff] %v2144
    %2401 = vst [vmem:[#allocation3 + $0x218] sm:$0xff] %v2145
    %2402 = vst [vmem:[#allocation3 + $0x220] sm:$0xff] %v2146
    %2403 = vst [vmem:[#allocation3 + $0x228] sm:$0xff] %v2147
    %2404 = vst [vmem:[#allocation3 + $0x230] sm:$0xff] %v2148
    %2405 = vst [vmem:[#allocation3 + $0x238] sm:$0xff] %v2149
    %2406 = vst [vmem:[#allocation3 + $0x240] sm:$0xff] %v2150
    %2407 = vst [vmem:[#allocation3 + $0x248] sm:$0xff] %v2151
    %2408 = vst [vmem:[#allocation3 + $0x250] sm:$0xff] %v2152
    %2409 = vst [vmem:[#allocation3 + $0x258] sm:$0xff] %v2153
    %2410 = vst [vmem:[#allocation3 + $0x260] sm:$0xff] %v2154
    %2411 = vst [vmem:[#allocation3 + $0x268] sm:$0xff] %v2155
    %2412 = vst [vmem:[#allocation3 + $0x270] sm:$0xff] %v2156
    %2413 = vst [vmem:[#allocation3 + $0x278] sm:$0xff] %v2157
    %2414 = vst [vmem:[#allocation3 + $0x280] sm:$0xff] %v2158
    %2415 = vst [vmem:[#allocation3 + $0x288] sm:$0xff] %v2159
    %2416 = vst [vmem:[#allocation3 + $0x290] sm:$0xff] %v2160
    %2417 = vst [vmem:[#allocation3 + $0x298] sm:$0xff] %v2161
    %2418 = vst [vmem:[#allocation3 + $0x2a0] sm:$0xff] %v2162
    %2419 = vst [vmem:[#allocation3 + $0x2a8] sm:$0xff] %v2163
    %2420 = vst [vmem:[#allocation3 + $0x2b0] sm:$0xff] %v2164
    %2421 = vst [vmem:[#allocation3 + $0x2b8] sm:$0xff] %v2165
    %2422 = vst [vmem:[#allocation3 + $0x2c0] sm:$0xff] %v2166
    %2423 = vst [vmem:[#allocation3 + $0x2c8] sm:$0xff] %v2167
    %2424 = vst [vmem:[#allocation3 + $0x2d0] sm:$0xff] %v2168
    %2425 = vst [vmem:[#allocation3 + $0x2d8] sm:$0xff] %v2169
    %2426 = vst [vmem:[#allocation3 + $0x2e0] sm:$0xff] %v2170
    %2427 = vst [vmem:[#allocation3 + $0x2e8] sm:$0xff] %v2171
    %2428 = vst [vmem:[#allocation3 + $0x2f0] sm:$0xff] %v2172
    %2429 = vst [vmem:[#allocation3 + $0x2f8] sm:$0xff] %v2173
    %2430 = vst [vmem:[#allocation3 + $0x300] sm:$0xff] %v2174
    %2431 = vst [vmem:[#allocation3 + $0x308] sm:$0xff] %v2175
    %2432 = vst [vmem:[#allocation3 + $0x310] sm:$0xff] %v2176
    %2433 = vst [vmem:[#allocation3 + $0x318] sm:$0xff] %v2177
    %2434 = vst [vmem:[#allocation3 + $0x320] sm:$0xff] %v2178
    %2435 = vst [vmem:[#allocation3 + $0x328] sm:$0xff] %v2179
    %2436 = vst [vmem:[#allocation3 + $0x330] sm:$0xff] %v2180
    %2437 = vst [vmem:[#allocation3 + $0x338] sm:$0xff] %v2181
    %2438 = vst [vmem:[#allocation3 + $0x340] sm:$0xff] %v2182
    %2439 = vst [vmem:[#allocation3 + $0x348] sm:$0xff] %v2183
    %2440 = vst [vmem:[#allocation3 + $0x350] sm:$0xff] %v2184
    %2441 = vst [vmem:[#allocation3 + $0x358] sm:$0xff] %v2185
    %2442 = vst [vmem:[#allocation3 + $0x360] sm:$0xff] %v2186
    %2443 = vst [vmem:[#allocation3 + $0x368] sm:$0xff] %v2187
    %2444 = vst [vmem:[#allocation3 + $0x370] sm:$0xff] %v2188
    %2445 = vst [vmem:[#allocation3 + $0x378] sm:$0xff] %v2189
    %2446 = vst [vmem:[#allocation3 + $0x380] sm:$0xff] %v2190
    %2447 = vst [vmem:[#allocation3 + $0x388] sm:$0xff] %v2191
    %2448 = vst [vmem:[#allocation3 + $0x390] sm:$0xff] %v2192
    %2449 = vst [vmem:[#allocation3 + $0x398] sm:$0xff] %v2193
    %2450 = vst [vmem:[#allocation3 + $0x3a0] sm:$0xff] %v2194
    %2451 = vst [vmem:[#allocation3 + $0x3a8] sm:$0xff] %v2195
    %2452 = vst [vmem:[#allocation3 + $0x3b0] sm:$0xff] %v2196
    %2453 = vst [vmem:[#allocation3 + $0x3b8] sm:$0xff] %v2197
    %2454 = vst [vmem:[#allocation3 + $0x3c0] sm:$0xff] %v2198
    %2455 = vst [vmem:[#allocation3 + $0x3c8] sm:$0xff] %v2199
    %2456 = vst [vmem:[#allocation3 + $0x3d0] sm:$0xff] %v2200
    %2457 = vst [vmem:[#allocation3 + $0x3d8] sm:$0xff] %v2201
    %2458 = vst [vmem:[#allocation3 + $0x3e0] sm:$0xff] %v2202
    %2459 = vst [vmem:[#allocation3 + $0x3e8] sm:$0xff] %v2203
    %2460 = vst [vmem:[#allocation3 + $0x3f0] sm:$0xff] %v2204
    %2461 = vst [vmem:[#allocation3 + $0x3f8] sm:$0xff] %v2205
    %2462 = vst [vmem:[#allocation3 + $0x400] sm:$0xff] %v2206
    %2463 = vst [vmem:[#allocation3 + $0x408] sm:$0xff] %v2207
    %2464 = vst [vmem:[#allocation3 + $0x410] sm:$0xff] %v2208
    %2465 = vst [vmem:[#allocation3 + $0x418] sm:$0xff] %v2209
    %2466 = vst [vmem:[#allocation3 + $0x420] sm:$0xff] %v2210
    %2467 = vst [vmem:[#allocation3 + $0x428] sm:$0xff] %v2211
    %2468 = vst [vmem:[#allocation3 + $0x430] sm:$0xff] %v2212
    %2469 = vst [vmem:[#allocation3 + $0x438] sm:$0xff] %v2213
    %2470 = vst [vmem:[#allocation3 + $0x440] sm:$0xff] %v2214
    %2471 = vst [vmem:[#allocation3 + $0x448] sm:$0xff] %v2215
    %2472 = vst [vmem:[#allocation3 + $0x450] sm:$0xff] %v2216
    %2473 = vst [vmem:[#allocation3 + $0x458] sm:$0xff] %v2217
    %2474 = vst [vmem:[#allocation3 + $0x460] sm:$0xff] %v2218
    %2475 = vst [vmem:[#allocation3 + $0x468] sm:$0xff] %v2219
    %2476 = vst [vmem:[#allocation3 + $0x470] sm:$0xff] %v2220
    %2477 = vst [vmem:[#allocation3 + $0x478] sm:$0xff] %v2221
    %2478 = vst [vmem:[#allocation3 + $0x480] sm:$0xff] %v2222
    %2479 = vst [vmem:[#allocation3 + $0x488] sm:$0xff] %v2223
    %2480 = vst [vmem:[#allocation3 + $0x490] sm:$0xff] %v2224
    %2481 = vst [vmem:[#allocation3 + $0x498] sm:$0xff] %v2225
    %2482 = vst [vmem:[#allocation3 + $0x4a0] sm:$0xff] %v2226
    %2483 = vst [vmem:[#allocation3 + $0x4a8] sm:$0xff] %v2227
    %2484 = vst [vmem:[#allocation3 + $0x4b0] sm:$0xff] %v2228
    %2485 = vst [vmem:[#allocation3 + $0x4b8] sm:$0xff] %v2229
    %2486 = vst [vmem:[#allocation3 + $0x4c0] sm:$0xff] %v2230
    %2487 = vst [vmem:[#allocation3 + $0x4c8] sm:$0xff] %v2231
    %2488 = vst [vmem:[#allocation3 + $0x4d0] sm:$0xff] %v2232
    %2489 = vst [vmem:[#allocation3 + $0x4d8] sm:$0xff] %v2233
    %2490 = vst [vmem:[#allocation3 + $0x4e0] sm:$0xff] %v2234
    %2491 = vst [vmem:[#allocation3 + $0x4e8] sm:$0xff] %v2235
    %2492 = vst [vmem:[#allocation3 + $0x4f0] sm:$0xff] %v2236
    %2493 = vst [vmem:[#allocation3 + $0x4f8] sm:$0xff] %v2237
    %2494 = vst [vmem:[#allocation3 + $0x500] sm:$0xff] %v2238
    %2495 = vst [vmem:[#allocation3 + $0x508] sm:$0xff] %v2239
    %2496 = vst [vmem:[#allocation3 + $0x510] sm:$0xff] %v2240
    %2497 = vst [vmem:[#allocation3 + $0x518] sm:$0xff] %v2241
    %2498 = vst [vmem:[#allocation3 + $0x520] sm:$0xff] %v2242
    %2499 = vst [vmem:[#allocation3 + $0x528] sm:$0xff] %v2243
    %2500 = vst [vmem:[#allocation3 + $0x530] sm:$0xff] %v2244
    %2501 = vst [vmem:[#allocation3 + $0x538] sm:$0xff] %v2245
    %2502 = vst [vmem:[#allocation3 + $0x540] sm:$0xff] %v2246
    %2503 = vst [vmem:[#allocation3 + $0x548] sm:$0xff] %v2247
    %2504 = vst [vmem:[#allocation3 + $0x550] sm:$0xff] %v2248
    %2505 = vst [vmem:[#allocation3 + $0x558] sm:$0xff] %v2249
    %2506 = vst [vmem:[#allocation3 + $0x560] sm:$0xff] %v2250
    %2507 = vst [vmem:[#allocation3 + $0x568] sm:$0xff] %v2251
    %2508 = vst [vmem:[#allocation3 + $0x570] sm:$0xff] %v2252
    %2509 = vst [vmem:[#allocation3 + $0x578] sm:$0xff] %v2253
    %2510 = vst [vmem:[#allocation3 + $0x580] sm:$0xff] %v2254
    %2511 = vst [vmem:[#allocation3 + $0x588] sm:$0xff] %v2255
    %2512 = vst [vmem:[#allocation3 + $0x590] sm:$0xff] %v2256
    %2513 = vst [vmem:[#allocation3 + $0x598] sm:$0xff] %v2257
    %2514 = vst [vmem:[#allocation3 + $0x5a0] sm:$0xff] %v2258
    %2515 = vst [vmem:[#allocation3 + $0x5a8] sm:$0xff] %v2259
    %2516 = vst [vmem:[#allocation3 + $0x5b0] sm:$0xff] %v2260
    %2517 = vst [vmem:[#allocation3 + $0x5b8] sm:$0xff] %v2261
    %2518 = vst [vmem:[#allocation3 + $0x5c0] sm:$0xff] %v2262
    %2519 = vst [vmem:[#allocation3 + $0x5c8] sm:$0xff] %v2263
    %2520 = vst [vmem:[#allocation3 + $0x5d0] sm:$0xff] %v2264
    %2521 = vst [vmem:[#allocation3 + $0x5d8] sm:$0xff] %v2265
    %2522 = vst [vmem:[#allocation3 + $0x5e0] sm:$0xff] %v2266
    %2523 = vst [vmem:[#allocation3 + $0x5e8] sm:$0xff] %v2267
    %2524 = vst [vmem:[#allocation3 + $0x5f0] sm:$0xff] %v2268
    %2525 = vst [vmem:[#allocation3 + $0x5f8] sm:$0xff] %v2269
    %2526 = vst [vmem:[#allocation3 + $0x600] sm:$0xff] %v2270
    %2527 = vst [vmem:[#allocation3 + $0x608] sm:$0xff] %v2271
    %2528 = vst [vmem:[#allocation3 + $0x610] sm:$0xff] %v2272
    %2529 = vst [vmem:[#allocation3 + $0x618] sm:$0xff] %v2273
    %2530 = vst [vmem:[#allocation3 + $0x620] sm:$0xff] %v2274
    %2531 = vst [vmem:[#allocation3 + $0x628] sm:$0xff] %v2275
    %2532 = vst [vmem:[#allocation3 + $0x630] sm:$0xff] %v2276
    %2533 = vst [vmem:[#allocation3 + $0x638] sm:$0xff] %v2277
    %2534 = vst [vmem:[#allocation3 + $0x640] sm:$0xff] %v2278
    %2535 = vst [vmem:[#allocation3 + $0x648] sm:$0xff] %v2279
    %2536 = vst [vmem:[#allocation3 + $0x650] sm:$0xff] %v2280
    %2537 = vst [vmem:[#allocation3 + $0x658] sm:$0xff] %v2281
    %2538 = vst [vmem:[#allocation3 + $0x660] sm:$0xff] %v2282
    %2539 = vst [vmem:[#allocation3 + $0x668] sm:$0xff] %v2283
    %2540 = vst [vmem:[#allocation3 + $0x670] sm:$0xff] %v2284
    %2541 = vst [vmem:[#allocation3 + $0x678] sm:$0xff] %v2285
    %2542 = vst [vmem:[#allocation3 + $0x680] sm:$0xff] %v2286
    %2543 = vst [vmem:[#allocation3 + $0x688] sm:$0xff] %v2287
    %2544 = vst [vmem:[#allocation3 + $0x690] sm:$0xff] %v2288
    %2545 = vst [vmem:[#allocation3 + $0x698] sm:$0xff] %v2289
    %2546 = vst [vmem:[#allocation3 + $0x6a0] sm:$0xff] %v2290
    %2547 = vst [vmem:[#allocation3 + $0x6a8] sm:$0xff] %v2291
    %2548 = vst [vmem:[#allocation3 + $0x6b0] sm:$0xff] %v2292
    %2549 = vst [vmem:[#allocation3 + $0x6b8] sm:$0xff] %v2293
    %2550 = vst [vmem:[#allocation3 + $0x6c0] sm:$0xff] %v2294
    %2551 = vst [vmem:[#allocation3 + $0x6c8] sm:$0xff] %v2295
    %2552 = vst [vmem:[#allocation3 + $0x6d0] sm:$0xff] %v2296
    %2553 = vst [vmem:[#allocation3 + $0x6d8] sm:$0xff] %v2297
    %2554 = vst [vmem:[#allocation3 + $0x6e0] sm:$0xff] %v2298
    %2555 = vst [vmem:[#allocation3 + $0x6e8] sm:$0xff] %v2299
    %2556 = vst [vmem:[#allocation3 + $0x6f0] sm:$0xff] %v2300
    %2557 = vst [vmem:[#allocation3 + $0x6f8] sm:$0xff] %v2301
    %2558 = vst [vmem:[#allocation3 + $0x700] sm:$0xff] %v2302
    %2559 = vst [vmem:[#allocation3 + $0x708] sm:$0xff] %v2303
    %2560 = vst [vmem:[#allocation3 + $0x710] sm:$0xff] %v2304
    %2561 = vst [vmem:[#allocation3 + $0x718] sm:$0xff] %v2305
    %2562 = vst [vmem:[#allocation3 + $0x720] sm:$0xff] %v2306
    %2563 = vst [vmem:[#allocation3 + $0x728] sm:$0xff] %v2307
    %2564 = vst [vmem:[#allocation3 + $0x730] sm:$0xff] %v2308
    %2565 = vst [vmem:[#allocation3 + $0x738] sm:$0xff] %v2309
    %2566 = vst [vmem:[#allocation3 + $0x740] sm:$0xff] %v2310
    %2567 = vst [vmem:[#allocation3 + $0x748] sm:$0xff] %v2311
    %2568 = vst [vmem:[#allocation3 + $0x750] sm:$0xff] %v2312
    %2569 = vst [vmem:[#allocation3 + $0x758] sm:$0xff] %v2313
    %2570 = vst [vmem:[#allocation3 + $0x760] sm:$0xff] %v2314
    %2571 = vst [vmem:[#allocation3 + $0x768] sm:$0xff] %v2315
    %2572 = vst [vmem:[#allocation3 + $0x770] sm:$0xff] %v2316
    %2573 = vst [vmem:[#allocation3 + $0x778] sm:$0xff] %v2317
    %2574 = vst [vmem:[#allocation3 + $0x780] sm:$0xff] %v2318
    %2575 = vst [vmem:[#allocation3 + $0x788] sm:$0xff] %v2319
    %2576 = vst [vmem:[#allocation3 + $0x790] sm:$0xff] %v2320
    %2577 = vst [vmem:[#allocation3 + $0x798] sm:$0xff] %v2321
    %2578 = vst [vmem:[#allocation3 + $0x7a0] sm:$0xff] %v2322
    %2579 = vst [vmem:[#allocation3 + $0x7a8] sm:$0xff] %v2323
    %2580 = vst [vmem:[#allocation3 + $0x7b0] sm:$0xff] %v2324
    %2581 = vst [vmem:[#allocation3 + $0x7b8] sm:$0xff] %v2325
    %2582 = vst [vmem:[#allocation3 + $0x7c0] sm:$0xff] %v2326
    %2583 = vst [vmem:[#allocation3 + $0x7c8] sm:$0xff] %v2327
    %2584 = vst [vmem:[#allocation3 + $0x7d0] sm:$0xff] %v2328
    %2585 = vst [vmem:[#allocation3 + $0x7d8] sm:$0xff] %v2329
    %2586 = vst [vmem:[#allocation3 + $0x7e0] sm:$0xff] %v2330
    %2587 = vst [vmem:[#allocation3 + $0x7e8] sm:$0xff] %v2331
    %2588 = vst [vmem:[#allocation3 + $0x7f0] sm:$0xff] %v2332
    %2589 = vst [vmem:[#allocation3 + $0x7f8] sm:$0xff] %v2333
    // Predicated region
    $region14: #{tpu_custom_call.1} parent=1 // pred_check
      %p2590 = pneg %p26
    $region15: #{tpu_custom_call.1} parent=1 // pred_check_branch
      %2592 = sbr.rel (%p2590) target = $region17
    $region16: #{tpu_custom_call.1} parent=1 // pred_region
      %v2593 = vld [vmem:[#allocation2] sm:$0xff]
      %v2594 = vld [vmem:[#allocation2 + $0x8] sm:$0xff]
      %v2595 = vld [vmem:[#allocation2 + $0x10] sm:$0xff]
      %v2596 = vld [vmem:[#allocation2 + $0x18] sm:$0xff]
      %v2597 = vld [vmem:[#allocation2 + $0x20] sm:$0xff]
      %v2598 = vld [vmem:[#allocation2 + $0x28] sm:$0xff]
      %v2599 = vld [vmem:[#allocation2 + $0x30] sm:$0xff]
      %v2600 = vld [vmem:[#allocation2 + $0x38] sm:$0xff]
      %v2601 = vld [vmem:[#allocation2 + $0x40] sm:$0xff]
      %v2602 = vld [vmem:[#allocation2 + $0x48] sm:$0xff]
      %v2603 = vld [vmem:[#allocation2 + $0x50] sm:$0xff]
      %v2604 = vld [vmem:[#allocation2 + $0x58] sm:$0xff]
      %v2605 = vld [vmem:[#allocation2 + $0x60] sm:$0xff]
      %v2606 = vld [vmem:[#allocation2 + $0x68] sm:$0xff]
      %v2607 = vld [vmem:[#allocation2 + $0x70] sm:$0xff]
      %v2608 = vld [vmem:[#allocation2 + $0x78] sm:$0xff]
      %v2609 = vld [vmem:[#allocation2 + $0x80] sm:$0xff]
      %v2610 = vld [vmem:[#allocation2 + $0x88] sm:$0xff]
      %v2611 = vld [vmem:[#allocation2 + $0x90] sm:$0xff]
      %v2612 = vld [vmem:[#allocation2 + $0x98] sm:$0xff]
      %v2613 = vld [vmem:[#allocation2 + $0xa0] sm:$0xff]
      %v2614 = vld [vmem:[#allocation2 + $0xa8] sm:$0xff]
      %v2615 = vld [vmem:[#allocation2 + $0xb0] sm:$0xff]
      %v2616 = vld [vmem:[#allocation2 + $0xb8] sm:$0xff]
      %v2617 = vld [vmem:[#allocation2 + $0xc0] sm:$0xff]
      %v2618 = vld [vmem:[#allocation2 + $0xc8] sm:$0xff]
      %v2619 = vld [vmem:[#allocation2 + $0xd0] sm:$0xff]
      %v2620 = vld [vmem:[#allocation2 + $0xd8] sm:$0xff]
      %v2621 = vld [vmem:[#allocation2 + $0xe0] sm:$0xff]
      %v2622 = vld [vmem:[#allocation2 + $0xe8] sm:$0xff]
      %v2623 = vld [vmem:[#allocation2 + $0xf0] sm:$0xff]
      %v2624 = vld [vmem:[#allocation2 + $0xf8] sm:$0xff]
      %v2625 = vld [vmem:[#allocation2 + $0x100] sm:$0xff]
      %v2626 = vld [vmem:[#allocation2 + $0x108] sm:$0xff]
      %v2627 = vld [vmem:[#allocation2 + $0x110] sm:$0xff]
      %v2628 = vld [vmem:[#allocation2 + $0x118] sm:$0xff]
      %v2629 = vld [vmem:[#allocation2 + $0x120] sm:$0xff]
      %v2630 = vld [vmem:[#allocation2 + $0x128] sm:$0xff]
      %v2631 = vld [vmem:[#allocation2 + $0x130] sm:$0xff]
      %v2632 = vld [vmem:[#allocation2 + $0x138] sm:$0xff]
      %v2633 = vld [vmem:[#allocation2 + $0x140] sm:$0xff]
      %v2634 = vld [vmem:[#allocation2 + $0x148] sm:$0xff]
      %v2635 = vld [vmem:[#allocation2 + $0x150] sm:$0xff]
      %v2636 = vld [vmem:[#allocation2 + $0x158] sm:$0xff]
      %v2637 = vld [vmem:[#allocation2 + $0x160] sm:$0xff]
      %v2638 = vld [vmem:[#allocation2 + $0x168] sm:$0xff]
      %v2639 = vld [vmem:[#allocation2 + $0x170] sm:$0xff]
      %v2640 = vld [vmem:[#allocation2 + $0x178] sm:$0xff]
      %v2641 = vld [vmem:[#allocation2 + $0x180] sm:$0xff]
      %v2642 = vld [vmem:[#allocation2 + $0x188] sm:$0xff]
      %v2643 = vld [vmem:[#allocation2 + $0x190] sm:$0xff]
      %v2644 = vld [vmem:[#allocation2 + $0x198] sm:$0xff]
      %v2645 = vld [vmem:[#allocation2 + $0x1a0] sm:$0xff]
      %v2646 = vld [vmem:[#allocation2 + $0x1a8] sm:$0xff]
      %v2647 = vld [vmem:[#allocation2 + $0x1b0] sm:$0xff]
      %v2648 = vld [vmem:[#allocation2 + $0x1b8] sm:$0xff]
      %v2649 = vld [vmem:[#allocation2 + $0x1c0] sm:$0xff]
      %v2650 = vld [vmem:[#allocation2 + $0x1c8] sm:$0xff]
      %v2651 = vld [vmem:[#allocation2 + $0x1d0] sm:$0xff]
      %v2652 = vld [vmem:[#allocation2 + $0x1d8] sm:$0xff]
      %v2653 = vld [vmem:[#allocation2 + $0x1e0] sm:$0xff]
      %v2654 = vld [vmem:[#allocation2 + $0x1e8] sm:$0xff]
      %v2655 = vld [vmem:[#allocation2 + $0x1f0] sm:$0xff]
      %v2656 = vld [vmem:[#allocation2 + $0x1f8] sm:$0xff]
      %v2657 = vld [vmem:[#allocation2 + $0x200] sm:$0xff]
      %v2658 = vld [vmem:[#allocation2 + $0x208] sm:$0xff]
      %v2659 = vld [vmem:[#allocation2 + $0x210] sm:$0xff]
      %v2660 = vld [vmem:[#allocation2 + $0x218] sm:$0xff]
      %v2661 = vld [vmem:[#allocation2 + $0x220] sm:$0xff]
      %v2662 = vld [vmem:[#allocation2 + $0x228] sm:$0xff]
      %v2663 = vld [vmem:[#allocation2 + $0x230] sm:$0xff]
      %v2664 = vld [vmem:[#allocation2 + $0x238] sm:$0xff]
      %v2665 = vld [vmem:[#allocation2 + $0x240] sm:$0xff]
      %v2666 = vld [vmem:[#allocation2 + $0x248] sm:$0xff]
      %v2667 = vld [vmem:[#allocation2 + $0x250] sm:$0xff]
      %v2668 = vld [vmem:[#allocation2 + $0x258] sm:$0xff]
      %v2669 = vld [vmem:[#allocation2 + $0x260] sm:$0xff]
      %v2670 = vld [vmem:[#allocation2 + $0x268] sm:$0xff]
      %v2671 = vld [vmem:[#allocation2 + $0x270] sm:$0xff]
      %v2672 = vld [vmem:[#allocation2 + $0x278] sm:$0xff]
      %v2673 = vld [vmem:[#allocation2 + $0x280] sm:$0xff]
      %v2674 = vld [vmem:[#allocation2 + $0x288] sm:$0xff]
      %v2675 = vld [vmem:[#allocation2 + $0x290] sm:$0xff]
      %v2676 = vld [vmem:[#allocation2 + $0x298] sm:$0xff]
      %v2677 = vld [vmem:[#allocation2 + $0x2a0] sm:$0xff]
      %v2678 = vld [vmem:[#allocation2 + $0x2a8] sm:$0xff]
      %v2679 = vld [vmem:[#allocation2 + $0x2b0] sm:$0xff]
      %v2680 = vld [vmem:[#allocation2 + $0x2b8] sm:$0xff]
      %v2681 = vld [vmem:[#allocation2 + $0x2c0] sm:$0xff]
      %v2682 = vld [vmem:[#allocation2 + $0x2c8] sm:$0xff]
      %v2683 = vld [vmem:[#allocation2 + $0x2d0] sm:$0xff]
      %v2684 = vld [vmem:[#allocation2 + $0x2d8] sm:$0xff]
      %v2685 = vld [vmem:[#allocation2 + $0x2e0] sm:$0xff]
      %v2686 = vld [vmem:[#allocation2 + $0x2e8] sm:$0xff]
      %v2687 = vld [vmem:[#allocation2 + $0x2f0] sm:$0xff]
      %v2688 = vld [vmem:[#allocation2 + $0x2f8] sm:$0xff]
      %v2689 = vld [vmem:[#allocation2 + $0x300] sm:$0xff]
      %v2690 = vld [vmem:[#allocation2 + $0x308] sm:$0xff]
      %v2691 = vld [vmem:[#allocation2 + $0x310] sm:$0xff]
      %v2692 = vld [vmem:[#allocation2 + $0x318] sm:$0xff]
      %v2693 = vld [vmem:[#allocation2 + $0x320] sm:$0xff]
      %v2694 = vld [vmem:[#allocation2 + $0x328] sm:$0xff]
      %v2695 = vld [vmem:[#allocation2 + $0x330] sm:$0xff]
      %v2696 = vld [vmem:[#allocation2 + $0x338] sm:$0xff]
      %v2697 = vld [vmem:[#allocation2 + $0x340] sm:$0xff]
      %v2698 = vld [vmem:[#allocation2 + $0x348] sm:$0xff]
      %v2699 = vld [vmem:[#allocation2 + $0x350] sm:$0xff]
      %v2700 = vld [vmem:[#allocation2 + $0x358] sm:$0xff]
      %v2701 = vld [vmem:[#allocation2 + $0x360] sm:$0xff]
      %v2702 = vld [vmem:[#allocation2 + $0x368] sm:$0xff]
      %v2703 = vld [vmem:[#allocation2 + $0x370] sm:$0xff]
      %v2704 = vld [vmem:[#allocation2 + $0x378] sm:$0xff]
      %v2705 = vld [vmem:[#allocation2 + $0x380] sm:$0xff]
      %v2706 = vld [vmem:[#allocation2 + $0x388] sm:$0xff]
      %v2707 = vld [vmem:[#allocation2 + $0x390] sm:$0xff]
      %v2708 = vld [vmem:[#allocation2 + $0x398] sm:$0xff]
      %v2709 = vld [vmem:[#allocation2 + $0x3a0] sm:$0xff]
      %v2710 = vld [vmem:[#allocation2 + $0x3a8] sm:$0xff]
      %v2711 = vld [vmem:[#allocation2 + $0x3b0] sm:$0xff]
      %v2712 = vld [vmem:[#allocation2 + $0x3b8] sm:$0xff]
      %v2713 = vld [vmem:[#allocation2 + $0x3c0] sm:$0xff]
      %v2714 = vld [vmem:[#allocation2 + $0x3c8] sm:$0xff]
      %v2715 = vld [vmem:[#allocation2 + $0x3d0] sm:$0xff]
      %v2716 = vld [vmem:[#allocation2 + $0x3d8] sm:$0xff]
      %v2717 = vld [vmem:[#allocation2 + $0x3e0] sm:$0xff]
      %v2718 = vld [vmem:[#allocation2 + $0x3e8] sm:$0xff]
      %v2719 = vld [vmem:[#allocation2 + $0x3f0] sm:$0xff]
      %v2720 = vld [vmem:[#allocation2 + $0x3f8] sm:$0xff]
      %v2721 = vld [vmem:[#allocation2 + $0x400] sm:$0xff]
      %v2722 = vld [vmem:[#allocation2 + $0x408] sm:$0xff]
      %v2723 = vld [vmem:[#allocation2 + $0x410] sm:$0xff]
      %v2724 = vld [vmem:[#allocation2 + $0x418] sm:$0xff]
      %v2725 = vld [vmem:[#allocation2 + $0x420] sm:$0xff]
      %v2726 = vld [vmem:[#allocation2 + $0x428] sm:$0xff]
      %v2727 = vld [vmem:[#allocation2 + $0x430] sm:$0xff]
      %v2728 = vld [vmem:[#allocation2 + $0x438] sm:$0xff]
      %v2729 = vld [vmem:[#allocation2 + $0x440] sm:$0xff]
      %v2730 = vld [vmem:[#allocation2 + $0x448] sm:$0xff]
      %v2731 = vld [vmem:[#allocation2 + $0x450] sm:$0xff]
      %v2732 = vld [vmem:[#allocation2 + $0x458] sm:$0xff]
      %v2733 = vld [vmem:[#allocation2 + $0x460] sm:$0xff]
      %v2734 = vld [vmem:[#allocation2 + $0x468] sm:$0xff]
      %v2735 = vld [vmem:[#allocation2 + $0x470] sm:$0xff]
      %v2736 = vld [vmem:[#allocation2 + $0x478] sm:$0xff]
      %v2737 = vld [vmem:[#allocation2 + $0x480] sm:$0xff]
      %v2738 = vld [vmem:[#allocation2 + $0x488] sm:$0xff]
      %v2739 = vld [vmem:[#allocation2 + $0x490] sm:$0xff]
      %v2740 = vld [vmem:[#allocation2 + $0x498] sm:$0xff]
      %v2741 = vld [vmem:[#allocation2 + $0x4a0] sm:$0xff]
      %v2742 = vld [vmem:[#allocation2 + $0x4a8] sm:$0xff]
      %v2743 = vld [vmem:[#allocation2 + $0x4b0] sm:$0xff]
      %v2744 = vld [vmem:[#allocation2 + $0x4b8] sm:$0xff]
      %v2745 = vld [vmem:[#allocation2 + $0x4c0] sm:$0xff]
      %v2746 = vld [vmem:[#allocation2 + $0x4c8] sm:$0xff]
      %v2747 = vld [vmem:[#allocation2 + $0x4d0] sm:$0xff]
      %v2748 = vld [vmem:[#allocation2 + $0x4d8] sm:$0xff]
      %v2749 = vld [vmem:[#allocation2 + $0x4e0] sm:$0xff]
      %v2750 = vld [vmem:[#allocation2 + $0x4e8] sm:$0xff]
      %v2751 = vld [vmem:[#allocation2 + $0x4f0] sm:$0xff]
      %v2752 = vld [vmem:[#allocation2 + $0x4f8] sm:$0xff]
      %v2753 = vld [vmem:[#allocation2 + $0x500] sm:$0xff]
      %v2754 = vld [vmem:[#allocation2 + $0x508] sm:$0xff]
      %v2755 = vld [vmem:[#allocation2 + $0x510] sm:$0xff]
      %v2756 = vld [vmem:[#allocation2 + $0x518] sm:$0xff]
      %v2757 = vld [vmem:[#allocation2 + $0x520] sm:$0xff]
      %v2758 = vld [vmem:[#allocation2 + $0x528] sm:$0xff]
      %v2759 = vld [vmem:[#allocation2 + $0x530] sm:$0xff]
      %v2760 = vld [vmem:[#allocation2 + $0x538] sm:$0xff]
      %v2761 = vld [vmem:[#allocation2 + $0x540] sm:$0xff]
      %v2762 = vld [vmem:[#allocation2 + $0x548] sm:$0xff]
      %v2763 = vld [vmem:[#allocation2 + $0x550] sm:$0xff]
      %v2764 = vld [vmem:[#allocation2 + $0x558] sm:$0xff]
      %v2765 = vld [vmem:[#allocation2 + $0x560] sm:$0xff]
      %v2766 = vld [vmem:[#allocation2 + $0x568] sm:$0xff]
      %v2767 = vld [vmem:[#allocation2 + $0x570] sm:$0xff]
      %v2768 = vld [vmem:[#allocation2 + $0x578] sm:$0xff]
      %v2769 = vld [vmem:[#allocation2 + $0x580] sm:$0xff]
      %v2770 = vld [vmem:[#allocation2 + $0x588] sm:$0xff]
      %v2771 = vld [vmem:[#allocation2 + $0x590] sm:$0xff]
      %v2772 = vld [vmem:[#allocation2 + $0x598] sm:$0xff]
      %v2773 = vld [vmem:[#allocation2 + $0x5a0] sm:$0xff]
      %v2774 = vld [vmem:[#allocation2 + $0x5a8] sm:$0xff]
      %v2775 = vld [vmem:[#allocation2 + $0x5b0] sm:$0xff]
      %v2776 = vld [vmem:[#allocation2 + $0x5b8] sm:$0xff]
      %v2777 = vld [vmem:[#allocation2 + $0x5c0] sm:$0xff]
      %v2778 = vld [vmem:[#allocation2 + $0x5c8] sm:$0xff]
      %v2779 = vld [vmem:[#allocation2 + $0x5d0] sm:$0xff]
      %v2780 = vld [vmem:[#allocation2 + $0x5d8] sm:$0xff]
      %v2781 = vld [vmem:[#allocation2 + $0x5e0] sm:$0xff]
      %v2782 = vld [vmem:[#allocation2 + $0x5e8] sm:$0xff]
      %v2783 = vld [vmem:[#allocation2 + $0x5f0] sm:$0xff]
      %v2784 = vld [vmem:[#allocation2 + $0x5f8] sm:$0xff]
      %v2785 = vld [vmem:[#allocation2 + $0x600] sm:$0xff]
      %v2786 = vld [vmem:[#allocation2 + $0x608] sm:$0xff]
      %v2787 = vld [vmem:[#allocation2 + $0x610] sm:$0xff]
      %v2788 = vld [vmem:[#allocation2 + $0x618] sm:$0xff]
      %v2789 = vld [vmem:[#allocation2 + $0x620] sm:$0xff]
      %v2790 = vld [vmem:[#allocation2 + $0x628] sm:$0xff]
      %v2791 = vld [vmem:[#allocation2 + $0x630] sm:$0xff]
      %v2792 = vld [vmem:[#allocation2 + $0x638] sm:$0xff]
      %v2793 = vld [vmem:[#allocation2 + $0x640] sm:$0xff]
      %v2794 = vld [vmem:[#allocation2 + $0x648] sm:$0xff]
      %v2795 = vld [vmem:[#allocation2 + $0x650] sm:$0xff]
      %v2796 = vld [vmem:[#allocation2 + $0x658] sm:$0xff]
      %v2797 = vld [vmem:[#allocation2 + $0x660] sm:$0xff]
      %v2798 = vld [vmem:[#allocation2 + $0x668] sm:$0xff]
      %v2799 = vld [vmem:[#allocation2 + $0x670] sm:$0xff]
      %v2800 = vld [vmem:[#allocation2 + $0x678] sm:$0xff]
      %v2801 = vld [vmem:[#allocation2 + $0x680] sm:$0xff]
      %v2802 = vld [vmem:[#allocation2 + $0x688] sm:$0xff]
      %v2803 = vld [vmem:[#allocation2 + $0x690] sm:$0xff]
      %v2804 = vld [vmem:[#allocation2 + $0x698] sm:$0xff]
      %v2805 = vld [vmem:[#allocation2 + $0x6a0] sm:$0xff]
      %v2806 = vld [vmem:[#allocation2 + $0x6a8] sm:$0xff]
      %v2807 = vld [vmem:[#allocation2 + $0x6b0] sm:$0xff]
      %v2808 = vld [vmem:[#allocation2 + $0x6b8] sm:$0xff]
      %v2809 = vld [vmem:[#allocation2 + $0x6c0] sm:$0xff]
      %v2810 = vld [vmem:[#allocation2 + $0x6c8] sm:$0xff]
      %v2811 = vld [vmem:[#allocation2 + $0x6d0] sm:$0xff]
      %v2812 = vld [vmem:[#allocation2 + $0x6d8] sm:$0xff]
      %v2813 = vld [vmem:[#allocation2 + $0x6e0] sm:$0xff]
      %v2814 = vld [vmem:[#allocation2 + $0x6e8] sm:$0xff]
      %v2815 = vld [vmem:[#allocation2 + $0x6f0] sm:$0xff]
      %v2816 = vld [vmem:[#allocation2 + $0x6f8] sm:$0xff]
      %v2817 = vld [vmem:[#allocation2 + $0x700] sm:$0xff]
      %v2818 = vld [vmem:[#allocation2 + $0x708] sm:$0xff]
      %v2819 = vld [vmem:[#allocation2 + $0x710] sm:$0xff]
      %v2820 = vld [vmem:[#allocation2 + $0x718] sm:$0xff]
      %v2821 = vld [vmem:[#allocation2 + $0x720] sm:$0xff]
      %v2822 = vld [vmem:[#allocation2 + $0x728] sm:$0xff]
      %v2823 = vld [vmem:[#allocation2 + $0x730] sm:$0xff]
      %v2824 = vld [vmem:[#allocation2 + $0x738] sm:$0xff]
      %v2825 = vld [vmem:[#allocation2 + $0x740] sm:$0xff]
      %v2826 = vld [vmem:[#allocation2 + $0x748] sm:$0xff]
      %v2827 = vld [vmem:[#allocation2 + $0x750] sm:$0xff]
      %v2828 = vld [vmem:[#allocation2 + $0x758] sm:$0xff]
      %v2829 = vld [vmem:[#allocation2 + $0x760] sm:$0xff]
      %v2830 = vld [vmem:[#allocation2 + $0x768] sm:$0xff]
      %v2831 = vld [vmem:[#allocation2 + $0x770] sm:$0xff]
      %v2832 = vld [vmem:[#allocation2 + $0x778] sm:$0xff]
      %v2833 = vld [vmem:[#allocation2 + $0x780] sm:$0xff]
      %v2834 = vld [vmem:[#allocation2 + $0x788] sm:$0xff]
      %v2835 = vld [vmem:[#allocation2 + $0x790] sm:$0xff]
      %v2836 = vld [vmem:[#allocation2 + $0x798] sm:$0xff]
      %v2837 = vld [vmem:[#allocation2 + $0x7a0] sm:$0xff]
      %v2838 = vld [vmem:[#allocation2 + $0x7a8] sm:$0xff]
      %v2839 = vld [vmem:[#allocation2 + $0x7b0] sm:$0xff]
      %v2840 = vld [vmem:[#allocation2 + $0x7b8] sm:$0xff]
      %v2841 = vld [vmem:[#allocation2 + $0x7c0] sm:$0xff]
      %v2842 = vld [vmem:[#allocation2 + $0x7c8] sm:$0xff]
      %v2843 = vld [vmem:[#allocation2 + $0x7d0] sm:$0xff]
      %v2844 = vld [vmem:[#allocation2 + $0x7d8] sm:$0xff]
      %v2845 = vld [vmem:[#allocation2 + $0x7e0] sm:$0xff]
      %v2846 = vld [vmem:[#allocation2 + $0x7e8] sm:$0xff]
      %v2847 = vld [vmem:[#allocation2 + $0x7f0] sm:$0xff]
      %v2848 = vld [vmem:[#allocation2 + $0x7f8] sm:$0xff]
      %v2849 = vadd.f32 %v2593, %v2594
      %v2850 = vadd.f32 %v2849, %v2595
      %v2851 = vadd.f32 %v2850, %v2596
      %v2852 = vadd.f32 %v2851, %v2597
      %v2853 = vadd.f32 %v2852, %v2598
      %v2854 = vadd.f32 %v2853, %v2599
      %v2855 = vadd.f32 %v2854, %v2600
      %v2856 = vadd.f32 %v2855, %v2601
      %v2857 = vadd.f32 %v2856, %v2602
      %v2858 = vadd.f32 %v2857, %v2603
      %v2859 = vadd.f32 %v2858, %v2604
      %v2860 = vadd.f32 %v2859, %v2605
      %v2861 = vadd.f32 %v2860, %v2606
      %v2862 = vadd.f32 %v2861, %v2607
      %v2863 = vadd.f32 %v2862, %v2608
      %v2864 = vadd.f32 %v2863, %v2609
      %v2865 = vadd.f32 %v2864, %v2610
      %v2866 = vadd.f32 %v2865, %v2611
      %v2867 = vadd.f32 %v2866, %v2612
      %v2868 = vadd.f32 %v2867, %v2613
      %v2869 = vadd.f32 %v2868, %v2614
      %v2870 = vadd.f32 %v2869, %v2615
      %v2871 = vadd.f32 %v2870, %v2616
      %v2872 = vadd.f32 %v2871, %v2617
      %v2873 = vadd.f32 %v2872, %v2618
      %v2874 = vadd.f32 %v2873, %v2619
      %v2875 = vadd.f32 %v2874, %v2620
      %v2876 = vadd.f32 %v2875, %v2621
      %v2877 = vadd.f32 %v2876, %v2622
      %v2878 = vadd.f32 %v2877, %v2623
      %v2879 = vadd.f32 %v2878, %v2624
      %2880 = vadd.xlane.f32.xlu0 %v2879
      %v2881 = vpop.xlane.xlu0 %2880
      %v2882 = vadd.f32 %v2625, %v2626
      %v2883 = vadd.f32 %v2882, %v2627
      %v2884 = vadd.f32 %v2883, %v2628
      %v2885 = vadd.f32 %v2884, %v2629
      %v2886 = vadd.f32 %v2885, %v2630
      %v2887 = vadd.f32 %v2886, %v2631
      %v2888 = vadd.f32 %v2887, %v2632
      %v2889 = vadd.f32 %v2888, %v2633
      %v2890 = vadd.f32 %v2889, %v2634
      %v2891 = vadd.f32 %v2890, %v2635
      %v2892 = vadd.f32 %v2891, %v2636
      %v2893 = vadd.f32 %v2892, %v2637
      %v2894 = vadd.f32 %v2893, %v2638
      %v2895 = vadd.f32 %v2894, %v2639
      %v2896 = vadd.f32 %v2895, %v2640
      %v2897 = vadd.f32 %v2896, %v2641
      %v2898 = vadd.f32 %v2897, %v2642
      %v2899 = vadd.f32 %v2898, %v2643
      %v2900 = vadd.f32 %v2899, %v2644
      %v2901 = vadd.f32 %v2900, %v2645
      %v2902 = vadd.f32 %v2901, %v2646
      %v2903 = vadd.f32 %v2902, %v2647
      %v2904 = vadd.f32 %v2903, %v2648
      %v2905 = vadd.f32 %v2904, %v2649
      %v2906 = vadd.f32 %v2905, %v2650
      %v2907 = vadd.f32 %v2906, %v2651
      %v2908 = vadd.f32 %v2907, %v2652
      %v2909 = vadd.f32 %v2908, %v2653
      %v2910 = vadd.f32 %v2909, %v2654
      %v2911 = vadd.f32 %v2910, %v2655
      %v2912 = vadd.f32 %v2911, %v2656
      %2913 = vadd.xlane.f32.xlu0 %v2912
      %v2914 = vpop.xlane.xlu0 %2913
      %v2915 = vadd.f32 %v2657, %v2658
      %v2916 = vadd.f32 %v2915, %v2659
      %v2917 = vadd.f32 %v2916, %v2660
      %v2918 = vadd.f32 %v2917, %v2661
      %v2919 = vadd.f32 %v2918, %v2662
      %v2920 = vadd.f32 %v2919, %v2663
      %v2921 = vadd.f32 %v2920, %v2664
      %v2922 = vadd.f32 %v2921, %v2665
      %v2923 = vadd.f32 %v2922, %v2666
      %v2924 = vadd.f32 %v2923, %v2667
      %v2925 = vadd.f32 %v2924, %v2668
      %v2926 = vadd.f32 %v2925, %v2669
      %v2927 = vadd.f32 %v2926, %v2670
      %v2928 = vadd.f32 %v2927, %v2671
      %v2929 = vadd.f32 %v2928, %v2672
      %v2930 = vadd.f32 %v2929, %v2673
      %v2931 = vadd.f32 %v2930, %v2674
      %v2932 = vadd.f32 %v2931, %v2675
      %v2933 = vadd.f32 %v2932, %v2676
      %v2934 = vadd.f32 %v2933, %v2677
      %v2935 = vadd.f32 %v2934, %v2678
      %v2936 = vadd.f32 %v2935, %v2679
      %v2937 = vadd.f32 %v2936, %v2680
      %v2938 = vadd.f32 %v2937, %v2681
      %v2939 = vadd.f32 %v2938, %v2682
      %v2940 = vadd.f32 %v2939, %v2683
      %v2941 = vadd.f32 %v2940, %v2684
      %v2942 = vadd.f32 %v2941, %v2685
      %v2943 = vadd.f32 %v2942, %v2686
      %v2944 = vadd.f32 %v2943, %v2687
      %v2945 = vadd.f32 %v2944, %v2688
      %2946 = vadd.xlane.f32.xlu0 %v2945
      %v2947 = vpop.xlane.xlu0 %2946
      %v2948 = vadd.f32 %v2689, %v2690
      %v2949 = vadd.f32 %v2948, %v2691
      %v2950 = vadd.f32 %v2949, %v2692
      %v2951 = vadd.f32 %v2950, %v2693
      %v2952 = vadd.f32 %v2951, %v2694
      %v2953 = vadd.f32 %v2952, %v2695
      %v2954 = vadd.f32 %v2953, %v2696
      %v2955 = vadd.f32 %v2954, %v2697
      %v2956 = vadd.f32 %v2955, %v2698
      %v2957 = vadd.f32 %v2956, %v2699
      %v2958 = vadd.f32 %v2957, %v2700
      %v2959 = vadd.f32 %v2958, %v2701
      %v2960 = vadd.f32 %v2959, %v2702
      %v2961 = vadd.f32 %v2960, %v2703
      %v2962 = vadd.f32 %v2961, %v2704
      %v2963 = vadd.f32 %v2962, %v2705
      %v2964 = vadd.f32 %v2963, %v2706
      %v2965 = vadd.f32 %v2964, %v2707
      %v2966 = vadd.f32 %v2965, %v2708
      %v2967 = vadd.f32 %v2966, %v2709
      %v2968 = vadd.f32 %v2967, %v2710
      %v2969 = vadd.f32 %v2968, %v2711
      %v2970 = vadd.f32 %v2969, %v2712
      %v2971 = vadd.f32 %v2970, %v2713
      %v2972 = vadd.f32 %v2971, %v2714
      %v2973 = vadd.f32 %v2972, %v2715
      %v2974 = vadd.f32 %v2973, %v2716
      %v2975 = vadd.f32 %v2974, %v2717
      %v2976 = vadd.f32 %v2975, %v2718
      %v2977 = vadd.f32 %v2976, %v2719
      %v2978 = vadd.f32 %v2977, %v2720
      %2979 = vadd.xlane.f32.xlu0 %v2978
      %v2980 = vpop.xlane.xlu0 %2979
      %v2981 = vadd.f32 %v2721, %v2722
      %v2982 = vadd.f32 %v2981, %v2723
      %v2983 = vadd.f32 %v2982, %v2724
      %v2984 = vadd.f32 %v2983, %v2725
      %v2985 = vadd.f32 %v2984, %v2726
      %v2986 = vadd.f32 %v2985, %v2727
      %v2987 = vadd.f32 %v2986, %v2728
      %v2988 = vadd.f32 %v2987, %v2729
      %v2989 = vadd.f32 %v2988, %v2730
      %v2990 = vadd.f32 %v2989, %v2731
      %v2991 = vadd.f32 %v2990, %v2732
      %v2992 = vadd.f32 %v2991, %v2733
      %v2993 = vadd.f32 %v2992, %v2734
      %v2994 = vadd.f32 %v2993, %v2735
      %v2995 = vadd.f32 %v2994, %v2736
      %v2996 = vadd.f32 %v2995, %v2737
      %v2997 = vadd.f32 %v2996, %v2738
      %v2998 = vadd.f32 %v2997, %v2739
      %v2999 = vadd.f32 %v2998, %v2740
      %v3000 = vadd.f32 %v2999, %v2741
      %v3001 = vadd.f32 %v3000, %v2742
      %v3002 = vadd.f32 %v3001, %v2743
      %v3003 = vadd.f32 %v3002, %v2744
      %v3004 = vadd.f32 %v3003, %v2745
      %v3005 = vadd.f32 %v3004, %v2746
      %v3006 = vadd.f32 %v3005, %v2747
      %v3007 = vadd.f32 %v3006, %v2748
      %v3008 = vadd.f32 %v3007, %v2749
      %v3009 = vadd.f32 %v3008, %v2750
      %v3010 = vadd.f32 %v3009, %v2751
      %v3011 = vadd.f32 %v3010, %v2752
      %3012 = vadd.xlane.f32.xlu0 %v3011
      %v3013 = vpop.xlane.xlu0 %3012
      %v3014 = vadd.f32 %v2753, %v2754
      %v3015 = vadd.f32 %v3014, %v2755
      %v3016 = vadd.f32 %v3015, %v2756
      %v3017 = vadd.f32 %v3016, %v2757
      %v3018 = vadd.f32 %v3017, %v2758
      %v3019 = vadd.f32 %v3018, %v2759
      %v3020 = vadd.f32 %v3019, %v2760
      %v3021 = vadd.f32 %v3020, %v2761
      %v3022 = vadd.f32 %v3021, %v2762
      %v3023 = vadd.f32 %v3022, %v2763
      %v3024 = vadd.f32 %v3023, %v2764
      %v3025 = vadd.f32 %v3024, %v2765
      %v3026 = vadd.f32 %v3025, %v2766
      %v3027 = vadd.f32 %v3026, %v2767
      %v3028 = vadd.f32 %v3027, %v2768
      %v3029 = vadd.f32 %v3028, %v2769
      %v3030 = vadd.f32 %v3029, %v2770
      %v3031 = vadd.f32 %v3030, %v2771
      %v3032 = vadd.f32 %v3031, %v2772
      %v3033 = vadd.f32 %v3032, %v2773
      %v3034 = vadd.f32 %v3033, %v2774
      %v3035 = vadd.f32 %v3034, %v2775
      %v3036 = vadd.f32 %v3035, %v2776
      %v3037 = vadd.f32 %v3036, %v2777
      %v3038 = vadd.f32 %v3037, %v2778
      %v3039 = vadd.f32 %v3038, %v2779
      %v3040 = vadd.f32 %v3039, %v2780
      %v3041 = vadd.f32 %v3040, %v2781
      %v3042 = vadd.f32 %v3041, %v2782
      %v3043 = vadd.f32 %v3042, %v2783
      %v3044 = vadd.f32 %v3043, %v2784
      %3045 = vadd.xlane.f32.xlu0 %v3044
      %v3046 = vpop.xlane.xlu0 %3045
      %v3047 = vadd.f32 %v2785, %v2786
      %v3048 = vadd.f32 %v3047, %v2787
      %v3049 = vadd.f32 %v3048, %v2788
      %v3050 = vadd.f32 %v3049, %v2789
      %v3051 = vadd.f32 %v3050, %v2790
      %v3052 = vadd.f32 %v3051, %v2791
      %v3053 = vadd.f32 %v3052, %v2792
      %v3054 = vadd.f32 %v3053, %v2793
      %v3055 = vadd.f32 %v3054, %v2794
      %v3056 = vadd.f32 %v3055, %v2795
      %v3057 = vadd.f32 %v3056, %v2796
      %v3058 = vadd.f32 %v3057, %v2797
      %v3059 = vadd.f32 %v3058, %v2798
      %v3060 = vadd.f32 %v3059, %v2799
      %v3061 = vadd.f32 %v3060, %v2800
      %v3062 = vadd.f32 %v3061, %v2801
      %v3063 = vadd.f32 %v3062, %v2802
      %v3064 = vadd.f32 %v3063, %v2803
      %v3065 = vadd.f32 %v3064, %v2804
      %v3066 = vadd.f32 %v3065, %v2805
      %v3067 = vadd.f32 %v3066, %v2806
      %v3068 = vadd.f32 %v3067, %v2807
      %v3069 = vadd.f32 %v3068, %v2808
      %v3070 = vadd.f32 %v3069, %v2809
      %v3071 = vadd.f32 %v3070, %v2810
      %v3072 = vadd.f32 %v3071, %v2811
      %v3073 = vadd.f32 %v3072, %v2812
      %v3074 = vadd.f32 %v3073, %v2813
      %v3075 = vadd.f32 %v3074, %v2814
      %v3076 = vadd.f32 %v3075, %v2815
      %v3077 = vadd.f32 %v3076, %v2816
      %3078 = vadd.xlane.f32.xlu0 %v3077
      %v3079 = vpop.xlane.xlu0 %3078
      %v3080 = vadd.f32 %v2817, %v2818
      %v3081 = vadd.f32 %v3080, %v2819
      %v3082 = vadd.f32 %v3081, %v2820
      %v3083 = vadd.f32 %v3082, %v2821
      %v3084 = vadd.f32 %v3083, %v2822
      %v3085 = vadd.f32 %v3084, %v2823
      %v3086 = vadd.f32 %v3085, %v2824
      %v3087 = vadd.f32 %v3086, %v2825
      %v3088 = vadd.f32 %v3087, %v2826
      %v3089 = vadd.f32 %v3088, %v2827
      %v3090 = vadd.f32 %v3089, %v2828
      %v3091 = vadd.f32 %v3090, %v2829
      %v3092 = vadd.f32 %v3091, %v2830
      %v3093 = vadd.f32 %v3092, %v2831
      %v3094 = vadd.f32 %v3093, %v2832
      %v3095 = vadd.f32 %v3094, %v2833
      %v3096 = vadd.f32 %v3095, %v2834
      %v3097 = vadd.f32 %v3096, %v2835
      %v3098 = vadd.f32 %v3097, %v2836
      %v3099 = vadd.f32 %v3098, %v2837
      %v3100 = vadd.f32 %v3099, %v2838
      %v3101 = vadd.f32 %v3100, %v2839
      %v3102 = vadd.f32 %v3101, %v2840
      %v3103 = vadd.f32 %v3102, %v2841
      %v3104 = vadd.f32 %v3103, %v2842
      %v3105 = vadd.f32 %v3104, %v2843
      %v3106 = vadd.f32 %v3105, %v2844
      %v3107 = vadd.f32 %v3106, %v2845
      %v3108 = vadd.f32 %v3107, %v2846
      %v3109 = vadd.f32 %v3108, %v2847
      %v3110 = vadd.f32 %v3109, %v2848
      %3111 = vadd.xlane.f32.xlu0 %v3110
      %v3112 = vpop.xlane.xlu0 %3111
      %vm3113 = vcmask 7168
      %3114 = vst.msk [vmem:[%s1] sm:$0xff] %vm3113, %v2881
      %3115 = vst.msk [vmem:[%s1 + $0x8] sm:$0xff] %vm3113, %v2914
      %3116 = vst.msk [vmem:[%s1 + $0x10] sm:$0xff] %vm3113, %v2947
      %3117 = vst.msk [vmem:[%s1 + $0x18] sm:$0xff] %vm3113, %v2980
      %3118 = vst.msk [vmem:[%s1 + $0x20] sm:$0xff] %vm3113, %v3013
      %3119 = vst.msk [vmem:[%s1 + $0x28] sm:$0xff] %vm3113, %v3046
      %3120 = vst.msk [vmem:[%s1 + $0x30] sm:$0xff] %vm3113, %v3079
      %3121 = vst.msk [vmem:[%s1 + $0x38] sm:$0xff] %vm3113, %v3112
      %v3122 = vld [vmem:[#allocation3] sm:$0xff]
      %v3123 = vld [vmem:[#allocation3 + $0x8] sm:$0xff]
      %v3124 = vld [vmem:[#allocation3 + $0x10] sm:$0xff]
      %v3125 = vld [vmem:[#allocation3 + $0x18] sm:$0xff]
      %v3126 = vld [vmem:[#allocation3 + $0x20] sm:$0xff]
      %v3127 = vld [vmem:[#allocation3 + $0x28] sm:$0xff]
      %v3128 = vld [vmem:[#allocation3 + $0x30] sm:$0xff]
      %v3129 = vld [vmem:[#allocation3 + $0x38] sm:$0xff]
      %v3130 = vld [vmem:[#allocation3 + $0x40] sm:$0xff]
      %v3131 = vld [vmem:[#allocation3 + $0x48] sm:$0xff]
      %v3132 = vld [vmem:[#allocation3 + $0x50] sm:$0xff]
      %v3133 = vld [vmem:[#allocation3 + $0x58] sm:$0xff]
      %v3134 = vld [vmem:[#allocation3 + $0x60] sm:$0xff]
      %v3135 = vld [vmem:[#allocation3 + $0x68] sm:$0xff]
      %v3136 = vld [vmem:[#allocation3 + $0x70] sm:$0xff]
      %v3137 = vld [vmem:[#allocation3 + $0x78] sm:$0xff]
      %v3138 = vld [vmem:[#allocation3 + $0x80] sm:$0xff]
      %v3139 = vld [vmem:[#allocation3 + $0x88] sm:$0xff]
      %v3140 = vld [vmem:[#allocation3 + $0x90] sm:$0xff]
      %v3141 = vld [vmem:[#allocation3 + $0x98] sm:$0xff]
      %v3142 = vld [vmem:[#allocation3 + $0xa0] sm:$0xff]
      %v3143 = vld [vmem:[#allocation3 + $0xa8] sm:$0xff]
      %v3144 = vld [vmem:[#allocation3 + $0xb0] sm:$0xff]
      %v3145 = vld [vmem:[#allocation3 + $0xb8] sm:$0xff]
      %v3146 = vld [vmem:[#allocation3 + $0xc0] sm:$0xff]
      %v3147 = vld [vmem:[#allocation3 + $0xc8] sm:$0xff]
      %v3148 = vld [vmem:[#allocation3 + $0xd0] sm:$0xff]
      %v3149 = vld [vmem:[#allocation3 + $0xd8] sm:$0xff]
      %v3150 = vld [vmem:[#allocation3 + $0xe0] sm:$0xff]
      %v3151 = vld [vmem:[#allocation3 + $0xe8] sm:$0xff]
      %v3152 = vld [vmem:[#allocation3 + $0xf0] sm:$0xff]
      %v3153 = vld [vmem:[#allocation3 + $0xf8] sm:$0xff]
      %v3154 = vld [vmem:[#allocation3 + $0x100] sm:$0xff]
      %v3155 = vld [vmem:[#allocation3 + $0x108] sm:$0xff]
      %v3156 = vld [vmem:[#allocation3 + $0x110] sm:$0xff]
      %v3157 = vld [vmem:[#allocation3 + $0x118] sm:$0xff]
      %v3158 = vld [vmem:[#allocation3 + $0x120] sm:$0xff]
      %v3159 = vld [vmem:[#allocation3 + $0x128] sm:$0xff]
      %v3160 = vld [vmem:[#allocation3 + $0x130] sm:$0xff]
      %v3161 = vld [vmem:[#allocation3 + $0x138] sm:$0xff]
      %v3162 = vld [vmem:[#allocation3 + $0x140] sm:$0xff]
      %v3163 = vld [vmem:[#allocation3 + $0x148] sm:$0xff]
      %v3164 = vld [vmem:[#allocation3 + $0x150] sm:$0xff]
      %v3165 = vld [vmem:[#allocation3 + $0x158] sm:$0xff]
      %v3166 = vld [vmem:[#allocation3 + $0x160] sm:$0xff]
      %v3167 = vld [vmem:[#allocation3 + $0x168] sm:$0xff]
      %v3168 = vld [vmem:[#allocation3 + $0x170] sm:$0xff]
      %v3169 = vld [vmem:[#allocation3 + $0x178] sm:$0xff]
      %v3170 = vld [vmem:[#allocation3 + $0x180] sm:$0xff]
      %v3171 = vld [vmem:[#allocation3 + $0x188] sm:$0xff]
      %v3172 = vld [vmem:[#allocation3 + $0x190] sm:$0xff]
      %v3173 = vld [vmem:[#allocation3 + $0x198] sm:$0xff]
      %v3174 = vld [vmem:[#allocation3 + $0x1a0] sm:$0xff]
      %v3175 = vld [vmem:[#allocation3 + $0x1a8] sm:$0xff]
      %v3176 = vld [vmem:[#allocation3 + $0x1b0] sm:$0xff]
      %v3177 = vld [vmem:[#allocation3 + $0x1b8] sm:$0xff]
      %v3178 = vld [vmem:[#allocation3 + $0x1c0] sm:$0xff]
      %v3179 = vld [vmem:[#allocation3 + $0x1c8] sm:$0xff]
      %v3180 = vld [vmem:[#allocation3 + $0x1d0] sm:$0xff]
      %v3181 = vld [vmem:[#allocation3 + $0x1d8] sm:$0xff]
      %v3182 = vld [vmem:[#allocation3 + $0x1e0] sm:$0xff]
      %v3183 = vld [vmem:[#allocation3 + $0x1e8] sm:$0xff]
      %v3184 = vld [vmem:[#allocation3 + $0x1f0] sm:$0xff]
      %v3185 = vld [vmem:[#allocation3 + $0x1f8] sm:$0xff]
      %v3186 = vld [vmem:[#allocation3 + $0x200] sm:$0xff]
      %v3187 = vld [vmem:[#allocation3 + $0x208] sm:$0xff]
      %v3188 = vld [vmem:[#allocation3 + $0x210] sm:$0xff]
      %v3189 = vld [vmem:[#allocation3 + $0x218] sm:$0xff]
      %v3190 = vld [vmem:[#allocation3 + $0x220] sm:$0xff]
      %v3191 = vld [vmem:[#allocation3 + $0x228] sm:$0xff]
      %v3192 = vld [vmem:[#allocation3 + $0x230] sm:$0xff]
      %v3193 = vld [vmem:[#allocation3 + $0x238] sm:$0xff]
      %v3194 = vld [vmem:[#allocation3 + $0x240] sm:$0xff]
      %v3195 = vld [vmem:[#allocation3 + $0x248] sm:$0xff]
      %v3196 = vld [vmem:[#allocation3 + $0x250] sm:$0xff]
      %v3197 = vld [vmem:[#allocation3 + $0x258] sm:$0xff]
      %v3198 = vld [vmem:[#allocation3 + $0x260] sm:$0xff]
      %v3199 = vld [vmem:[#allocation3 + $0x268] sm:$0xff]
      %v3200 = vld [vmem:[#allocation3 + $0x270] sm:$0xff]
      %v3201 = vld [vmem:[#allocation3 + $0x278] sm:$0xff]
      %v3202 = vld [vmem:[#allocation3 + $0x280] sm:$0xff]
      %v3203 = vld [vmem:[#allocation3 + $0x288] sm:$0xff]
      %v3204 = vld [vmem:[#allocation3 + $0x290] sm:$0xff]
      %v3205 = vld [vmem:[#allocation3 + $0x298] sm:$0xff]
      %v3206 = vld [vmem:[#allocation3 + $0x2a0] sm:$0xff]
      %v3207 = vld [vmem:[#allocation3 + $0x2a8] sm:$0xff]
      %v3208 = vld [vmem:[#allocation3 + $0x2b0] sm:$0xff]
      %v3209 = vld [vmem:[#allocation3 + $0x2b8] sm:$0xff]
      %v3210 = vld [vmem:[#allocation3 + $0x2c0] sm:$0xff]
      %v3211 = vld [vmem:[#allocation3 + $0x2c8] sm:$0xff]
      %v3212 = vld [vmem:[#allocation3 + $0x2d0] sm:$0xff]
      %v3213 = vld [vmem:[#allocation3 + $0x2d8] sm:$0xff]
      %v3214 = vld [vmem:[#allocation3 + $0x2e0] sm:$0xff]
      %v3215 = vld [vmem:[#allocation3 + $0x2e8] sm:$0xff]
      %v3216 = vld [vmem:[#allocation3 + $0x2f0] sm:$0xff]
      %v3217 = vld [vmem:[#allocation3 + $0x2f8] sm:$0xff]
      %v3218 = vld [vmem:[#allocation3 + $0x300] sm:$0xff]
      %v3219 = vld [vmem:[#allocation3 + $0x308] sm:$0xff]
      %v3220 = vld [vmem:[#allocation3 + $0x310] sm:$0xff]
      %v3221 = vld [vmem:[#allocation3 + $0x318] sm:$0xff]
      %v3222 = vld [vmem:[#allocation3 + $0x320] sm:$0xff]
      %v3223 = vld [vmem:[#allocation3 + $0x328] sm:$0xff]
      %v3224 = vld [vmem:[#allocation3 + $0x330] sm:$0xff]
      %v3225 = vld [vmem:[#allocation3 + $0x338] sm:$0xff]
      %v3226 = vld [vmem:[#allocation3 + $0x340] sm:$0xff]
      %v3227 = vld [vmem:[#allocation3 + $0x348] sm:$0xff]
      %v3228 = vld [vmem:[#allocation3 + $0x350] sm:$0xff]
      %v3229 = vld [vmem:[#allocation3 + $0x358] sm:$0xff]
      %v3230 = vld [vmem:[#allocation3 + $0x360] sm:$0xff]
      %v3231 = vld [vmem:[#allocation3 + $0x368] sm:$0xff]
      %v3232 = vld [vmem:[#allocation3 + $0x370] sm:$0xff]
      %v3233 = vld [vmem:[#allocation3 + $0x378] sm:$0xff]
      %v3234 = vld [vmem:[#allocation3 + $0x380] sm:$0xff]
      %v3235 = vld [vmem:[#allocation3 + $0x388] sm:$0xff]
      %v3236 = vld [vmem:[#allocation3 + $0x390] sm:$0xff]
      %v3237 = vld [vmem:[#allocation3 + $0x398] sm:$0xff]
      %v3238 = vld [vmem:[#allocation3 + $0x3a0] sm:$0xff]
      %v3239 = vld [vmem:[#allocation3 + $0x3a8] sm:$0xff]
      %v3240 = vld [vmem:[#allocation3 + $0x3b0] sm:$0xff]
      %v3241 = vld [vmem:[#allocation3 + $0x3b8] sm:$0xff]
      %v3242 = vld [vmem:[#allocation3 + $0x3c0] sm:$0xff]
      %v3243 = vld [vmem:[#allocation3 + $0x3c8] sm:$0xff]
      %v3244 = vld [vmem:[#allocation3 + $0x3d0] sm:$0xff]
      %v3245 = vld [vmem:[#allocation3 + $0x3d8] sm:$0xff]
      %v3246 = vld [vmem:[#allocation3 + $0x3e0] sm:$0xff]
      %v3247 = vld [vmem:[#allocation3 + $0x3e8] sm:$0xff]
      %v3248 = vld [vmem:[#allocation3 + $0x3f0] sm:$0xff]
      %v3249 = vld [vmem:[#allocation3 + $0x3f8] sm:$0xff]
      %v3250 = vld [vmem:[#allocation3 + $0x400] sm:$0xff]
      %v3251 = vld [vmem:[#allocation3 + $0x408] sm:$0xff]
      %v3252 = vld [vmem:[#allocation3 + $0x410] sm:$0xff]
      %v3253 = vld [vmem:[#allocation3 + $0x418] sm:$0xff]
      %v3254 = vld [vmem:[#allocation3 + $0x420] sm:$0xff]
      %v3255 = vld [vmem:[#allocation3 + $0x428] sm:$0xff]
      %v3256 = vld [vmem:[#allocation3 + $0x430] sm:$0xff]
      %v3257 = vld [vmem:[#allocation3 + $0x438] sm:$0xff]
      %v3258 = vld [vmem:[#allocation3 + $0x440] sm:$0xff]
      %v3259 = vld [vmem:[#allocation3 + $0x448] sm:$0xff]
      %v3260 = vld [vmem:[#allocation3 + $0x450] sm:$0xff]
      %v3261 = vld [vmem:[#allocation3 + $0x458] sm:$0xff]
      %v3262 = vld [vmem:[#allocation3 + $0x460] sm:$0xff]
      %v3263 = vld [vmem:[#allocation3 + $0x468] sm:$0xff]
      %v3264 = vld [vmem:[#allocation3 + $0x470] sm:$0xff]
      %v3265 = vld [vmem:[#allocation3 + $0x478] sm:$0xff]
      %v3266 = vld [vmem:[#allocation3 + $0x480] sm:$0xff]
      %v3267 = vld [vmem:[#allocation3 + $0x488] sm:$0xff]
      %v3268 = vld [vmem:[#allocation3 + $0x490] sm:$0xff]
      %v3269 = vld [vmem:[#allocation3 + $0x498] sm:$0xff]
      %v3270 = vld [vmem:[#allocation3 + $0x4a0] sm:$0xff]
      %v3271 = vld [vmem:[#allocation3 + $0x4a8] sm:$0xff]
      %v3272 = vld [vmem:[#allocation3 + $0x4b0] sm:$0xff]
      %v3273 = vld [vmem:[#allocation3 + $0x4b8] sm:$0xff]
      %v3274 = vld [vmem:[#allocation3 + $0x4c0] sm:$0xff]
      %v3275 = vld [vmem:[#allocation3 + $0x4c8] sm:$0xff]
      %v3276 = vld [vmem:[#allocation3 + $0x4d0] sm:$0xff]
      %v3277 = vld [vmem:[#allocation3 + $0x4d8] sm:$0xff]
      %v3278 = vld [vmem:[#allocation3 + $0x4e0] sm:$0xff]
      %v3279 = vld [vmem:[#allocation3 + $0x4e8] sm:$0xff]
      %v3280 = vld [vmem:[#allocation3 + $0x4f0] sm:$0xff]
      %v3281 = vld [vmem:[#allocation3 + $0x4f8] sm:$0xff]
      %v3282 = vld [vmem:[#allocation3 + $0x500] sm:$0xff]
      %v3283 = vld [vmem:[#allocation3 + $0x508] sm:$0xff]
      %v3284 = vld [vmem:[#allocation3 + $0x510] sm:$0xff]
      %v3285 = vld [vmem:[#allocation3 + $0x518] sm:$0xff]
      %v3286 = vld [vmem:[#allocation3 + $0x520] sm:$0xff]
      %v3287 = vld [vmem:[#allocation3 + $0x528] sm:$0xff]
      %v3288 = vld [vmem:[#allocation3 + $0x530] sm:$0xff]
      %v3289 = vld [vmem:[#allocation3 + $0x538] sm:$0xff]
      %v3290 = vld [vmem:[#allocation3 + $0x540] sm:$0xff]
      %v3291 = vld [vmem:[#allocation3 + $0x548] sm:$0xff]
      %v3292 = vld [vmem:[#allocation3 + $0x550] sm:$0xff]
      %v3293 = vld [vmem:[#allocation3 + $0x558] sm:$0xff]
      %v3294 = vld [vmem:[#allocation3 + $0x560] sm:$0xff]
      %v3295 = vld [vmem:[#allocation3 + $0x568] sm:$0xff]
      %v3296 = vld [vmem:[#allocation3 + $0x570] sm:$0xff]
      %v3297 = vld [vmem:[#allocation3 + $0x578] sm:$0xff]
      %v3298 = vld [vmem:[#allocation3 + $0x580] sm:$0xff]
      %v3299 = vld [vmem:[#allocation3 + $0x588] sm:$0xff]
      %v3300 = vld [vmem:[#allocation3 + $0x590] sm:$0xff]
      %v3301 = vld [vmem:[#allocation3 + $0x598] sm:$0xff]
      %v3302 = vld [vmem:[#allocation3 + $0x5a0] sm:$0xff]
      %v3303 = vld [vmem:[#allocation3 + $0x5a8] sm:$0xff]
      %v3304 = vld [vmem:[#allocation3 + $0x5b0] sm:$0xff]
      %v3305 = vld [vmem:[#allocation3 + $0x5b8] sm:$0xff]
      %v3306 = vld [vmem:[#allocation3 + $0x5c0] sm:$0xff]
      %v3307 = vld [vmem:[#allocation3 + $0x5c8] sm:$0xff]
      %v3308 = vld [vmem:[#allocation3 + $0x5d0] sm:$0xff]
      %v3309 = vld [vmem:[#allocation3 + $0x5d8] sm:$0xff]
      %v3310 = vld [vmem:[#allocation3 + $0x5e0] sm:$0xff]
      %v3311 = vld [vmem:[#allocation3 + $0x5e8] sm:$0xff]
      %v3312 = vld [vmem:[#allocation3 + $0x5f0] sm:$0xff]
      %v3313 = vld [vmem:[#allocation3 + $0x5f8] sm:$0xff]
      %v3314 = vld [vmem:[#allocation3 + $0x600] sm:$0xff]
      %v3315 = vld [vmem:[#allocation3 + $0x608] sm:$0xff]
      %v3316 = vld [vmem:[#allocation3 + $0x610] sm:$0xff]
      %v3317 = vld [vmem:[#allocation3 + $0x618] sm:$0xff]
      %v3318 = vld [vmem:[#allocation3 + $0x620] sm:$0xff]
      %v3319 = vld [vmem:[#allocation3 + $0x628] sm:$0xff]
      %v3320 = vld [vmem:[#allocation3 + $0x630] sm:$0xff]
      %v3321 = vld [vmem:[#allocation3 + $0x638] sm:$0xff]
      %v3322 = vld [vmem:[#allocation3 + $0x640] sm:$0xff]
      %v3323 = vld [vmem:[#allocation3 + $0x648] sm:$0xff]
      %v3324 = vld [vmem:[#allocation3 + $0x650] sm:$0xff]
      %v3325 = vld [vmem:[#allocation3 + $0x658] sm:$0xff]
      %v3326 = vld [vmem:[#allocation3 + $0x660] sm:$0xff]
      %v3327 = vld [vmem:[#allocation3 + $0x668] sm:$0xff]
      %v3328 = vld [vmem:[#allocation3 + $0x670] sm:$0xff]
      %v3329 = vld [vmem:[#allocation3 + $0x678] sm:$0xff]
      %v3330 = vld [vmem:[#allocation3 + $0x680] sm:$0xff]
      %v3331 = vld [vmem:[#allocation3 + $0x688] sm:$0xff]
      %v3332 = vld [vmem:[#allocation3 + $0x690] sm:$0xff]
      %v3333 = vld [vmem:[#allocation3 + $0x698] sm:$0xff]
      %v3334 = vld [vmem:[#allocation3 + $0x6a0] sm:$0xff]
      %v3335 = vld [vmem:[#allocation3 + $0x6a8] sm:$0xff]
      %v3336 = vld [vmem:[#allocation3 + $0x6b0] sm:$0xff]
      %v3337 = vld [vmem:[#allocation3 + $0x6b8] sm:$0xff]
      %v3338 = vld [vmem:[#allocation3 + $0x6c0] sm:$0xff]
      %v3339 = vld [vmem:[#allocation3 + $0x6c8] sm:$0xff]
      %v3340 = vld [vmem:[#allocation3 + $0x6d0] sm:$0xff]
      %v3341 = vld [vmem:[#allocation3 + $0x6d8] sm:$0xff]
      %v3342 = vld [vmem:[#allocation3 + $0x6e0] sm:$0xff]
      %v3343 = vld [vmem:[#allocation3 + $0x6e8] sm:$0xff]
      %v3344 = vld [vmem:[#allocation3 + $0x6f0] sm:$0xff]
      %v3345 = vld [vmem:[#allocation3 + $0x6f8] sm:$0xff]
      %v3346 = vld [vmem:[#allocation3 + $0x700] sm:$0xff]
      %v3347 = vld [vmem:[#allocation3 + $0x708] sm:$0xff]
      %v3348 = vld [vmem:[#allocation3 + $0x710] sm:$0xff]
      %v3349 = vld [vmem:[#allocation3 + $0x718] sm:$0xff]
      %v3350 = vld [vmem:[#allocation3 + $0x720] sm:$0xff]
      %v3351 = vld [vmem:[#allocation3 + $0x728] sm:$0xff]
      %v3352 = vld [vmem:[#allocation3 + $0x730] sm:$0xff]
      %v3353 = vld [vmem:[#allocation3 + $0x738] sm:$0xff]
      %v3354 = vld [vmem:[#allocation3 + $0x740] sm:$0xff]
      %v3355 = vld [vmem:[#allocation3 + $0x748] sm:$0xff]
      %v3356 = vld [vmem:[#allocation3 + $0x750] sm:$0xff]
      %v3357 = vld [vmem:[#allocation3 + $0x758] sm:$0xff]
      %v3358 = vld [vmem:[#allocation3 + $0x760] sm:$0xff]
      %v3359 = vld [vmem:[#allocation3 + $0x768] sm:$0xff]
      %v3360 = vld [vmem:[#allocation3 + $0x770] sm:$0xff]
      %v3361 = vld [vmem:[#allocation3 + $0x778] sm:$0xff]
      %v3362 = vld [vmem:[#allocation3 + $0x780] sm:$0xff]
      %v3363 = vld [vmem:[#allocation3 + $0x788] sm:$0xff]
      %v3364 = vld [vmem:[#allocation3 + $0x790] sm:$0xff]
      %v3365 = vld [vmem:[#allocation3 + $0x798] sm:$0xff]
      %v3366 = vld [vmem:[#allocation3 + $0x7a0] sm:$0xff]
      %v3367 = vld [vmem:[#allocation3 + $0x7a8] sm:$0xff]
      %v3368 = vld [vmem:[#allocation3 + $0x7b0] sm:$0xff]
      %v3369 = vld [vmem:[#allocation3 + $0x7b8] sm:$0xff]
      %v3370 = vld [vmem:[#allocation3 + $0x7c0] sm:$0xff]
      %v3371 = vld [vmem:[#allocation3 + $0x7c8] sm:$0xff]
      %v3372 = vld [vmem:[#allocation3 + $0x7d0] sm:$0xff]
      %v3373 = vld [vmem:[#allocation3 + $0x7d8] sm:$0xff]
      %v3374 = vld [vmem:[#allocation3 + $0x7e0] sm:$0xff]
      %v3375 = vld [vmem:[#allocation3 + $0x7e8] sm:$0xff]
      %v3376 = vld [vmem:[#allocation3 + $0x7f0] sm:$0xff]
      %v3377 = vld [vmem:[#allocation3 + $0x7f8] sm:$0xff]
      %v3378 = vadd.f32 %v3122, %v3123
      %v3379 = vadd.f32 %v3378, %v3124
      %v3380 = vadd.f32 %v3379, %v3125
      %v3381 = vadd.f32 %v3380, %v3126
      %v3382 = vadd.f32 %v3381, %v3127
      %v3383 = vadd.f32 %v3382, %v3128
      %v3384 = vadd.f32 %v3383, %v3129
      %v3385 = vadd.f32 %v3384, %v3130
      %v3386 = vadd.f32 %v3385, %v3131
      %v3387 = vadd.f32 %v3386, %v3132
      %v3388 = vadd.f32 %v3387, %v3133
      %v3389 = vadd.f32 %v3388, %v3134
      %v3390 = vadd.f32 %v3389, %v3135
      %v3391 = vadd.f32 %v3390, %v3136
      %v3392 = vadd.f32 %v3391, %v3137
      %v3393 = vadd.f32 %v3392, %v3138
      %v3394 = vadd.f32 %v3393, %v3139
      %v3395 = vadd.f32 %v3394, %v3140
      %v3396 = vadd.f32 %v3395, %v3141
      %v3397 = vadd.f32 %v3396, %v3142
      %v3398 = vadd.f32 %v3397, %v3143
      %v3399 = vadd.f32 %v3398, %v3144
      %v3400 = vadd.f32 %v3399, %v3145
      %v3401 = vadd.f32 %v3400, %v3146
      %v3402 = vadd.f32 %v3401, %v3147
      %v3403 = vadd.f32 %v3402, %v3148
      %v3404 = vadd.f32 %v3403, %v3149
      %v3405 = vadd.f32 %v3404, %v3150
      %v3406 = vadd.f32 %v3405, %v3151
      %v3407 = vadd.f32 %v3406, %v3152
      %v3408 = vadd.f32 %v3407, %v3153
      %3409 = vadd.xlane.f32.xlu0 %v3408
      %v3410 = vpop.xlane.xlu0 %3409
      %v3411 = vadd.f32 %v3154, %v3155
      %v3412 = vadd.f32 %v3411, %v3156
      %v3413 = vadd.f32 %v3412, %v3157
      %v3414 = vadd.f32 %v3413, %v3158
      %v3415 = vadd.f32 %v3414, %v3159
      %v3416 = vadd.f32 %v3415, %v3160
      %v3417 = vadd.f32 %v3416, %v3161
      %v3418 = vadd.f32 %v3417, %v3162
      %v3419 = vadd.f32 %v3418, %v3163
      %v3420 = vadd.f32 %v3419, %v3164
      %v3421 = vadd.f32 %v3420, %v3165
      %v3422 = vadd.f32 %v3421, %v3166
      %v3423 = vadd.f32 %v3422, %v3167
      %v3424 = vadd.f32 %v3423, %v3168
      %v3425 = vadd.f32 %v3424, %v3169
      %v3426 = vadd.f32 %v3425, %v3170
      %v3427 = vadd.f32 %v3426, %v3171
      %v3428 = vadd.f32 %v3427, %v3172
      %v3429 = vadd.f32 %v3428, %v3173
      %v3430 = vadd.f32 %v3429, %v3174
      %v3431 = vadd.f32 %v3430, %v3175
      %v3432 = vadd.f32 %v3431, %v3176
      %v3433 = vadd.f32 %v3432, %v3177
      %v3434 = vadd.f32 %v3433, %v3178
      %v3435 = vadd.f32 %v3434, %v3179
      %v3436 = vadd.f32 %v3435, %v3180
      %v3437 = vadd.f32 %v3436, %v3181
      %v3438 = vadd.f32 %v3437, %v3182
      %v3439 = vadd.f32 %v3438, %v3183
      %v3440 = vadd.f32 %v3439, %v3184
      %v3441 = vadd.f32 %v3440, %v3185
      %3442 = vadd.xlane.f32.xlu0 %v3441
      %v3443 = vpop.xlane.xlu0 %3442
      %v3444 = vadd.f32 %v3186, %v3187
      %v3445 = vadd.f32 %v3444, %v3188
      %v3446 = vadd.f32 %v3445, %v3189
      %v3447 = vadd.f32 %v3446, %v3190
      %v3448 = vadd.f32 %v3447, %v3191
      %v3449 = vadd.f32 %v3448, %v3192
      %v3450 = vadd.f32 %v3449, %v3193
      %v3451 = vadd.f32 %v3450, %v3194
      %v3452 = vadd.f32 %v3451, %v3195
      %v3453 = vadd.f32 %v3452, %v3196
      %v3454 = vadd.f32 %v3453, %v3197
      %v3455 = vadd.f32 %v3454, %v3198
      %v3456 = vadd.f32 %v3455, %v3199
      %v3457 = vadd.f32 %v3456, %v3200
      %v3458 = vadd.f32 %v3457, %v3201
      %v3459 = vadd.f32 %v3458, %v3202
      %v3460 = vadd.f32 %v3459, %v3203
      %v3461 = vadd.f32 %v3460, %v3204
      %v3462 = vadd.f32 %v3461, %v3205
      %v3463 = vadd.f32 %v3462, %v3206
      %v3464 = vadd.f32 %v3463, %v3207
      %v3465 = vadd.f32 %v3464, %v3208
      %v3466 = vadd.f32 %v3465, %v3209
      %v3467 = vadd.f32 %v3466, %v3210
      %v3468 = vadd.f32 %v3467, %v3211
      %v3469 = vadd.f32 %v3468, %v3212
      %v3470 = vadd.f32 %v3469, %v3213
      %v3471 = vadd.f32 %v3470, %v3214
      %v3472 = vadd.f32 %v3471, %v3215
      %v3473 = vadd.f32 %v3472, %v3216
      %v3474 = vadd.f32 %v3473, %v3217
      %3475 = vadd.xlane.f32.xlu0 %v3474
      %v3476 = vpop.xlane.xlu0 %3475
      %v3477 = vadd.f32 %v3218, %v3219
      %v3478 = vadd.f32 %v3477, %v3220
      %v3479 = vadd.f32 %v3478, %v3221
      %v3480 = vadd.f32 %v3479, %v3222
      %v3481 = vadd.f32 %v3480, %v3223
      %v3482 = vadd.f32 %v3481, %v3224
      %v3483 = vadd.f32 %v3482, %v3225
      %v3484 = vadd.f32 %v3483, %v3226
      %v3485 = vadd.f32 %v3484, %v3227
      %v3486 = vadd.f32 %v3485, %v3228
      %v3487 = vadd.f32 %v3486, %v3229
      %v3488 = vadd.f32 %v3487, %v3230
      %v3489 = vadd.f32 %v3488, %v3231
      %v3490 = vadd.f32 %v3489, %v3232
      %v3491 = vadd.f32 %v3490, %v3233
      %v3492 = vadd.f32 %v3491, %v3234
      %v3493 = vadd.f32 %v3492, %v3235
      %v3494 = vadd.f32 %v3493, %v3236
      %v3495 = vadd.f32 %v3494, %v3237
      %v3496 = vadd.f32 %v3495, %v3238
      %v3497 = vadd.f32 %v3496, %v3239
      %v3498 = vadd.f32 %v3497, %v3240
      %v3499 = vadd.f32 %v3498, %v3241
      %v3500 = vadd.f32 %v3499, %v3242
      %v3501 = vadd.f32 %v3500, %v3243
      %v3502 = vadd.f32 %v3501, %v3244
      %v3503 = vadd.f32 %v3502, %v3245
      %v3504 = vadd.f32 %v3503, %v3246
      %v3505 = vadd.f32 %v3504, %v3247
      %v3506 = vadd.f32 %v3505, %v3248
      %v3507 = vadd.f32 %v3506, %v3249
      %3508 = vadd.xlane.f32.xlu0 %v3507
      %v3509 = vpop.xlane.xlu0 %3508
      %v3510 = vadd.f32 %v3250, %v3251
      %v3511 = vadd.f32 %v3510, %v3252
      %v3512 = vadd.f32 %v3511, %v3253
      %v3513 = vadd.f32 %v3512, %v3254
      %v3514 = vadd.f32 %v3513, %v3255
      %v3515 = vadd.f32 %v3514, %v3256
      %v3516 = vadd.f32 %v3515, %v3257
      %v3517 = vadd.f32 %v3516, %v3258
      %v3518 = vadd.f32 %v3517, %v3259
      %v3519 = vadd.f32 %v3518, %v3260
      %v3520 = vadd.f32 %v3519, %v3261
      %v3521 = vadd.f32 %v3520, %v3262
      %v3522 = vadd.f32 %v3521, %v3263
      %v3523 = vadd.f32 %v3522, %v3264
      %v3524 = vadd.f32 %v3523, %v3265
      %v3525 = vadd.f32 %v3524, %v3266
      %v3526 = vadd.f32 %v3525, %v3267
      %v3527 = vadd.f32 %v3526, %v3268
      %v3528 = vadd.f32 %v3527, %v3269
      %v3529 = vadd.f32 %v3528, %v3270
      %v3530 = vadd.f32 %v3529, %v3271
      %v3531 = vadd.f32 %v3530, %v3272
      %v3532 = vadd.f32 %v3531, %v3273
      %v3533 = vadd.f32 %v3532, %v3274
      %v3534 = vadd.f32 %v3533, %v3275
      %v3535 = vadd.f32 %v3534, %v3276
      %v3536 = vadd.f32 %v3535, %v3277
      %v3537 = vadd.f32 %v3536, %v3278
      %v3538 = vadd.f32 %v3537, %v3279
      %v3539 = vadd.f32 %v3538, %v3280
      %v3540 = vadd.f32 %v3539, %v3281
      %3541 = vadd.xlane.f32.xlu0 %v3540
      %v3542 = vpop.xlane.xlu0 %3541
      %v3543 = vadd.f32 %v3282, %v3283
      %v3544 = vadd.f32 %v3543, %v3284
      %v3545 = vadd.f32 %v3544, %v3285
      %v3546 = vadd.f32 %v3545, %v3286
      %v3547 = vadd.f32 %v3546, %v3287
      %v3548 = vadd.f32 %v3547, %v3288
      %v3549 = vadd.f32 %v3548, %v3289
      %v3550 = vadd.f32 %v3549, %v3290
      %v3551 = vadd.f32 %v3550, %v3291
      %v3552 = vadd.f32 %v3551, %v3292
      %v3553 = vadd.f32 %v3552, %v3293
      %v3554 = vadd.f32 %v3553, %v3294
      %v3555 = vadd.f32 %v3554, %v3295
      %v3556 = vadd.f32 %v3555, %v3296
      %v3557 = vadd.f32 %v3556, %v3297
      %v3558 = vadd.f32 %v3557, %v3298
      %v3559 = vadd.f32 %v3558, %v3299
      %v3560 = vadd.f32 %v3559, %v3300
      %v3561 = vadd.f32 %v3560, %v3301
      %v3562 = vadd.f32 %v3561, %v3302
      %v3563 = vadd.f32 %v3562, %v3303
      %v3564 = vadd.f32 %v3563, %v3304
      %v3565 = vadd.f32 %v3564, %v3305
      %v3566 = vadd.f32 %v3565, %v3306
      %v3567 = vadd.f32 %v3566, %v3307
      %v3568 = vadd.f32 %v3567, %v3308
      %v3569 = vadd.f32 %v3568, %v3309
      %v3570 = vadd.f32 %v3569, %v3310
      %v3571 = vadd.f32 %v3570, %v3311
      %v3572 = vadd.f32 %v3571, %v3312
      %v3573 = vadd.f32 %v3572, %v3313
      %3574 = vadd.xlane.f32.xlu0 %v3573
      %v3575 = vpop.xlane.xlu0 %3574
      %v3576 = vadd.f32 %v3314, %v3315
      %v3577 = vadd.f32 %v3576, %v3316
      %v3578 = vadd.f32 %v3577, %v3317
      %v3579 = vadd.f32 %v3578, %v3318
      %v3580 = vadd.f32 %v3579, %v3319
      %v3581 = vadd.f32 %v3580, %v3320
      %v3582 = vadd.f32 %v3581, %v3321
      %v3583 = vadd.f32 %v3582, %v3322
      %v3584 = vadd.f32 %v3583, %v3323
      %v3585 = vadd.f32 %v3584, %v3324
      %v3586 = vadd.f32 %v3585, %v3325
      %v3587 = vadd.f32 %v3586, %v3326
      %v3588 = vadd.f32 %v3587, %v3327
      %v3589 = vadd.f32 %v3588, %v3328
      %v3590 = vadd.f32 %v3589, %v3329
      %v3591 = vadd.f32 %v3590, %v3330
      %v3592 = vadd.f32 %v3591, %v3331
      %v3593 = vadd.f32 %v3592, %v3332
      %v3594 = vadd.f32 %v3593, %v3333
      %v3595 = vadd.f32 %v3594, %v3334
      %v3596 = vadd.f32 %v3595, %v3335
      %v3597 = vadd.f32 %v3596, %v3336
      %v3598 = vadd.f32 %v3597, %v3337
      %v3599 = vadd.f32 %v3598, %v3338
      %v3600 = vadd.f32 %v3599, %v3339
      %v3601 = vadd.f32 %v3600, %v3340
      %v3602 = vadd.f32 %v3601, %v3341
      %v3603 = vadd.f32 %v3602, %v3342
      %v3604 = vadd.f32 %v3603, %v3343
      %v3605 = vadd.f32 %v3604, %v3344
      %v3606 = vadd.f32 %v3605, %v3345
      %3607 = vadd.xlane.f32.xlu0 %v3606
      %v3608 = vpop.xlane.xlu0 %3607
      %v3609 = vadd.f32 %v3346, %v3347
      %v3610 = vadd.f32 %v3609, %v3348
      %v3611 = vadd.f32 %v3610, %v3349
      %v3612 = vadd.f32 %v3611, %v3350
      %v3613 = vadd.f32 %v3612, %v3351
      %v3614 = vadd.f32 %v3613, %v3352
      %v3615 = vadd.f32 %v3614, %v3353
      %v3616 = vadd.f32 %v3615, %v3354
      %v3617 = vadd.f32 %v3616, %v3355
      %v3618 = vadd.f32 %v3617, %v3356
      %v3619 = vadd.f32 %v3618, %v3357
      %v3620 = vadd.f32 %v3619, %v3358
      %v3621 = vadd.f32 %v3620, %v3359
      %v3622 = vadd.f32 %v3621, %v3360
      %v3623 = vadd.f32 %v3622, %v3361
      %v3624 = vadd.f32 %v3623, %v3362
      %v3625 = vadd.f32 %v3624, %v3363
      %v3626 = vadd.f32 %v3625, %v3364
      %v3627 = vadd.f32 %v3626, %v3365
      %v3628 = vadd.f32 %v3627, %v3366
      %v3629 = vadd.f32 %v3628, %v3367
      %v3630 = vadd.f32 %v3629, %v3368
      %v3631 = vadd.f32 %v3630, %v3369
      %v3632 = vadd.f32 %v3631, %v3370
      %v3633 = vadd.f32 %v3632, %v3371
      %v3634 = vadd.f32 %v3633, %v3372
      %v3635 = vadd.f32 %v3634, %v3373
      %v3636 = vadd.f32 %v3635, %v3374
      %v3637 = vadd.f32 %v3636, %v3375
      %v3638 = vadd.f32 %v3637, %v3376
      %v3639 = vadd.f32 %v3638, %v3377
      %3640 = vadd.xlane.f32.xlu0 %v3639
      %v3641 = vpop.xlane.xlu0 %3640
      %3642 = vst.msk [vmem:[%s2] sm:$0xff] %vm3113, %v3410
      %3643 = vst.msk [vmem:[%s2 + $0x8] sm:$0xff] %vm3113, %v3443
      %3644 = vst.msk [vmem:[%s2 + $0x10] sm:$0xff] %vm3113, %v3476
      %3645 = vst.msk [vmem:[%s2 + $0x18] sm:$0xff] %vm3113, %v3509
      %3646 = vst.msk [vmem:[%s2 + $0x20] sm:$0xff] %vm3113, %v3542
      %3647 = vst.msk [vmem:[%s2 + $0x28] sm:$0xff] %vm3113, %v3575
      %3648 = vst.msk [vmem:[%s2 + $0x30] sm:$0xff] %vm3113, %v3608
      %3649 = vst.msk [vmem:[%s2 + $0x38] sm:$0xff] %vm3113, %v3641
    $region17: #{tpu_custom_call.1} parent=1 // pred_fallthru
      _
    // Predicated region
    $region18: #{tpu_custom_call.1} parent=1 // pred_check
      _
    $region19: #{tpu_custom_call.1} parent=1 // pred_check_branch
      %3651 = sbr.rel (0) target = $region21
    $region20: #{tpu_custom_call.1} parent=1 // pred_region
      _
    $region21: #{tpu_custom_call.1} parent=1 // pred_fallthru
      _
    // Predicated region
    $region22: #{tpu_custom_call.1} parent=1 // pred_check
      _
    $region23: #{tpu_custom_call.1} parent=1 // pred_check_branch
      %3653 = sbr.rel (0) target = $region25
    $region24: #{tpu_custom_call.1} parent=1 // pred_region
      _
    $region25: #{tpu_custom_call.1} parent=1 // pred_fallthru
      _
    // Predicated region
    $region26: #{tpu_custom_call.1} parent=1 // pred_check
      _
    $region27: #{tpu_custom_call.1} parent=1 // pred_check_branch
      %3655 = sbr.rel (0) target = $region29
    $region28: #{tpu_custom_call.1} parent=1 // pred_region
      _
    $region29: #{tpu_custom_call.1} parent=1 // pred_fallthru
      _
    // Predicated region
    $region30: #{tpu_custom_call.1} parent=1 // pred_check
      _
    $region31: #{tpu_custom_call.1} parent=1 // pred_check_branch
      %3657 = sbr.rel (0) target = $region33
    $region32: #{tpu_custom_call.1} parent=1 // pred_region
      _
    $region33: #{tpu_custom_call.1} parent=1 // pred_fallthru
      _
    %3658 = vsyncpa [#allocation5], 1

</llo_original>
